<compile_context>
chip_gen: v5e
topology: v5e:2x2
jax: 0.10.0
libtpu: 0.0.40
codegen_flags: <defaults>
</compile_context>

<pallas_src>
import functools

import jax
import jax.numpy as jnp
import numpy as np
from jax.experimental import pallas as pl
from jax.experimental.pallas import tpu as pltpu


def basic_block_kernel(x_ref, w1_ref, w2_ref, bias_ref, out_ref, *, width):
    # x_ref   : (1, Cp, HW) f32   channels-first, channels zero-padded to Cp,
    #                             spatial flattened onto the lane axis.
    # w*_ref  : (9*Cp, Cp)  MXU dtype; rows [t*Cp:(t+1)*Cp] = tap t as
    #                             (Cout, Cin), BN scale already folded in.
    # bias_ref: (2, Cp, 1) f32    rows = [bn1 shift, bn2 shift].
    # out_ref : (1, Cp, HW) f32
    cp, hw = x_ref.shape[1], x_ref.shape[2]
    mxu_dtype = w1_ref.dtype

    x32 = x_ref[0]                       # (Cp, HW) f32 -- exact residual path
    x = x32.astype(mxu_dtype)            # one cast; conv1 taps built in MXU dtype

    # ---- boundary masks: built once, shared by all taps of both convs ----
    # Flat spatial index j = y*W + x lives on the lane axis; tap (oy, ox) reads
    # src[j + oy*W + ox].  Rows wrapped off the image by the roll and the
    # left/right column wrap of the +/-1 taps are zeroed by the mask.
    j = jax.lax.broadcasted_iota(jnp.int32, (1, hw), 1)
    xcol = j % width
    tap_info = []                        # (delta, mask-or-None) per tap, row-major
    for oy in (-1, 0, 1):
        for ox in (-1, 0, 1):
            delta = oy * width + ox
            ok = None
            if delta > 0:                # wrapped past the bottom of the image
                ok = j < hw - delta
            elif delta < 0:              # wrapped past the top
                ok = j >= -delta
            if ox == -1:                 # column 0 has no left neighbour
                c = xcol >= 1
                ok = c if ok is None else jnp.logical_and(ok, c)
            elif ox == 1:                # column W-1 has no right neighbour
                c = xcol < width - 1
                ok = c if ok is None else jnp.logical_and(ok, c)
            tap_info.append((delta, None if ok is None else ok.astype(mxu_dtype)))

    def conv3x3(src, w_ref):
        # src: (Cp, HW) in MXU dtype.  One accumulated MXU matmul per tap; the
        # lane shift runs on the XLU (pltpu.roll) and the Cp-aligned weight
        # slice is a zero-cost static view, so no im2col tensor is materialized.
        acc = None
        for t, (delta, mask) in enumerate(tap_info):
            tap = src if delta == 0 else pltpu.roll(src, shift=(-delta) % hw, axis=1)
            if mask is not None:
                tap = tap * mask
            part = jnp.dot(w_ref[pl.ds(t * cp, cp), :], tap,
                           preferred_element_type=jnp.float32)
            acc = part if acc is None else acc + part
        return acc                       # (Cp, HW) f32

    # ---- conv1 -> bn1 -> relu ----  (BN scale folded into w1; add the shift)
    mid32 = jnp.maximum(conv3x3(x, w1_ref) + bias_ref[0], 0.0)

    # ---- conv2 -> bn2 -> (+identity) -> relu ----
    acc2 = conv3x3(mid32.astype(mxu_dtype), w2_ref)      # single cast of `mid`
    out = acc2 + bias_ref[1] + x32
    # TODO(synk): emit bf16 (and only the un-padded channels) if the consumer
    # accepts it -- halves HBM writeback on memory-bound layers.
    out_ref[0] = jnp.maximum(out, 0.0).astype(out_ref.dtype)


def _round_up(n, m):
    return (n + m - 1) // m * m


def _fold_bn(bn, eps):
    gamma, beta, mean, var = (jnp.asarray(t, jnp.float32) for t in bn)
    scale = gamma / jnp.sqrt(var + eps)          # eval-mode BN: y = x*scale + shift
    shift = beta - mean * scale
    return scale, shift


def basic_block_pallas(x_nchw, w1_oihw, bn1, w2_oihw, bn2, eps=1e-5,
                       compute_dtype=jnp.bfloat16):
    """BasicBlock forward. x_nchw: (N, C, H, W) f32, conv weights OIHW, bias=False."""
    N, C, H, W = x_nchw.shape
    Cout = w1_oihw.shape[0]
    assert C == Cout, "stride=1 / downsample=None requires inplanes == planes"
    HW = H * W
    # Cp: contraction / output-channel dim of every matmul -> multiple of 128.
    # NOTE: at tiny C (the C=4 test shape) most MXU work is on zero padding;
    # this kernel targets C >= 64 layers (see review item on small channels).
    Cp = _round_up(max(C, 128), 128)

    # NCHW is already channels-first: just flatten H*W onto the lane axis and
    # zero-pad channels.  Kept in f32 so the residual is exact; the kernel casts
    # to the MXU dtype once for the conv taps.
    x = jnp.asarray(x_nchw, jnp.float32).reshape(N, C, HW)
    x = jnp.pad(x, ((0, 0), (0, Cp - C), (0, 0)))

    s1, b1 = _fold_bn(bn1, eps)
    s2, b2 = _fold_bn(bn2, eps)

    def prep_w(w_oihw, scale):
        # OIHW -> fold BN scale per output channel -> zero-pad channels ->
        # (3, 3, Cp_out, Cp_in) -> (9*Cp, Cp): rows [t*Cp:(t+1)*Cp] = tap t.
        w = jnp.asarray(w_oihw, jnp.float32) * scale[:, None, None, None]
        w = jnp.pad(w, ((0, Cp - Cout), (0, Cp - C), (0, 0), (0, 0)))
        w = jnp.transpose(w, (2, 3, 0, 1))
        return w.reshape(9 * Cp, Cp).astype(compute_dtype)

    w1 = prep_w(w1_oihw, s1)
    w2 = prep_w(w2_oihw, s2)
    bias = jnp.stack([jnp.pad(b1, (0, Cp - C)), jnp.pad(b2, (0, Cp - C))], axis=0)
    bias = bias.reshape(2, Cp, 1)

    kernel = functools.partial(basic_block_kernel, width=W)

    out = pl.pallas_call(
        kernel,
        out_shape=jax.ShapeDtypeStruct((N, Cp, HW), jnp.float32),
        grid_spec=pltpu.PrefetchScalarGridSpec(
            num_scalar_prefetch=0,
            grid=(N,),                                        # one image per step
            in_specs=[
                pl.BlockSpec((1, Cp, HW), lambda n: (n, 0, 0)),
                pl.BlockSpec((9 * Cp, Cp), lambda n: (0, 0)),  # constant: no re-DMA
                pl.BlockSpec((9 * Cp, Cp), lambda n: (0, 0)),
                pl.BlockSpec((2, Cp, 1), lambda n: (0, 0, 0)),
            ],
            out_specs=pl.BlockSpec((1, Cp, HW), lambda n: (n, 0, 0)),
        ),
        compiler_params=pltpu.CompilerParams(
            dimension_semantics=("parallel",),
            vmem_limit_bytes=48 * 1024 * 1024,    # explicit, headroom under 64 MiB
        ),
    )(x, w1, w2, bias)

    return out[:, :C, :].reshape(N, C, H, W)      # back to NCHW, float32


def basic_block_ref(x_nchw, w1_oihw, bn1, w2_oihw, bn2, eps=1e-5):
    """Plain-JAX f32 reference (same eval-mode BN semantics as the module)."""
    x = jnp.transpose(x_nchw, (0, 2, 3, 1)).astype(jnp.float32)
    w1 = jnp.transpose(w1_oihw, (2, 3, 1, 0)).astype(jnp.float32)
    w2 = jnp.transpose(w2_oihw, (2, 3, 1, 0)).astype(jnp.float32)

    def conv(x, w):
        return jax.lax.conv_general_dilated(
            x, w, window_strides=(1, 1), padding=((1, 1), (1, 1)),
            dimension_numbers=('NHWC', 'HWIO', 'NHWC'))

    def bn(x, p):
        gamma, beta, mean, var = p
        return (x - mean) / jnp.sqrt(var + eps) * gamma + beta

    out = jax.nn.relu(bn(conv(x, w1), bn1))
    out = bn(conv(out, w2), bn2)
    out = jax.nn.relu(out + x)
    return jnp.transpose(out, (0, 3, 1, 2))


if __name__ == "__main__":
    # Shapes consistent with BasicBlock(inplanes=4, planes=4, stride=1)
    N, C, H, W = 2, 4, 16, 16

    key = jax.random.PRNGKey(0)
    kx, kw1, kw2 = jax.random.split(key, 3)

    x = jax.random.normal(kx, (N, C, H, W), dtype=jnp.float32)
    w1 = jax.random.normal(kw1, (C, C, 3, 3), dtype=jnp.float32) * 0.1  # OIHW, bias=False
    w2 = jax.random.normal(kw2, (C, C, 3, 3), dtype=jnp.float32) * 0.1

    # Deterministic, non-trivial BN params: gamma, beta, running_mean, running_var
    ch = jnp.arange(C, dtype=jnp.float32)
    bn1 = (1.0 + 0.1 * ch, 0.05 * ch, 0.02 * ch, 1.0 + 0.03 * ch)
    bn2 = (1.0 - 0.05 * ch, -0.03 * ch, 0.01 * ch, 1.0 + 0.02 * ch)

    ref = basic_block_ref(x, w1, bn1, w2, bn2)

    # Exact-math path (f32 MXU operands): strict check of conv/BN/residual math.
    out_f32 = jax.block_until_ready(
        basic_block_pallas(x, w1, bn1, w2, bn2, compute_dtype=jnp.float32))
    np.testing.assert_allclose(np.asarray(out_f32), np.asarray(ref),
                               rtol=1e-4, atol=1e-4)

    # Fast path (bf16 MXU operands/taps, f32 accumulation, exact f32 residual):
    # tolerance sized for bf16 quantization through two chained 3x3 convs.
    out_bf16 = jax.block_until_ready(
        basic_block_pallas(x, w1, bn1, w2, bn2, compute_dtype=jnp.bfloat16))
    np.testing.assert_allclose(np.asarray(out_bf16), np.asarray(ref),
                               rtol=5e-2, atol=5e-2)

    print("KERNEL_OK")
</pallas_src>

<mosaic_0001>
module attributes {stable_mosaic.version = 11 : i64} {
  func.func @basic_block_kernel(%arg0: i32, %arg1: memref<1x128x256xf32, #tpu.memory_space<vmem>>, %arg2: memref<1152x128xf32, #tpu.memory_space<vmem>>, %arg3: memref<1152x128xf32, #tpu.memory_space<vmem>>, %arg4: memref<2x128x1xf32, #tpu.memory_space<vmem>>, %arg5: memref<1x128x256xf32, #tpu.memory_space<vmem>>) attributes {dimension_semantics = [#tpu.dimension_semantics<parallel>], iteration_bounds = array<i64: 2>, scalar_prefetch = 0 : i64, scratch_operands = 0 : i64, tpu.core_type = #tpu.core_type<tc>, window_params = [{transform_indices = @transform_0, window_bounds = array<i64: 1, 128, 256>}, {pipeline_mode = #tpu.pipeline_mode<synchronous>, transform_indices = @transform_1, window_bounds = array<i64: 1152, 128>}, {pipeline_mode = #tpu.pipeline_mode<synchronous>, transform_indices = @transform_2, window_bounds = array<i64: 1152, 128>}, {pipeline_mode = #tpu.pipeline_mode<synchronous>, transform_indices = @transform_3, window_bounds = array<i64: 2, 128, 1>}, {transform_indices = @transform_4, window_bounds = array<i64: 1, 128, 256>}]} {
    %c0 = arith.constant 0 : index
    %c0_0 = arith.constant 0 : index
    %c0_1 = arith.constant 0 : index
    %0 = vector.load %arg1[%c0, %c0_0, %c0_1] : memref<1x128x256xf32, #tpu.memory_space<vmem>>, vector<1x128x256xf32>
    %1 = vector.shape_cast %0 : vector<1x128x256xf32> to vector<128x256xf32>
    %2 = tpu.iota {dimensions = array<i32: 1>} : vector<1x256xi32>
    %c16_i32 = arith.constant 16 : i32
    %c0_i32 = arith.constant 0 : i32
    %3 = arith.cmpi eq, %c16_i32, %c0_i32 : i32
    %c1_i32 = arith.constant 1 : i32
    %4 = arith.select %3, %c1_i32, %c16_i32 : i32
    %5 = vector.broadcast %4 : i32 to vector<1x256xi32>
    %6 = arith.remsi %2, %5 : vector<1x256xi32>
    %c0_i32_2 = arith.constant 0 : i32
    %7 = vector.broadcast %c0_i32_2 : i32 to vector<1x256xi32>
    %8 = arith.cmpi ne, %6, %7 : vector<1x256xi32>
    %c0_i32_3 = arith.constant 0 : i32
    %9 = vector.broadcast %c0_i32_3 : i32 to vector<1x256xi32>
    %10 = arith.cmpi slt, %6, %9 : vector<1x256xi32>
    %c0_i32_4 = arith.constant 0 : i32
    %11 = arith.cmpi slt, %4, %c0_i32_4 : i32
    %12 = vector.broadcast %11 : i1 to vector<1x256xi1>
    %13 = vector.broadcast %12 : vector<1x256xi1> to vector<1x256xi1>
    %14 = arith.xori %10, %13 : vector<1x256xi1>
    %15 = arith.andi %14, %8 : vector<1x256xi1>
    %16 = vector.broadcast %4 : i32 to vector<1x256xi32>
    %17 = arith.addi %6, %16 : vector<1x256xi32>
    %18 = arith.select %15, %17, %6 : vector<1x256xi1>, vector<1x256xi32>
    %c17_i32 = arith.constant 17 : i32
    %19 = vector.broadcast %c17_i32 : i32 to vector<1x256xi32>
    %20 = arith.cmpi sge, %2, %19 : vector<1x256xi32>
    %c1_i32_5 = arith.constant 1 : i32
    %21 = vector.broadcast %c1_i32_5 : i32 to vector<1x256xi32>
    %22 = arith.cmpi sge, %18, %21 : vector<1x256xi32>
    %23 = arith.andi %20, %22 : vector<1x256xi1>
    %24 = arith.extui %23 : vector<1x256xi1> to vector<1x256xi32>
    %25 = arith.sitofp %24 : vector<1x256xi32> to vector<1x256xf32>
    %c16_i32_6 = arith.constant 16 : i32
    %26 = vector.broadcast %c16_i32_6 : i32 to vector<1x256xi32>
    %27 = arith.cmpi sge, %2, %26 : vector<1x256xi32>
    %28 = arith.extui %27 : vector<1x256xi1> to vector<1x256xi32>
    %29 = arith.sitofp %28 : vector<1x256xi32> to vector<1x256xf32>
    %c15_i32 = arith.constant 15 : i32
    %30 = vector.broadcast %c15_i32 : i32 to vector<1x256xi32>
    %31 = arith.cmpi sge, %2, %30 : vector<1x256xi32>
    %c15_i32_7 = arith.constant 15 : i32
    %32 = vector.broadcast %c15_i32_7 : i32 to vector<1x256xi32>
    %33 = arith.cmpi slt, %18, %32 : vector<1x256xi32>
    %34 = arith.andi %31, %33 : vector<1x256xi1>
    %35 = arith.extui %34 : vector<1x256xi1> to vector<1x256xi32>
    %36 = arith.sitofp %35 : vector<1x256xi32> to vector<1x256xf32>
    %c1_i32_8 = arith.constant 1 : i32
    %37 = vector.broadcast %c1_i32_8 : i32 to vector<1x256xi32>
    %38 = arith.cmpi sge, %2, %37 : vector<1x256xi32>
    %c1_i32_9 = arith.constant 1 : i32
    %39 = vector.broadcast %c1_i32_9 : i32 to vector<1x256xi32>
    %40 = arith.cmpi sge, %18, %39 : vector<1x256xi32>
    %41 = arith.andi %38, %40 : vector<1x256xi1>
    %42 = arith.extui %41 : vector<1x256xi1> to vector<1x256xi32>
    %43 = arith.sitofp %42 : vector<1x256xi32> to vector<1x256xf32>
    %c255_i32 = arith.constant 255 : i32
    %44 = vector.broadcast %c255_i32 : i32 to vector<1x256xi32>
    %45 = arith.cmpi slt, %2, %44 : vector<1x256xi32>
    %c15_i32_10 = arith.constant 15 : i32
    %46 = vector.broadcast %c15_i32_10 : i32 to vector<1x256xi32>
    %47 = arith.cmpi slt, %18, %46 : vector<1x256xi32>
    %48 = arith.andi %45, %47 : vector<1x256xi1>
    %49 = arith.extui %48 : vector<1x256xi1> to vector<1x256xi32>
    %50 = arith.sitofp %49 : vector<1x256xi32> to vector<1x256xf32>
    %c241_i32 = arith.constant 241 : i32
    %51 = vector.broadcast %c241_i32 : i32 to vector<1x256xi32>
    %52 = arith.cmpi slt, %2, %51 : vector<1x256xi32>
    %c1_i32_11 = arith.constant 1 : i32
    %53 = vector.broadcast %c1_i32_11 : i32 to vector<1x256xi32>
    %54 = arith.cmpi sge, %18, %53 : vector<1x256xi32>
    %55 = arith.andi %52, %54 : vector<1x256xi1>
    %56 = arith.extui %55 : vector<1x256xi1> to vector<1x256xi32>
    %57 = arith.sitofp %56 : vector<1x256xi32> to vector<1x256xf32>
    %c240_i32 = arith.constant 240 : i32
    %58 = vector.broadcast %c240_i32 : i32 to vector<1x256xi32>
    %59 = arith.cmpi slt, %2, %58 : vector<1x256xi32>
    %60 = arith.extui %59 : vector<1x256xi1> to vector<1x256xi32>
    %61 = arith.sitofp %60 : vector<1x256xi32> to vector<1x256xf32>
    %c239_i32 = arith.constant 239 : i32
    %62 = vector.broadcast %c239_i32 : i32 to vector<1x256xi32>
    %63 = arith.cmpi slt, %2, %62 : vector<1x256xi32>
    %c15_i32_12 = arith.constant 15 : i32
    %64 = vector.broadcast %c15_i32_12 : i32 to vector<1x256xi32>
    %65 = arith.cmpi slt, %18, %64 : vector<1x256xi32>
    %66 = arith.andi %63, %65 : vector<1x256xi1>
    %67 = arith.extui %66 : vector<1x256xi1> to vector<1x256xi32>
    %68 = arith.sitofp %67 : vector<1x256xi32> to vector<1x256xf32>
    %c17_i32_13 = arith.constant 17 : i32
    %69 = tpu.dynamic_rotate %1 by %c17_i32_13 dim 1 : vector<128x256xf32>, i32 -> vector<128x256xf32>
    %70 = vector.broadcast %25 : vector<1x256xf32> to vector<128x256xf32>
    %71 = arith.mulf %69, %70 : vector<128x256xf32>
    %c0_14 = arith.constant 0 : index
    %c0_15 = arith.constant 0 : index
    %72 = vector.load %arg2[%c0_14, %c0_15] : memref<1152x128xf32, #tpu.memory_space<vmem>>, vector<128x128xf32>
    %cst = arith.constant dense<0.000000e+00> : vector<128x256xf32>
    %73 = tpu.matmul %72, %71, %cst {dimension_numbers = #tpu.dot_dimension_numbers<[1], [0], [0], [1], [0, 0, 1, 1], [], []>} : vector<128x128xf32>, vector<128x256xf32>, vector<128x256xf32> -> vector<128x256xf32>
    %c16_i32_16 = arith.constant 16 : i32
    %74 = tpu.dynamic_rotate %1 by %c16_i32_16 dim 1 : vector<128x256xf32>, i32 -> vector<128x256xf32>
    %75 = vector.broadcast %29 : vector<1x256xf32> to vector<128x256xf32>
    %76 = arith.mulf %74, %75 : vector<128x256xf32>
    %c128 = arith.constant 128 : index
    %c0_17 = arith.constant 0 : index
    %77 = vector.load %arg2[%c128, %c0_17] : memref<1152x128xf32, #tpu.memory_space<vmem>>, vector<128x128xf32>
    %cst_18 = arith.constant dense<0.000000e+00> : vector<128x256xf32>
    %78 = tpu.matmul %77, %76, %cst_18 {dimension_numbers = #tpu.dot_dimension_numbers<[1], [0], [0], [1], [0, 0, 1, 1], [], []>} : vector<128x128xf32>, vector<128x256xf32>, vector<128x256xf32> -> vector<128x256xf32>
    %79 = arith.addf %73, %78 : vector<128x256xf32>
    %c15_i32_19 = arith.constant 15 : i32
    %80 = tpu.dynamic_rotate %1 by %c15_i32_19 dim 1 : vector<128x256xf32>, i32 -> vector<128x256xf32>
    %81 = vector.broadcast %36 : vector<1x256xf32> to vector<128x256xf32>
    %82 = arith.mulf %80, %81 : vector<128x256xf32>
    %c256 = arith.constant 256 : index
    %c0_20 = arith.constant 0 : index
    %83 = vector.load %arg2[%c256, %c0_20] : memref<1152x128xf32, #tpu.memory_space<vmem>>, vector<128x128xf32>
    %cst_21 = arith.constant dense<0.000000e+00> : vector<128x256xf32>
    %84 = tpu.matmul %83, %82, %cst_21 {dimension_numbers = #tpu.dot_dimension_numbers<[1], [0], [0], [1], [0, 0, 1, 1], [], []>} : vector<128x128xf32>, vector<128x256xf32>, vector<128x256xf32> -> vector<128x256xf32>
    %85 = arith.addf %79, %84 : vector<128x256xf32>
    %c1_i32_22 = arith.constant 1 : i32
    %86 = tpu.dynamic_rotate %1 by %c1_i32_22 dim 1 : vector<128x256xf32>, i32 -> vector<128x256xf32>
    %87 = vector.broadcast %43 : vector<1x256xf32> to vector<128x256xf32>
    %88 = arith.mulf %86, %87 : vector<128x256xf32>
    %c384 = arith.constant 384 : index
    %c0_23 = arith.constant 0 : index
    %89 = vector.load %arg2[%c384, %c0_23] : memref<1152x128xf32, #tpu.memory_space<vmem>>, vector<128x128xf32>
    %cst_24 = arith.constant dense<0.000000e+00> : vector<128x256xf32>
    %90 = tpu.matmul %89, %88, %cst_24 {dimension_numbers = #tpu.dot_dimension_numbers<[1], [0], [0], [1], [0, 0, 1, 1], [], []>} : vector<128x128xf32>, vector<128x256xf32>, vector<128x256xf32> -> vector<128x256xf32>
    %91 = arith.addf %85, %90 : vector<128x256xf32>
    %c512 = arith.constant 512 : index
    %c0_25 = arith.constant 0 : index
    %92 = vector.load %arg2[%c512, %c0_25] : memref<1152x128xf32, #tpu.memory_space<vmem>>, vector<128x128xf32>
    %cst_26 = arith.constant dense<0.000000e+00> : vector<128x256xf32>
    %93 = tpu.matmul %92, %1, %cst_26 {dimension_numbers = #tpu.dot_dimension_numbers<[1], [0], [0], [1], [0, 0, 1, 1], [], []>} : vector<128x128xf32>, vector<128x256xf32>, vector<128x256xf32> -> vector<128x256xf32>
    %94 = arith.addf %91, %93 : vector<128x256xf32>
    %c255_i32_27 = arith.constant 255 : i32
    %95 = tpu.dynamic_rotate %1 by %c255_i32_27 dim 1 : vector<128x256xf32>, i32 -> vector<128x256xf32>
    %96 = vector.broadcast %50 : vector<1x256xf32> to vector<128x256xf32>
    %97 = arith.mulf %95, %96 : vector<128x256xf32>
    %c640 = arith.constant 640 : index
    %c0_28 = arith.constant 0 : index
    %98 = vector.load %arg2[%c640, %c0_28] : memref<1152x128xf32, #tpu.memory_space<vmem>>, vector<128x128xf32>
    %cst_29 = arith.constant dense<0.000000e+00> : vector<128x256xf32>
    %99 = tpu.matmul %98, %97, %cst_29 {dimension_numbers = #tpu.dot_dimension_numbers<[1], [0], [0], [1], [0, 0, 1, 1], [], []>} : vector<128x128xf32>, vector<128x256xf32>, vector<128x256xf32> -> vector<128x256xf32>
    %100 = arith.addf %94, %99 : vector<128x256xf32>
    %c241_i32_30 = arith.constant 241 : i32
    %101 = tpu.dynamic_rotate %1 by %c241_i32_30 dim 1 : vector<128x256xf32>, i32 -> vector<128x256xf32>
    %102 = vector.broadcast %57 : vector<1x256xf32> to vector<128x256xf32>
    %103 = arith.mulf %101, %102 : vector<128x256xf32>
    %c768 = arith.constant 768 : index
    %c0_31 = arith.constant 0 : index
    %104 = vector.load %arg2[%c768, %c0_31] : memref<1152x128xf32, #tpu.memory_space<vmem>>, vector<128x128xf32>
    %cst_32 = arith.constant dense<0.000000e+00> : vector<128x256xf32>
    %105 = tpu.matmul %104, %103, %cst_32 {dimension_numbers = #tpu.dot_dimension_numbers<[1], [0], [0], [1], [0, 0, 1, 1], [], []>} : vector<128x128xf32>, vector<128x256xf32>, vector<128x256xf32> -> vector<128x256xf32>
    %106 = arith.addf %100, %105 : vector<128x256xf32>
    %c240_i32_33 = arith.constant 240 : i32
    %107 = tpu.dynamic_rotate %1 by %c240_i32_33 dim 1 : vector<128x256xf32>, i32 -> vector<128x256xf32>
    %108 = vector.broadcast %61 : vector<1x256xf32> to vector<128x256xf32>
    %109 = arith.mulf %107, %108 : vector<128x256xf32>
    %c896 = arith.constant 896 : index
    %c0_34 = arith.constant 0 : index
    %110 = vector.load %arg2[%c896, %c0_34] : memref<1152x128xf32, #tpu.memory_space<vmem>>, vector<128x128xf32>
    %cst_35 = arith.constant dense<0.000000e+00> : vector<128x256xf32>
    %111 = tpu.matmul %110, %109, %cst_35 {dimension_numbers = #tpu.dot_dimension_numbers<[1], [0], [0], [1], [0, 0, 1, 1], [], []>} : vector<128x128xf32>, vector<128x256xf32>, vector<128x256xf32> -> vector<128x256xf32>
    %112 = arith.addf %106, %111 : vector<128x256xf32>
    %c239_i32_36 = arith.constant 239 : i32
    %113 = tpu.dynamic_rotate %1 by %c239_i32_36 dim 1 : vector<128x256xf32>, i32 -> vector<128x256xf32>
    %114 = vector.broadcast %68 : vector<1x256xf32> to vector<128x256xf32>
    %115 = arith.mulf %113, %114 : vector<128x256xf32>
    %c1024 = arith.constant 1024 : index
    %c0_37 = arith.constant 0 : index
    %116 = vector.load %arg2[%c1024, %c0_37] : memref<1152x128xf32, #tpu.memory_space<vmem>>, vector<128x128xf32>
    %cst_38 = arith.constant dense<0.000000e+00> : vector<128x256xf32>
    %117 = tpu.matmul %116, %115, %cst_38 {dimension_numbers = #tpu.dot_dimension_numbers<[1], [0], [0], [1], [0, 0, 1, 1], [], []>} : vector<128x128xf32>, vector<128x256xf32>, vector<128x256xf32> -> vector<128x256xf32>
    %118 = arith.addf %112, %117 : vector<128x256xf32>
    %c0_39 = arith.constant 0 : index
    %c0_40 = arith.constant 0 : index
    %c0_41 = arith.constant 0 : index
    %119 = vector.load %arg4[%c0_39, %c0_40, %c0_41] : memref<2x128x1xf32, #tpu.memory_space<vmem>>, vector<1x128x1xf32>
    %120 = vector.shape_cast %119 : vector<1x128x1xf32> to vector<128x1xf32>
    %121 = vector.broadcast %120 : vector<128x1xf32> to vector<128x256xf32>
    %122 = arith.addf %118, %121 : vector<128x256xf32>
    %cst_42 = arith.constant 0.000000e+00 : f32
    %123 = vector.broadcast %cst_42 : f32 to vector<128x256xf32>
    %124 = arith.maximumf %122, %123 : vector<128x256xf32>
    %c17_i32_43 = arith.constant 17 : i32
    %125 = tpu.dynamic_rotate %124 by %c17_i32_43 dim 1 : vector<128x256xf32>, i32 -> vector<128x256xf32>
    %126 = vector.broadcast %25 : vector<1x256xf32> to vector<128x256xf32>
    %127 = arith.mulf %125, %126 : vector<128x256xf32>
    %c0_44 = arith.constant 0 : index
    %c0_45 = arith.constant 0 : index
    %128 = vector.load %arg3[%c0_44, %c0_45] : memref<1152x128xf32, #tpu.memory_space<vmem>>, vector<128x128xf32>
    %cst_46 = arith.constant dense<0.000000e+00> : vector<128x256xf32>
    %129 = tpu.matmul %128, %127, %cst_46 {dimension_numbers = #tpu.dot_dimension_numbers<[1], [0], [0], [1], [0, 0, 1, 1], [], []>} : vector<128x128xf32>, vector<128x256xf32>, vector<128x256xf32> -> vector<128x256xf32>
    %c16_i32_47 = arith.constant 16 : i32
    %130 = tpu.dynamic_rotate %124 by %c16_i32_47 dim 1 : vector<128x256xf32>, i32 -> vector<128x256xf32>
    %131 = vector.broadcast %29 : vector<1x256xf32> to vector<128x256xf32>
    %132 = arith.mulf %130, %131 : vector<128x256xf32>
    %c128_48 = arith.constant 128 : index
    %c0_49 = arith.constant 0 : index
    %133 = vector.load %arg3[%c128_48, %c0_49] : memref<1152x128xf32, #tpu.memory_space<vmem>>, vector<128x128xf32>
    %cst_50 = arith.constant dense<0.000000e+00> : vector<128x256xf32>
    %134 = tpu.matmul %133, %132, %cst_50 {dimension_numbers = #tpu.dot_dimension_numbers<[1], [0], [0], [1], [0, 0, 1, 1], [], []>} : vector<128x128xf32>, vector<128x256xf32>, vector<128x256xf32> -> vector<128x256xf32>
    %135 = arith.addf %129, %134 : vector<128x256xf32>
    %c15_i32_51 = arith.constant 15 : i32
    %136 = tpu.dynamic_rotate %124 by %c15_i32_51 dim 1 : vector<128x256xf32>, i32 -> vector<128x256xf32>
    %137 = vector.broadcast %36 : vector<1x256xf32> to vector<128x256xf32>
    %138 = arith.mulf %136, %137 : vector<128x256xf32>
    %c256_52 = arith.constant 256 : index
    %c0_53 = arith.constant 0 : index
    %139 = vector.load %arg3[%c256_52, %c0_53] : memref<1152x128xf32, #tpu.memory_space<vmem>>, vector<128x128xf32>
    %cst_54 = arith.constant dense<0.000000e+00> : vector<128x256xf32>
    %140 = tpu.matmul %139, %138, %cst_54 {dimension_numbers = #tpu.dot_dimension_numbers<[1], [0], [0], [1], [0, 0, 1, 1], [], []>} : vector<128x128xf32>, vector<128x256xf32>, vector<128x256xf32> -> vector<128x256xf32>
    %141 = arith.addf %135, %140 : vector<128x256xf32>
    %c1_i32_55 = arith.constant 1 : i32
    %142 = tpu.dynamic_rotate %124 by %c1_i32_55 dim 1 : vector<128x256xf32>, i32 -> vector<128x256xf32>
    %143 = vector.broadcast %43 : vector<1x256xf32> to vector<128x256xf32>
    %144 = arith.mulf %142, %143 : vector<128x256xf32>
    %c384_56 = arith.constant 384 : index
    %c0_57 = arith.constant 0 : index
    %145 = vector.load %arg3[%c384_56, %c0_57] : memref<1152x128xf32, #tpu.memory_space<vmem>>, vector<128x128xf32>
    %cst_58 = arith.constant dense<0.000000e+00> : vector<128x256xf32>
    %146 = tpu.matmul %145, %144, %cst_58 {dimension_numbers = #tpu.dot_dimension_numbers<[1], [0], [0], [1], [0, 0, 1, 1], [], []>} : vector<128x128xf32>, vector<128x256xf32>, vector<128x256xf32> -> vector<128x256xf32>
    %147 = arith.addf %141, %146 : vector<128x256xf32>
    %c512_59 = arith.constant 512 : index
    %c0_60 = arith.constant 0 : index
    %148 = vector.load %arg3[%c512_59, %c0_60] : memref<1152x128xf32, #tpu.memory_space<vmem>>, vector<128x128xf32>
    %cst_61 = arith.constant dense<0.000000e+00> : vector<128x256xf32>
    %149 = tpu.matmul %148, %124, %cst_61 {dimension_numbers = #tpu.dot_dimension_numbers<[1], [0], [0], [1], [0, 0, 1, 1], [], []>} : vector<128x128xf32>, vector<128x256xf32>, vector<128x256xf32> -> vector<128x256xf32>
    %150 = arith.addf %147, %149 : vector<128x256xf32>
    %c255_i32_62 = arith.constant 255 : i32
    %151 = tpu.dynamic_rotate %124 by %c255_i32_62 dim 1 : vector<128x256xf32>, i32 -> vector<128x256xf32>
    %152 = vector.broadcast %50 : vector<1x256xf32> to vector<128x256xf32>
    %153 = arith.mulf %151, %152 : vector<128x256xf32>
    %c640_63 = arith.constant 640 : index
    %c0_64 = arith.constant 0 : index
    %154 = vector.load %arg3[%c640_63, %c0_64] : memref<1152x128xf32, #tpu.memory_space<vmem>>, vector<128x128xf32>
    %cst_65 = arith.constant dense<0.000000e+00> : vector<128x256xf32>
    %155 = tpu.matmul %154, %153, %cst_65 {dimension_numbers = #tpu.dot_dimension_numbers<[1], [0], [0], [1], [0, 0, 1, 1], [], []>} : vector<128x128xf32>, vector<128x256xf32>, vector<128x256xf32> -> vector<128x256xf32>
    %156 = arith.addf %150, %155 : vector<128x256xf32>
    %c241_i32_66 = arith.constant 241 : i32
    %157 = tpu.dynamic_rotate %124 by %c241_i32_66 dim 1 : vector<128x256xf32>, i32 -> vector<128x256xf32>
    %158 = vector.broadcast %57 : vector<1x256xf32> to vector<128x256xf32>
    %159 = arith.mulf %157, %158 : vector<128x256xf32>
    %c768_67 = arith.constant 768 : index
    %c0_68 = arith.constant 0 : index
    %160 = vector.load %arg3[%c768_67, %c0_68] : memref<1152x128xf32, #tpu.memory_space<vmem>>, vector<128x128xf32>
    %cst_69 = arith.constant dense<0.000000e+00> : vector<128x256xf32>
    %161 = tpu.matmul %160, %159, %cst_69 {dimension_numbers = #tpu.dot_dimension_numbers<[1], [0], [0], [1], [0, 0, 1, 1], [], []>} : vector<128x128xf32>, vector<128x256xf32>, vector<128x256xf32> -> vector<128x256xf32>
    %162 = arith.addf %156, %161 : vector<128x256xf32>
    %c240_i32_70 = arith.constant 240 : i32
    %163 = tpu.dynamic_rotate %124 by %c240_i32_70 dim 1 : vector<128x256xf32>, i32 -> vector<128x256xf32>
    %164 = vector.broadcast %61 : vector<1x256xf32> to vector<128x256xf32>
    %165 = arith.mulf %163, %164 : vector<128x256xf32>
    %c896_71 = arith.constant 896 : index
    %c0_72 = arith.constant 0 : index
    %166 = vector.load %arg3[%c896_71, %c0_72] : memref<1152x128xf32, #tpu.memory_space<vmem>>, vector<128x128xf32>
    %cst_73 = arith.constant dense<0.000000e+00> : vector<128x256xf32>
    %167 = tpu.matmul %166, %165, %cst_73 {dimension_numbers = #tpu.dot_dimension_numbers<[1], [0], [0], [1], [0, 0, 1, 1], [], []>} : vector<128x128xf32>, vector<128x256xf32>, vector<128x256xf32> -> vector<128x256xf32>
    %168 = arith.addf %162, %167 : vector<128x256xf32>
    %c239_i32_74 = arith.constant 239 : i32
    %169 = tpu.dynamic_rotate %124 by %c239_i32_74 dim 1 : vector<128x256xf32>, i32 -> vector<128x256xf32>
    %170 = vector.broadcast %68 : vector<1x256xf32> to vector<128x256xf32>
    %171 = arith.mulf %169, %170 : vector<128x256xf32>
    %c1024_75 = arith.constant 1024 : index
    %c0_76 = arith.constant 0 : index
    %172 = vector.load %arg3[%c1024_75, %c0_76] : memref<1152x128xf32, #tpu.memory_space<vmem>>, vector<128x128xf32>
    %cst_77 = arith.constant dense<0.000000e+00> : vector<128x256xf32>
    %173 = tpu.matmul %172, %171, %cst_77 {dimension_numbers = #tpu.dot_dimension_numbers<[1], [0], [0], [1], [0, 0, 1, 1], [], []>} : vector<128x128xf32>, vector<128x256xf32>, vector<128x256xf32> -> vector<128x256xf32>
    %174 = arith.addf %168, %173 : vector<128x256xf32>
    %c1 = arith.constant 1 : index
    %c0_78 = arith.constant 0 : index
    %c0_79 = arith.constant 0 : index
    %175 = vector.load %arg4[%c1, %c0_78, %c0_79] : memref<2x128x1xf32, #tpu.memory_space<vmem>>, vector<1x128x1xf32>
    %176 = vector.shape_cast %175 : vector<1x128x1xf32> to vector<128x1xf32>
    %177 = vector.broadcast %176 : vector<128x1xf32> to vector<128x256xf32>
    %178 = arith.addf %174, %177 : vector<128x256xf32>
    %179 = arith.addf %178, %1 : vector<128x256xf32>
    %cst_80 = arith.constant 0.000000e+00 : f32
    %180 = vector.broadcast %cst_80 : f32 to vector<128x256xf32>
    %181 = arith.maximumf %179, %180 : vector<128x256xf32>
    %c0_81 = arith.constant 0 : index
    %c0_82 = arith.constant 0 : index
    %c0_83 = arith.constant 0 : index
    %182 = vector.load %arg5[%c0_81, %c0_82, %c0_83] : memref<1x128x256xf32, #tpu.memory_space<vmem>>, vector<1x128x256xf32>
    %183 = vector.shape_cast %182 : vector<1x128x256xf32> to vector<128x256xf32>
    %184 = vector.shape_cast %181 : vector<128x256xf32> to vector<1x128x256xf32>
    tpu.vector_store %arg5[%c0_81, %c0_82, %c0_83], %184 {strides = array<i32>} : memref<1x128x256xf32, #tpu.memory_space<vmem>>, vector<1x128x256xf32>,
    return
  }
  func.func @transform_0(%arg0: i32) -> (i32, i32, i32) {
    %c0_i32 = arith.constant 0 : i32
    %c0_i32_0 = arith.constant 0 : i32
    %c0_i32_1 = arith.constant 0 : i32
    return %arg0, %c0_i32, %c0_i32_0 : i32, i32, i32
  }
  func.func @transform_1(%arg0: i32) -> (i32, i32) {
    %c0_i32 = arith.constant 0 : i32
    %c0_i32_0 = arith.constant 0 : i32
    %c0_i32_1 = arith.constant 0 : i32
    return %c0_i32, %c0_i32_0 : i32, i32
  }
  func.func @transform_2(%arg0: i32) -> (i32, i32) {
    %c0_i32 = arith.constant 0 : i32
    %c0_i32_0 = arith.constant 0 : i32
    %c0_i32_1 = arith.constant 0 : i32
    return %c0_i32, %c0_i32_0 : i32, i32
  }
  func.func @transform_3(%arg0: i32) -> (i32, i32, i32) {
    %c0_i32 = arith.constant 0 : i32
    %c0_i32_0 = arith.constant 0 : i32
    %c0_i32_1 = arith.constant 0 : i32
    %c0_i32_2 = arith.constant 0 : i32
    return %c0_i32, %c0_i32_0, %c0_i32_1 : i32, i32, i32
  }
  func.func @transform_4(%arg0: i32) -> (i32, i32, i32) {
    %c0_i32 = arith.constant 0 : i32
    %c0_i32_0 = arith.constant 0 : i32
    %c0_i32_1 = arith.constant 0 : i32
    return %arg0, %c0_i32, %c0_i32_0 : i32, i32, i32
  }
}

</mosaic_0001>

<llo_original>
// kernel: tpu_custom_call.1
$region0: #{tpu_custom_call.1}
  #allocation0 [shape = 'u32[]', space=smem, size = 0x4, offset = 0x4, fixed_abs, tag = 'smem constant byte address 0x4 - core index']
  #allocation1 [shape = 'u32[72,128]{1,0:T(1,128)}', space=vmem, size = 0x9000, scoped, tag = 'internal scratch']
  %s0 = inlined_call_operand.hbm [shape: f32[2,128,256], index: 0, kind: input, shape index: {}]
  %s1 = inlined_call_operand.hbm [shape: f32[1152,128], index: 1, kind: input, shape index: {}]
  %s2 = inlined_call_operand.hbm [shape: f32[1152,128], index: 2, kind: input, shape index: {}]
  %s3 = inlined_call_operand.vmem [shape: f32[2,128,1], index: 3, kind: input, shape index: {}]
  %s4 = inlined_call_operand.hbm [shape: f32[2,128,256], index: 4, kind: output, shape index: {}]
  %s5 = sld [smem:[#allocation0]]
  $region61: #{tpu_custom_call.1} parent=0
    _
  %s7 = ssub.s32 1, %s5
  %s8 = scalar_select 0, %s7, %s5
  $region1: #{tpu_custom_call.1} parent=0
    #allocation2 [shape = 'u8[262144]{0}', space=vmem, size = 0x40000, scoped, tag = 'input window, operand 0']
    #allocation3 [shape = 's32[2]{0}', space=sflag, size = 0x8, scoped, tag = 'scoped memory for tpu_custom_call.1']
    #allocation4 [shape = 's32[2]{0}', space=sflag, size = 0x8, scoped, tag = 'scoped memory for tpu_custom_call.1']
    #allocation5 [shape = 'u8[589824]{0}', space=vmem, size = 0x90000, scoped, tag = 'input window, operand 1, single buffered']
    #allocation6 [shape = 's32[1]{0}', space=sflag, size = 0x4, scoped, tag = 'scoped memory for tpu_custom_call.1']
    #allocation7 [shape = 'u8[589824]{0}', space=vmem, size = 0x90000, scoped, tag = 'input window, operand 2, single buffered']
    #allocation8 [shape = 'u8[262144]{0}', space=vmem, size = 0x40000, scoped, tag = 'output window, operand 0']
    %9 = vsyncpa [#allocation3], 0
    %s10 = scalar_lea.sflag [#allocation3], 1
    %11 = vsyncpa %s10, 0
    %12 = vsyncpa [#allocation6], 0
    %13 = vsyncpa [#allocation4], 0
    %s14 = scalar_lea.sflag [#allocation4], 1
    %15 = vsyncpa %s14, 0
    loop: start=0, step=1, limit=4
    $region2: #{tpu_custom_call.1} parent=1 // loop_pre_header
      _
    $region3: #{tpu_custom_call.1} parent=1 // loop_header
      %s17 = sphi 0, %s21
      %p18 = scmp.ge.s32.totalorder %s17, 4
      %s27 = sphi 0, %s29
      %s30 = sphi 0, %s27
      %s31 = sphi 0, %s30
      %s47 = sphi 0, %s31
      %s51 = sphi 0, %s51
      %s53 = sphi 0, %s51
      %s54 = sphi 0, %s53
      %s68 = sphi 0, %s54
      %s72 = sphi 0, %s72
      %s74 = sphi 0, %s72
      %s75 = sphi 0, %s74
      %s89 = sphi 0, %s75
      %s93 = sphi 0, %s93
      %s95 = sphi 0, %s93
      %s96 = sphi 0, %s95
      %s110 = sphi 0, %s96
      %s116 = sphi 0, %s118
      %s119 = sphi 0, %s116
      %s120 = sphi 0, %s119
      %s136 = sphi 0, %s120
    $region4: #{tpu_custom_call.1} parent=1 // loop_header_branch
      %20 = sbr.rel (%p18) target = $region8
    $region5: #{tpu_custom_call.1} parent=1 // loop_body
      %s22 = ssub.s32 %s17, 1
      %s23 = ssub.s32 %s17, 2
      %s24 = sadd.s32 %s17, 1
      %s25 = ssub.s32 %s17, %s24
      %p26 = scmp.eq.s32.totalorder %s25, 0
      %s28 = sadd.s32 %s27, 1
      %s29 = scalar_select %p26, %s27, %s28
      %p32 = pneg %p26
      %p33 = scmp.eq.s32.totalorder %s17, 1
      %p34 = por %p32, %p33
      %p35 = scmp.ne.s32.totalorder %s27, %s30
      %p36 = scmp.eq.s32.totalorder %s17, 0
      %p37 = por %p35, %p36
      %p38 = scmp.ne.s32.totalorder %s27, %s30
      %p39 = scmp.eq.s32.totalorder %s22, 1
      %p40 = por %p38, %p39
      %p41 = scmp.ne.s32.totalorder %s30, %s31
      %p42 = scmp.eq.s32.totalorder %s22, 0
      %p43 = por %p41, %p42
      %p44 = scmp.ne.s32.totalorder %s30, %s31
      %p45 = scmp.eq.s32.totalorder %s23, 1
      %p46 = por %p44, %p45
      %p48 = scmp.ne.s32.totalorder %s31, %s47
      %p49 = scmp.eq.s32.totalorder %s23, 0
      %p50 = por %p48, %p49
      %s52 = sadd.s32 %s51, 1
      %p55 = scmp.eq.s32.totalorder %s17, 1
      %p56 = scmp.ne.s32.totalorder %s51, %s53
      %p57 = scmp.eq.s32.totalorder %s17, 0
      %p58 = por %p56, %p57
      %p59 = scmp.ne.s32.totalorder %s51, %s53
      %p60 = scmp.eq.s32.totalorder %s22, 1
      %p61 = por %p59, %p60
      %p62 = scmp.ne.s32.totalorder %s53, %s54
      %p63 = scmp.eq.s32.totalorder %s22, 0
      %p64 = por %p62, %p63
      %p65 = scmp.ne.s32.totalorder %s53, %s54
      %p66 = scmp.eq.s32.totalorder %s23, 1
      %p67 = por %p65, %p66
      %p69 = scmp.ne.s32.totalorder %s54, %s68
      %p70 = scmp.eq.s32.totalorder %s23, 0
      %p71 = por %p69, %p70
      %s73 = sadd.s32 %s72, 1
      %p76 = scmp.eq.s32.totalorder %s17, 1
      %p77 = scmp.ne.s32.totalorder %s72, %s74
      %p78 = scmp.eq.s32.totalorder %s17, 0
      %p79 = por %p77, %p78
      %p80 = scmp.ne.s32.totalorder %s72, %s74
      %p81 = scmp.eq.s32.totalorder %s22, 1
      %p82 = por %p80, %p81
      %p83 = scmp.ne.s32.totalorder %s74, %s75
      %p84 = scmp.eq.s32.totalorder %s22, 0
      %p85 = por %p83, %p84
      %p86 = scmp.ne.s32.totalorder %s74, %s75
      %p87 = scmp.eq.s32.totalorder %s23, 1
      %p88 = por %p86, %p87
      %p90 = scmp.ne.s32.totalorder %s75, %s89
      %p91 = scmp.eq.s32.totalorder %s23, 0
      %p92 = por %p90, %p91
      %s94 = sadd.s32 %s93, 1
      %p97 = scmp.eq.s32.totalorder %s17, 1
      %p98 = scmp.ne.s32.totalorder %s93, %s95
      %p99 = scmp.eq.s32.totalorder %s17, 0
      %p100 = por %p98, %p99
      %p101 = scmp.ne.s32.totalorder %s93, %s95
      %p102 = scmp.eq.s32.totalorder %s22, 1
      %p103 = por %p101, %p102
      %p104 = scmp.ne.s32.totalorder %s95, %s96
      %p105 = scmp.eq.s32.totalorder %s22, 0
      %p106 = por %p104, %p105
      %p107 = scmp.ne.s32.totalorder %s95, %s96
      %p108 = scmp.eq.s32.totalorder %s23, 1
      %p109 = por %p107, %p108
      %p111 = scmp.ne.s32.totalorder %s96, %s110
      %p112 = scmp.eq.s32.totalorder %s23, 0
      %p113 = por %p111, %p112
      %s114 = ssub.s32 %s17, %s24
      %p115 = scmp.eq.s32.totalorder %s114, 0
      %s117 = sadd.s32 %s116, 1
      %s118 = scalar_select %p115, %s116, %s117
      %p121 = pneg %p115
      %p122 = scmp.eq.s32.totalorder %s17, 1
      %p123 = por %p121, %p122
      %p124 = scmp.ne.s32.totalorder %s116, %s119
      %p125 = scmp.eq.s32.totalorder %s17, 0
      %p126 = por %p124, %p125
      %p127 = scmp.ne.s32.totalorder %s116, %s119
      %p128 = scmp.eq.s32.totalorder %s22, 1
      %p129 = por %p127, %p128
      %p130 = scmp.ne.s32.totalorder %s119, %s120
      %p131 = scmp.eq.s32.totalorder %s22, 0
      %p132 = por %p130, %p131
      %p133 = scmp.ne.s32.totalorder %s119, %s120
      %p134 = scmp.eq.s32.totalorder %s23, 1
      %p135 = por %p133, %p134
      %p137 = scmp.ne.s32.totalorder %s120, %s136
      %p138 = scmp.eq.s32.totalorder %s23, 0
      %p139 = por %p137, %p138
      %p140 = scmp.le.s32.totalorder 1, %s17
      %p141 = scmp.lt.s32.totalorder %s17, 3
      %p142 = pnand %p140, %p141
      %p143 = pneg %p142
      // Predicated region
      $region9: #{tpu_custom_call.1} parent=5 // pred_check
        _
      $region10: #{tpu_custom_call.1} parent=5 // pred_check_branch
        %145 = sbr.rel (%p142) target = $region12
      $region11: #{tpu_custom_call.1} parent=5 // pred_region
        %s146 = ssub.s32 %s17, 1
        // Predicated region
        $region13: #{tpu_custom_call.1} parent=11 // pred_check
          %p147 = pneg %p64
        $region14: #{tpu_custom_call.1} parent=11 // pred_check_branch
          %149 = sbr.rel (%p147) target = $region16
        $region15: #{tpu_custom_call.1} parent=11 // pred_region
          %151 = vsyncadd [#allocation6], 0
          %s152 = sshll.u32 %s1, 4
          %s153 = int_to_ptr.hbm [resolvable:$true] %s152
          %s154 = sshll.u32 [#allocation5], 4
          %s155 = int_to_ptr.vmem [resolvable:$true] %s154
          %160 = dma.hbm_to_vmem [thread:$0]  %s153, 18432, %s155, [#allocation6], 128, 128, 8
        $region16: #{tpu_custom_call.1} parent=11 // pred_fallthru
          _
        // Predicated region
        $region17: #{tpu_custom_call.1} parent=11 // pred_check
          %p161 = pneg %p85
        $region18: #{tpu_custom_call.1} parent=11 // pred_check_branch
          %163 = sbr.rel (%p161) target = $region20
        $region19: #{tpu_custom_call.1} parent=11 // pred_region
          %165 = vsyncadd [#allocation6], 0
          %s166 = sshll.u32 %s2, 4
          %s167 = int_to_ptr.hbm [resolvable:$true] %s166
          %s168 = sshll.u32 [#allocation7], 4
          %s169 = int_to_ptr.vmem [resolvable:$true] %s168
          %174 = dma.hbm_to_vmem [thread:$0]  %s167, 18432, %s169, [#allocation6], 128, 128, 8
        $region20: #{tpu_custom_call.1} parent=11 // pred_fallthru
          _
        // Predicated region
        $region21: #{tpu_custom_call.1} parent=11 // pred_check
          %p175 = pneg %p106
        $region22: #{tpu_custom_call.1} parent=11 // pred_check_branch
          %177 = sbr.rel (%p175) target = $region24
        $region23: #{tpu_custom_call.1} parent=11 // pred_region
          _
        $region24: #{tpu_custom_call.1} parent=11 // pred_fallthru
          _
      $region12: #{tpu_custom_call.1} parent=5 // pred_fallthru
        _
      %p178 = scmp.lt.s32.totalorder %s17, 2
      // Predicated region
      $region25: #{tpu_custom_call.1} parent=5 // pred_check
        %p179 = pneg %p178
      $region26: #{tpu_custom_call.1} parent=5 // pred_check_branch
        %181 = sbr.rel (%p179) target = $region28
      $region27: #{tpu_custom_call.1} parent=5 // pred_region
        // Predicated region
        $region29: #{tpu_custom_call.1} parent=27 // pred_check
          %p182 = pneg %p37
        $region30: #{tpu_custom_call.1} parent=27 // pred_check_branch
          %184 = sbr.rel (%p182) target = $region32
        $region31: #{tpu_custom_call.1} parent=27 // pred_region
          %s185 = sand.u32 %s27, 1
          %s186 = scalar_lea.sflag [#allocation3], %s185
          %s187 = sand.u32 %s27, 1
          %s188 = smul.addr %s187, 256
          %s189 = scalar_lea.vmem [#allocation2], %s188
          %191 = vsyncadd %s186, 0
          %s192 = smul.addr %s17, 32
          %s193 = smul.addr %s192, 8
          %s194 = scalar_lea.hbm %s0, %s193
          %s195 = sshll.u32 %s194, 4
          %s196 = int_to_ptr.hbm [resolvable:$true] %s195
          %s197 = sshll.u32 %s189, 4
          %s198 = int_to_ptr.vmem [resolvable:$true] %s197
          %203 = dma.hbm_to_vmem [thread:$0]  %s196, 4096, %s198, %s186, 256, 256, 16
        $region32: #{tpu_custom_call.1} parent=27 // pred_fallthru
          _
      $region28: #{tpu_custom_call.1} parent=5 // pred_fallthru
        _
      %p204 = scmp.le.s32.totalorder 1, %s17
      %p205 = scmp.lt.s32.totalorder %s17, 3
      %p206 = pnand %p204, %p205
      %p207 = pneg %p206
      // Predicated region
      $region33: #{tpu_custom_call.1} parent=5 // pred_check
        _
      $region34: #{tpu_custom_call.1} parent=5 // pred_check_branch
        %209 = sbr.rel (%p206) target = $region36
      $region35: #{tpu_custom_call.1} parent=5 // pred_region
        %s210 = ssub.s32 %s17, 1
        %s211 = sand.u32 %s30, 1
        %s212 = scalar_lea.sflag [#allocation3], %s211
        %s213 = sand.u32 %s30, 1
        %s214 = smul.addr %s213, 256
        %s215 = scalar_lea.vmem [#allocation2], %s214
        // Predicated region
        $region37: #{tpu_custom_call.1} parent=35 // pred_check
          %p216 = pneg %p43
        $region38: #{tpu_custom_call.1} parent=35 // pred_check_branch
          %218 = sbr.rel (%p216) target = $region40
        $region39: #{tpu_custom_call.1} parent=35 // pred_region
          %220 = dma.done %s212, 4096
        $region40: #{tpu_custom_call.1} parent=35 // pred_fallthru
          _
        // Predicated region
        $region41: #{tpu_custom_call.1} parent=35 // pred_check
          %p221 = pneg %p64
        $region42: #{tpu_custom_call.1} parent=35 // pred_check_branch
          %223 = sbr.rel (%p221) target = $region44
        $region43: #{tpu_custom_call.1} parent=35 // pred_region
          %225 = dma.done [#allocation6], 18432
        $region44: #{tpu_custom_call.1} parent=35 // pred_fallthru
          _
        // Predicated region
        $region45: #{tpu_custom_call.1} parent=35 // pred_check
          %p226 = pneg %p85
        $region46: #{tpu_custom_call.1} parent=35 // pred_check_branch
          %228 = sbr.rel (%p226) target = $region48
        $region47: #{tpu_custom_call.1} parent=35 // pred_region
          %230 = dma.done [#allocation6], 18432
        $region48: #{tpu_custom_call.1} parent=35 // pred_fallthru
          _
        %s231 = sand.u32 %s30, 1
        %s232 = scalar_lea.sflag [#allocation3], %s231
        %s233 = sand.u32 %s30, 1
        %s234 = smul.addr %s233, 256
        %s235 = scalar_lea.vmem [#allocation2], %s234
        %p236 = pneg %p43
        %p237 = pneg %p40
        %p238 = pneg %p64
        %p239 = pneg %p61
        %p240 = pneg %p85
        %p241 = pneg %p82
        %p242 = pneg %p106
        %p243 = pneg %p103
        %p244 = pneg %p132
        %p245 = pneg %p129
        %s246 = sand.u32 %s119, 1
        %s247 = scalar_lea.sflag [#allocation4], %s246
        %s248 = sand.u32 %s119, 1
        %s249 = smul.addr %s248, 256
        %s250 = scalar_lea.vmem [#allocation8], %s249
        %v251 = vld [vmem:[%s215] sm:$0xff]
        %v252 = vld [vmem:[%s215 + $0x8] sm:$0xff]
        %v253 = vld [vmem:[%s215 + $0x10] sm:$0xff]
        %v254 = vld [vmem:[%s215 + $0x18] sm:$0xff]
        %v255 = vld [vmem:[%s215 + $0x20] sm:$0xff]
        %v256 = vld [vmem:[%s215 + $0x28] sm:$0xff]
        %v257 = vld [vmem:[%s215 + $0x30] sm:$0xff]
        %v258 = vld [vmem:[%s215 + $0x38] sm:$0xff]
        %v259 = vld [vmem:[%s215 + $0x40] sm:$0xff]
        %v260 = vld [vmem:[%s215 + $0x48] sm:$0xff]
        %v261 = vld [vmem:[%s215 + $0x50] sm:$0xff]
        %v262 = vld [vmem:[%s215 + $0x58] sm:$0xff]
        %v263 = vld [vmem:[%s215 + $0x60] sm:$0xff]
        %v264 = vld [vmem:[%s215 + $0x68] sm:$0xff]
        %v265 = vld [vmem:[%s215 + $0x70] sm:$0xff]
        %v266 = vld [vmem:[%s215 + $0x78] sm:$0xff]
        %v267 = vld [vmem:[%s215 + $0x80] sm:$0xff]
        %v268 = vld [vmem:[%s215 + $0x88] sm:$0xff]
        %v269 = vld [vmem:[%s215 + $0x90] sm:$0xff]
        %v270 = vld [vmem:[%s215 + $0x98] sm:$0xff]
        %v271 = vld [vmem:[%s215 + $0xa0] sm:$0xff]
        %v272 = vld [vmem:[%s215 + $0xa8] sm:$0xff]
        %v273 = vld [vmem:[%s215 + $0xb0] sm:$0xff]
        %v274 = vld [vmem:[%s215 + $0xb8] sm:$0xff]
        %v275 = vld [vmem:[%s215 + $0xc0] sm:$0xff]
        %v276 = vld [vmem:[%s215 + $0xc8] sm:$0xff]
        %v277 = vld [vmem:[%s215 + $0xd0] sm:$0xff]
        %v278 = vld [vmem:[%s215 + $0xd8] sm:$0xff]
        %v279 = vld [vmem:[%s215 + $0xe0] sm:$0xff]
        %v280 = vld [vmem:[%s215 + $0xe8] sm:$0xff]
        %v281 = vld [vmem:[%s215 + $0xf0] sm:$0xff]
        %v282 = vld [vmem:[%s215 + $0xf8] sm:$0xff]
        %v283 = vlaneseq
        %v284 = vand.u32 %v283, 127
        %v285 = vadd.s32 %v284, 128
        %vm286 = vcmp.lt.s32.totalorder %v284, 0
        %v287 = vsub.s32 0, %v284
        %v288 = vsel %vm286, %v287, %v284
        %v289 = vshrl.u32 %v288, 4
        %v290 = vand.u32 %v288, 15
        %v291 = vsub.s32 0, %v290
        %v292 = vsel %vm286, %v291, %v290
        %vm293 = vcmp.lt.s32.totalorder %v285, 0
        %v294 = vsub.s32 0, %v285
        %v295 = vsel %vm293, %v294, %v285
        %v296 = vshrl.u32 %v295, 4
        %v297 = vand.u32 %v295, 15
        %v298 = vsub.s32 0, %v297
        %v299 = vsel %vm293, %v298, %v297
        %vm300 = vcmp.ne.s32.totalorder %v292, 0
        %vm301 = vcmp.ne.s32.totalorder %v299, 0
        %vm302 = vcmp.lt.s32.totalorder %v292, 0
        %vm303 = vcmp.lt.s32.totalorder %v299, 0
        %vm304 = vmand %vm302, %vm300
        %vm305 = vmand %vm303, %vm301
        %v306 = vadd.s32 %v292, 16
        %v307 = vadd.s32 %v299, 16
        %v308 = vsel %vm304, %v306, %v292
        %v309 = vsel %vm305, %v307, %v299
        %vm310 = vcmp.ge.s32.totalorder %v284, 17
        %vm311 = vcmp.ge.s32.totalorder %v285, 17
        %vm312 = vcmp.ge.s32.totalorder %v308, 1
        %vm313 = vcmp.ge.s32.totalorder %v309, 1
        %vm314 = vmand %vm310, %vm312
        %vm315 = vmand %vm311, %vm313
        %v316 = vsel %vm314, 1, 0
        %v317 = vsel %vm315, 1, 0
        %v318 = vcvt.s32.f32 %v316
        %v319 = vcvt.s32.f32 %v317
        %vm320 = vcmp.ge.s32.totalorder %v284, 16
        %vm321 = vcmp.ge.s32.totalorder %v285, 16
        %v322 = vsel %vm320, 1, 0
        %v323 = vsel %vm321, 1, 0
        %v324 = vcvt.s32.f32 %v322
        %v325 = vcvt.s32.f32 %v323
        %vm326 = vcmp.ge.s32.totalorder %v284, 15
        %vm327 = vcmp.ge.s32.totalorder %v285, 15
        %vm328 = vcmp.lt.s32.totalorder %v308, 15
        %vm329 = vcmp.lt.s32.totalorder %v309, 15
        %vm330 = vmand %vm326, %vm328
        %vm331 = vmand %vm327, %vm329
        %v332 = vsel %vm330, 1, 0
        %v333 = vsel %vm331, 1, 0
        %v334 = vcvt.s32.f32 %v332
        %v335 = vcvt.s32.f32 %v333
        %vm336 = vcmp.ge.s32.totalorder %v284, 1
        %vm337 = vcmp.ge.s32.totalorder %v285, 1
        %vm338 = vmand %vm336, %vm312
        %vm339 = vmand %vm337, %vm313
        %v340 = vsel %vm338, 1, 0
        %v341 = vsel %vm339, 1, 0
        %v342 = vcvt.s32.f32 %v340
        %v343 = vcvt.s32.f32 %v341
        %vm344 = vcmp.lt.s32.totalorder %v284, 255
        %vm345 = vcmp.lt.s32.totalorder %v285, 255
        %vm346 = vmand %vm344, %vm328
        %vm347 = vmand %vm345, %vm329
        %v348 = vsel %vm346, 1, 0
        %v349 = vsel %vm347, 1, 0
        %v350 = vcvt.s32.f32 %v348
        %v351 = vcvt.s32.f32 %v349
        %vm352 = vcmp.lt.s32.totalorder %v284, 241
        %vm353 = vcmp.lt.s32.totalorder %v285, 241
        %vm354 = vmand %vm352, %vm312
        %vm355 = vmand %vm353, %vm313
        %v356 = vsel %vm354, 1, 0
        %v357 = vsel %vm355, 1, 0
        %v358 = vcvt.s32.f32 %v356
        %v359 = vcvt.s32.f32 %v357
        %vm360 = vcmp.lt.s32.totalorder %v284, 240
        %vm361 = vcmp.lt.s32.totalorder %v285, 240
        %v362 = vsel %vm360, 1, 0
        %v363 = vsel %vm361, 1, 0
        %v364 = vcvt.s32.f32 %v362
        %v365 = vcvt.s32.f32 %v363
        %vm366 = vcmp.lt.s32.totalorder %v284, 239
        %vm367 = vcmp.lt.s32.totalorder %v285, 239
        %vm368 = vmand %vm366, %vm328
        %vm369 = vmand %vm367, %vm329
        %v370 = vsel %vm368, 1, 0
        %v371 = vsel %vm369, 1, 0
        %v372 = vcvt.s32.f32 %v370
        %v373 = vcvt.s32.f32 %v371
        %374 = vrot.lane.b32.xlu0 %v251, 17
        %v375 = vpop.permute.xlu0 %374
        %376 = vrot.lane.b32.xlu0 %v253, 17
        %v377 = vpop.permute.xlu0 %376
        %378 = vrot.lane.b32.xlu0 %v255, 17
        %v379 = vpop.permute.xlu0 %378
        %380 = vrot.lane.b32.xlu0 %v257, 17
        %v381 = vpop.permute.xlu0 %380
        %382 = vrot.lane.b32.xlu0 %v259, 17
        %v383 = vpop.permute.xlu0 %382
        %384 = vrot.lane.b32.xlu0 %v261, 17
        %v385 = vpop.permute.xlu0 %384
        %386 = vrot.lane.b32.xlu0 %v263, 17
        %v387 = vpop.permute.xlu0 %386
        %388 = vrot.lane.b32.xlu0 %v265, 17
        %v389 = vpop.permute.xlu0 %388
        %390 = vrot.lane.b32.xlu0 %v267, 17
        %v391 = vpop.permute.xlu0 %390
        %392 = vrot.lane.b32.xlu0 %v269, 17
        %v393 = vpop.permute.xlu0 %392
        %394 = vrot.lane.b32.xlu0 %v271, 17
        %v395 = vpop.permute.xlu0 %394
        %396 = vrot.lane.b32.xlu0 %v273, 17
        %v397 = vpop.permute.xlu0 %396
        %398 = vrot.lane.b32.xlu0 %v275, 17
        %v399 = vpop.permute.xlu0 %398
        %400 = vrot.lane.b32.xlu0 %v277, 17
        %v401 = vpop.permute.xlu0 %400
        %402 = vrot.lane.b32.xlu0 %v279, 17
        %v403 = vpop.permute.xlu0 %402
        %404 = vrot.lane.b32.xlu0 %v281, 17
        %v405 = vpop.permute.xlu0 %404
        %406 = vrot.lane.b32.xlu0 %v252, 17
        %v407 = vpop.permute.xlu0 %406
        %408 = vrot.lane.b32.xlu0 %v254, 17
        %v409 = vpop.permute.xlu0 %408
        %410 = vrot.lane.b32.xlu0 %v256, 17
        %v411 = vpop.permute.xlu0 %410
        %412 = vrot.lane.b32.xlu0 %v258, 17
        %v413 = vpop.permute.xlu0 %412
        %414 = vrot.lane.b32.xlu0 %v260, 17
        %v415 = vpop.permute.xlu0 %414
        %416 = vrot.lane.b32.xlu0 %v262, 17
        %v417 = vpop.permute.xlu0 %416
        %418 = vrot.lane.b32.xlu0 %v264, 17
        %v419 = vpop.permute.xlu0 %418
        %420 = vrot.lane.b32.xlu0 %v266, 17
        %v421 = vpop.permute.xlu0 %420
        %422 = vrot.lane.b32.xlu0 %v268, 17
        %v423 = vpop.permute.xlu0 %422
        %424 = vrot.lane.b32.xlu0 %v270, 17
        %v425 = vpop.permute.xlu0 %424
        %426 = vrot.lane.b32.xlu0 %v272, 17
        %v427 = vpop.permute.xlu0 %426
        %428 = vrot.lane.b32.xlu0 %v274, 17
        %v429 = vpop.permute.xlu0 %428
        %430 = vrot.lane.b32.xlu0 %v276, 17
        %v431 = vpop.permute.xlu0 %430
        %432 = vrot.lane.b32.xlu0 %v278, 17
        %v433 = vpop.permute.xlu0 %432
        %434 = vrot.lane.b32.xlu0 %v280, 17
        %v435 = vpop.permute.xlu0 %434
        %436 = vrot.lane.b32.xlu0 %v282, 17
        %v437 = vpop.permute.xlu0 %436
        %vm438 = vcmp.lt.s32.totalorder %v284, 17
        %v439 = vsel %vm438, %v375, %v407
        %v440 = vsel %vm438, %v377, %v409
        %v441 = vsel %vm438, %v379, %v411
        %v442 = vsel %vm438, %v381, %v413
        %v443 = vsel %vm438, %v383, %v415
        %v444 = vsel %vm438, %v385, %v417
        %v445 = vsel %vm438, %v387, %v419
        %v446 = vsel %vm438, %v389, %v421
        %v447 = vsel %vm438, %v391, %v423
        %v448 = vsel %vm438, %v393, %v425
        %v449 = vsel %vm438, %v395, %v427
        %v450 = vsel %vm438, %v397, %v429
        %v451 = vsel %vm438, %v399, %v431
        %v452 = vsel %vm438, %v401, %v433
        %v453 = vsel %vm438, %v403, %v435
        %v454 = vsel %vm438, %v405, %v437
        %v455 = vsel %vm438, %v407, %v375
        %v456 = vsel %vm438, %v409, %v377
        %v457 = vsel %vm438, %v411, %v379
        %v458 = vsel %vm438, %v413, %v381
        %v459 = vsel %vm438, %v415, %v383
        %v460 = vsel %vm438, %v417, %v385
        %v461 = vsel %vm438, %v419, %v387
        %v462 = vsel %vm438, %v421, %v389
        %v463 = vsel %vm438, %v423, %v391
        %v464 = vsel %vm438, %v425, %v393
        %v465 = vsel %vm438, %v427, %v395
        %v466 = vsel %vm438, %v429, %v397
        %v467 = vsel %vm438, %v431, %v399
        %v468 = vsel %vm438, %v433, %v401
        %v469 = vsel %vm438, %v435, %v403
        %v470 = vsel %vm438, %v437, %v405
        %v471 = vmul.f32 %v455, %v318
        %v472 = vmul.f32 %v439, %v319
        %v473 = vmul.f32 %v456, %v318
        %v474 = vmul.f32 %v440, %v319
        %v475 = vmul.f32 %v457, %v318
        %v476 = vmul.f32 %v441, %v319
        %v477 = vmul.f32 %v458, %v318
        %v478 = vmul.f32 %v442, %v319
        %v479 = vmul.f32 %v459, %v318
        %v480 = vmul.f32 %v443, %v319
        %v481 = vmul.f32 %v460, %v318
        %v482 = vmul.f32 %v444, %v319
        %v483 = vmul.f32 %v461, %v318
        %v484 = vmul.f32 %v445, %v319
        %v485 = vmul.f32 %v462, %v318
        %v486 = vmul.f32 %v446, %v319
        %v487 = vmul.f32 %v463, %v318
        %v488 = vmul.f32 %v447, %v319
        %v489 = vmul.f32 %v464, %v318
        %v490 = vmul.f32 %v448, %v319
        %v491 = vmul.f32 %v465, %v318
        %v492 = vmul.f32 %v449, %v319
        %v493 = vmul.f32 %v466, %v318
        %v494 = vmul.f32 %v450, %v319
        %v495 = vmul.f32 %v467, %v318
        %v496 = vmul.f32 %v451, %v319
        %v497 = vmul.f32 %v468, %v318
        %v498 = vmul.f32 %v452, %v319
        %v499 = vmul.f32 %v469, %v318
        %v500 = vmul.f32 %v453, %v319
        %v501 = vmul.f32 %v470, %v318
        %v502 = vmul.f32 %v454, %v319
        %v503 = vld [vmem:[#allocation5] sm:$0xff]
        %v504 = vld [vmem:[#allocation5 + $0x8] sm:$0xff]
        %v505 = vld [vmem:[#allocation5 + $0x10] sm:$0xff]
        %v506 = vld [vmem:[#allocation5 + $0x18] sm:$0xff]
        %v507 = vld [vmem:[#allocation5 + $0x20] sm:$0xff]
        %v508 = vld [vmem:[#allocation5 + $0x28] sm:$0xff]
        %v509 = vld [vmem:[#allocation5 + $0x30] sm:$0xff]
        %v510 = vld [vmem:[#allocation5 + $0x38] sm:$0xff]
        %v511 = vld [vmem:[#allocation5 + $0x40] sm:$0xff]
        %v512 = vld [vmem:[#allocation5 + $0x48] sm:$0xff]
        %v513 = vld [vmem:[#allocation5 + $0x50] sm:$0xff]
        %v514 = vld [vmem:[#allocation5 + $0x58] sm:$0xff]
        %v515 = vld [vmem:[#allocation5 + $0x60] sm:$0xff]
        %v516 = vld [vmem:[#allocation5 + $0x68] sm:$0xff]
        %v517 = vld [vmem:[#allocation5 + $0x70] sm:$0xff]
        %v518 = vld [vmem:[#allocation5 + $0x78] sm:$0xff]
        %519 = vrot.lane.b32.xlu0 %v251, 16
        %v520 = vpop.permute.xlu0 %519
        %521 = vrot.lane.b32.xlu0 %v253, 16
        %v522 = vpop.permute.xlu0 %521
        %523 = vrot.lane.b32.xlu0 %v255, 16
        %v524 = vpop.permute.xlu0 %523
        %525 = vrot.lane.b32.xlu0 %v257, 16
        %v526 = vpop.permute.xlu0 %525
        %527 = vrot.lane.b32.xlu0 %v259, 16
        %v528 = vpop.permute.xlu0 %527
        %529 = vrot.lane.b32.xlu0 %v261, 16
        %v530 = vpop.permute.xlu0 %529
        %531 = vrot.lane.b32.xlu0 %v263, 16
        %v532 = vpop.permute.xlu0 %531
        %533 = vrot.lane.b32.xlu0 %v265, 16
        %v534 = vpop.permute.xlu0 %533
        %535 = vrot.lane.b32.xlu0 %v267, 16
        %v536 = vpop.permute.xlu0 %535
        %537 = vrot.lane.b32.xlu0 %v269, 16
        %v538 = vpop.permute.xlu0 %537
        %539 = vrot.lane.b32.xlu0 %v271, 16
        %v540 = vpop.permute.xlu0 %539
        %541 = vrot.lane.b32.xlu0 %v273, 16
        %v542 = vpop.permute.xlu0 %541
        %543 = vrot.lane.b32.xlu0 %v275, 16
        %v544 = vpop.permute.xlu0 %543
        %545 = vrot.lane.b32.xlu0 %v277, 16
        %v546 = vpop.permute.xlu0 %545
        %547 = vrot.lane.b32.xlu0 %v279, 16
        %v548 = vpop.permute.xlu0 %547
        %549 = vrot.lane.b32.xlu0 %v281, 16
        %v550 = vpop.permute.xlu0 %549
        %551 = vrot.lane.b32.xlu0 %v252, 16
        %v552 = vpop.permute.xlu0 %551
        %553 = vrot.lane.b32.xlu0 %v254, 16
        %v554 = vpop.permute.xlu0 %553
        %555 = vrot.lane.b32.xlu0 %v256, 16
        %v556 = vpop.permute.xlu0 %555
        %557 = vrot.lane.b32.xlu0 %v258, 16
        %v558 = vpop.permute.xlu0 %557
        %559 = vrot.lane.b32.xlu0 %v260, 16
        %v560 = vpop.permute.xlu0 %559
        %561 = vrot.lane.b32.xlu0 %v262, 16
        %v562 = vpop.permute.xlu0 %561
        %563 = vrot.lane.b32.xlu0 %v264, 16
        %v564 = vpop.permute.xlu0 %563
        %565 = vrot.lane.b32.xlu0 %v266, 16
        %v566 = vpop.permute.xlu0 %565
        %567 = vrot.lane.b32.xlu0 %v268, 16
        %v568 = vpop.permute.xlu0 %567
        %569 = vrot.lane.b32.xlu0 %v270, 16
        %v570 = vpop.permute.xlu0 %569
        %571 = vrot.lane.b32.xlu0 %v272, 16
        %v572 = vpop.permute.xlu0 %571
        %573 = vrot.lane.b32.xlu0 %v274, 16
        %v574 = vpop.permute.xlu0 %573
        %575 = vrot.lane.b32.xlu0 %v276, 16
        %v576 = vpop.permute.xlu0 %575
        %577 = vrot.lane.b32.xlu0 %v278, 16
        %v578 = vpop.permute.xlu0 %577
        %579 = vrot.lane.b32.xlu0 %v280, 16
        %v580 = vpop.permute.xlu0 %579
        %581 = vrot.lane.b32.xlu0 %v282, 16
        %v582 = vpop.permute.xlu0 %581
        %vm583 = vcmp.lt.s32.totalorder %v284, 16
        %v584 = vsel %vm583, %v520, %v552
        %v585 = vsel %vm583, %v522, %v554
        %v586 = vsel %vm583, %v524, %v556
        %v587 = vsel %vm583, %v526, %v558
        %v588 = vsel %vm583, %v528, %v560
        %v589 = vsel %vm583, %v530, %v562
        %v590 = vsel %vm583, %v532, %v564
        %v591 = vsel %vm583, %v534, %v566
        %v592 = vsel %vm583, %v536, %v568
        %v593 = vsel %vm583, %v538, %v570
        %v594 = vsel %vm583, %v540, %v572
        %v595 = vsel %vm583, %v542, %v574
        %v596 = vsel %vm583, %v544, %v576
        %v597 = vsel %vm583, %v546, %v578
        %v598 = vsel %vm583, %v548, %v580
        %v599 = vsel %vm583, %v550, %v582
        %v600 = vsel %vm583, %v552, %v520
        %v601 = vsel %vm583, %v554, %v522
        %v602 = vsel %vm583, %v556, %v524
        %v603 = vsel %vm583, %v558, %v526
        %v604 = vsel %vm583, %v560, %v528
        %v605 = vsel %vm583, %v562, %v530
        %v606 = vsel %vm583, %v564, %v532
        %v607 = vsel %vm583, %v566, %v534
        %v608 = vsel %vm583, %v568, %v536
        %v609 = vsel %vm583, %v570, %v538
        %v610 = vsel %vm583, %v572, %v540
        %v611 = vsel %vm583, %v574, %v542
        %v612 = vsel %vm583, %v576, %v544
        %v613 = vsel %vm583, %v578, %v546
        %v614 = vsel %vm583, %v580, %v548
        %v615 = vsel %vm583, %v582, %v550
        %v616 = vmul.f32 %v600, %v324
        %v617 = vmul.f32 %v584, %v325
        %v618 = vmul.f32 %v601, %v324
        %v619 = vmul.f32 %v585, %v325
        %v620 = vmul.f32 %v602, %v324
        %v621 = vmul.f32 %v586, %v325
        %v622 = vmul.f32 %v603, %v324
        %v623 = vmul.f32 %v587, %v325
        %v624 = vmul.f32 %v604, %v324
        %v625 = vmul.f32 %v588, %v325
        %v626 = vmul.f32 %v605, %v324
        %v627 = vmul.f32 %v589, %v325
        %v628 = vmul.f32 %v606, %v324
        %v629 = vmul.f32 %v590, %v325
        %v630 = vmul.f32 %v607, %v324
        %v631 = vmul.f32 %v591, %v325
        %v632 = vmul.f32 %v608, %v324
        %v633 = vmul.f32 %v592, %v325
        %v634 = vmul.f32 %v609, %v324
        %v635 = vmul.f32 %v593, %v325
        %v636 = vmul.f32 %v610, %v324
        %v637 = vmul.f32 %v594, %v325
        %v638 = vmul.f32 %v611, %v324
        %v639 = vmul.f32 %v595, %v325
        %v640 = vmul.f32 %v612, %v324
        %v641 = vmul.f32 %v596, %v325
        %v642 = vmul.f32 %v613, %v324
        %v643 = vmul.f32 %v597, %v325
        %v644 = vmul.f32 %v614, %v324
        %v645 = vmul.f32 %v598, %v325
        %v646 = vmul.f32 %v615, %v324
        %v647 = vmul.f32 %v599, %v325
        %v648 = vld [vmem:[#allocation5 + $0x80] sm:$0xff]
        %v649 = vld [vmem:[#allocation5 + $0x88] sm:$0xff]
        %v650 = vld [vmem:[#allocation5 + $0x90] sm:$0xff]
        %v651 = vld [vmem:[#allocation5 + $0x98] sm:$0xff]
        %v652 = vld [vmem:[#allocation5 + $0xa0] sm:$0xff]
        %v653 = vld [vmem:[#allocation5 + $0xa8] sm:$0xff]
        %v654 = vld [vmem:[#allocation5 + $0xb0] sm:$0xff]
        %v655 = vld [vmem:[#allocation5 + $0xb8] sm:$0xff]
        %v656 = vld [vmem:[#allocation5 + $0xc0] sm:$0xff]
        %v657 = vld [vmem:[#allocation5 + $0xc8] sm:$0xff]
        %v658 = vld [vmem:[#allocation5 + $0xd0] sm:$0xff]
        %v659 = vld [vmem:[#allocation5 + $0xd8] sm:$0xff]
        %v660 = vld [vmem:[#allocation5 + $0xe0] sm:$0xff]
        %v661 = vld [vmem:[#allocation5 + $0xe8] sm:$0xff]
        %v662 = vld [vmem:[#allocation5 + $0xf0] sm:$0xff]
        %v663 = vld [vmem:[#allocation5 + $0xf8] sm:$0xff]
        %664 = vmatpush.msra.mxu0 %v646
        %665 = vmatpush.msra.mxu0 %v644
        %666 = vmatpush.msra.mxu0 %v642
        %667 = vmatpush.msra.mxu0 %v640
        %668 = vmatpush.msra.mxu0 %v638
        %669 = vmatpush.msra.mxu0 %v636
        %670 = vmatpush.msra.mxu0 %v634
        %671 = vmatpush.msra.mxu0 %v632
        %672 = vmatpush.msra.mxu0 %v630
        %673 = vmatpush.msra.mxu0 %v628
        %674 = vmatpush.msra.mxu0 %v626
        %675 = vmatpush.msra.mxu0 %v624
        %676 = vmatpush.msra.mxu0 %v622
        %677 = vmatpush.msra.mxu0 %v620
        %678 = vmatpush.msra.mxu0 %v618
        %679 = vmatpush.msra.mxu0 %v616
        %680 = vmatmul.f32.gmra.mxu0 %v648
        %v681 = vpop.f32.mrf.mxu0
        %v682 = vadd.f32 0.0, %v681
        %683 = vmatmul.f32.gmra.mxu0 %v649
        %v684 = vpop.f32.mrf.mxu0
        %v685 = vadd.f32 0.0, %v684
        %686 = vmatmul.f32.gmra.mxu0 %v650
        %v687 = vpop.f32.mrf.mxu0
        %v688 = vadd.f32 0.0, %v687
        %689 = vmatmul.f32.gmra.mxu0 %v651
        %v690 = vpop.f32.mrf.mxu0
        %v691 = vadd.f32 0.0, %v690
        %692 = vmatmul.f32.gmra.mxu0 %v652
        %v693 = vpop.f32.mrf.mxu0
        %v694 = vadd.f32 0.0, %v693
        %695 = vmatmul.f32.gmra.mxu0 %v653
        %v696 = vpop.f32.mrf.mxu0
        %v697 = vadd.f32 0.0, %v696
        %698 = vmatmul.f32.gmra.mxu0 %v654
        %v699 = vpop.f32.mrf.mxu0
        %v700 = vadd.f32 0.0, %v699
        %701 = vmatmul.f32.gmra.mxu0 %v655
        %v702 = vpop.f32.mrf.mxu0
        %v703 = vadd.f32 0.0, %v702
        %704 = vmatmul.f32.gmra.mxu0 %v656
        %v705 = vpop.f32.mrf.mxu0
        %v706 = vadd.f32 0.0, %v705
        %707 = vmatmul.f32.gmra.mxu0 %v657
        %v708 = vpop.f32.mrf.mxu0
        %v709 = vadd.f32 0.0, %v708
        %710 = vmatmul.f32.gmra.mxu0 %v658
        %v711 = vpop.f32.mrf.mxu0
        %v712 = vadd.f32 0.0, %v711
        %713 = vmatmul.f32.gmra.mxu0 %v659
        %v714 = vpop.f32.mrf.mxu0
        %v715 = vadd.f32 0.0, %v714
        %716 = vmatmul.f32.gmra.mxu0 %v660
        %v717 = vpop.f32.mrf.mxu0
        %v718 = vadd.f32 0.0, %v717
        %719 = vmatmul.f32.gmra.mxu0 %v661
        %v720 = vpop.f32.mrf.mxu0
        %v721 = vadd.f32 0.0, %v720
        %722 = vmatmul.f32.gmra.mxu0 %v662
        %v723 = vpop.f32.mrf.mxu0
        %v724 = vadd.f32 0.0, %v723
        %725 = vmatmul.f32.gmra.mxu0 %v663
        %v726 = vpop.f32.mrf.mxu0
        %v727 = vadd.f32 0.0, %v726
        %728 = vdwg.mxu0
        %729 = vmatpush.msra.mxu0 %v647
        %730 = vmatpush.msra.mxu0 %v645
        %731 = vmatpush.msra.mxu0 %v643
        %732 = vmatpush.msra.mxu0 %v641
        %733 = vmatpush.msra.mxu0 %v639
        %734 = vmatpush.msra.mxu0 %v637
        %735 = vmatpush.msra.mxu0 %v635
        %736 = vmatpush.msra.mxu0 %v633
        %737 = vmatpush.msra.mxu0 %v631
        %738 = vmatpush.msra.mxu0 %v629
        %739 = vmatpush.msra.mxu0 %v627
        %740 = vmatpush.msra.mxu0 %v625
        %741 = vmatpush.msra.mxu0 %v623
        %742 = vmatpush.msra.mxu0 %v621
        %743 = vmatpush.msra.mxu0 %v619
        %744 = vmatpush.msra.mxu0 %v617
        %745 = vmatmul.f32.gmra.mxu0 %v648
        %v746 = vpop.f32.mrf.mxu0
        %v747 = vadd.f32 0.0, %v746
        %748 = vmatmul.f32.gmra.mxu0 %v649
        %v749 = vpop.f32.mrf.mxu0
        %v750 = vadd.f32 0.0, %v749
        %751 = vmatmul.f32.gmra.mxu0 %v650
        %v752 = vpop.f32.mrf.mxu0
        %v753 = vadd.f32 0.0, %v752
        %754 = vmatmul.f32.gmra.mxu0 %v651
        %v755 = vpop.f32.mrf.mxu0
        %v756 = vadd.f32 0.0, %v755
        %757 = vmatmul.f32.gmra.mxu0 %v652
        %v758 = vpop.f32.mrf.mxu0
        %v759 = vadd.f32 0.0, %v758
        %760 = vmatmul.f32.gmra.mxu0 %v653
        %v761 = vpop.f32.mrf.mxu0
        %v762 = vadd.f32 0.0, %v761
        %763 = vmatmul.f32.gmra.mxu0 %v654
        %v764 = vpop.f32.mrf.mxu0
        %v765 = vadd.f32 0.0, %v764
        %766 = vmatmul.f32.gmra.mxu0 %v655
        %v767 = vpop.f32.mrf.mxu0
        %v768 = vadd.f32 0.0, %v767
        %769 = vmatmul.f32.gmra.mxu0 %v656
        %v770 = vpop.f32.mrf.mxu0
        %v771 = vadd.f32 0.0, %v770
        %772 = vmatmul.f32.gmra.mxu0 %v657
        %v773 = vpop.f32.mrf.mxu0
        %v774 = vadd.f32 0.0, %v773
        %775 = vmatmul.f32.gmra.mxu0 %v658
        %v776 = vpop.f32.mrf.mxu0
        %v777 = vadd.f32 0.0, %v776
        %778 = vmatmul.f32.gmra.mxu0 %v659
        %v779 = vpop.f32.mrf.mxu0
        %v780 = vadd.f32 0.0, %v779
        %781 = vmatmul.f32.gmra.mxu0 %v660
        %v782 = vpop.f32.mrf.mxu0
        %v783 = vadd.f32 0.0, %v782
        %784 = vmatmul.f32.gmra.mxu0 %v661
        %v785 = vpop.f32.mrf.mxu0
        %v786 = vadd.f32 0.0, %v785
        %787 = vmatmul.f32.gmra.mxu0 %v662
        %v788 = vpop.f32.mrf.mxu0
        %v789 = vadd.f32 0.0, %v788
        %790 = vmatmul.f32.gmra.mxu0 %v663
        %v791 = vpop.f32.mrf.mxu0
        %v792 = vadd.f32 0.0, %v791
        %793 = vdwg.mxu0
        %794 = vmatpush.msra.mxu0 %v501
        %795 = vmatpush.msra.mxu0 %v499
        %796 = vmatpush.msra.mxu0 %v497
        %797 = vmatpush.msra.mxu0 %v495
        %798 = vmatpush.msra.mxu0 %v493
        %799 = vmatpush.msra.mxu0 %v491
        %800 = vmatpush.msra.mxu0 %v489
        %801 = vmatpush.msra.mxu0 %v487
        %802 = vmatpush.msra.mxu0 %v485
        %803 = vmatpush.msra.mxu0 %v483
        %804 = vmatpush.msra.mxu0 %v481
        %805 = vmatpush.msra.mxu0 %v479
        %806 = vmatpush.msra.mxu0 %v477
        %807 = vmatpush.msra.mxu0 %v475
        %808 = vmatpush.msra.mxu0 %v473
        %809 = vmatpush.msra.mxu0 %v471
        %810 = vmatmul.f32.gmra.mxu0 %v503
        %v811 = vpop.f32.mrf.mxu0
        %v812 = vadd.f32 %v682, %v811
        %813 = vmatmul.f32.gmra.mxu0 %v504
        %v814 = vpop.f32.mrf.mxu0
        %v815 = vadd.f32 %v685, %v814
        %816 = vmatmul.f32.gmra.mxu0 %v505
        %v817 = vpop.f32.mrf.mxu0
        %v818 = vadd.f32 %v688, %v817
        %819 = vmatmul.f32.gmra.mxu0 %v506
        %v820 = vpop.f32.mrf.mxu0
        %v821 = vadd.f32 %v691, %v820
        %822 = vmatmul.f32.gmra.mxu0 %v507
        %v823 = vpop.f32.mrf.mxu0
        %v824 = vadd.f32 %v694, %v823
        %825 = vmatmul.f32.gmra.mxu0 %v508
        %v826 = vpop.f32.mrf.mxu0
        %v827 = vadd.f32 %v697, %v826
        %828 = vmatmul.f32.gmra.mxu0 %v509
        %v829 = vpop.f32.mrf.mxu0
        %v830 = vadd.f32 %v700, %v829
        %831 = vmatmul.f32.gmra.mxu0 %v510
        %v832 = vpop.f32.mrf.mxu0
        %v833 = vadd.f32 %v703, %v832
        %834 = vmatmul.f32.gmra.mxu0 %v511
        %v835 = vpop.f32.mrf.mxu0
        %v836 = vadd.f32 %v706, %v835
        %837 = vmatmul.f32.gmra.mxu0 %v512
        %v838 = vpop.f32.mrf.mxu0
        %v839 = vadd.f32 %v709, %v838
        %840 = vmatmul.f32.gmra.mxu0 %v513
        %v841 = vpop.f32.mrf.mxu0
        %v842 = vadd.f32 %v712, %v841
        %843 = vmatmul.f32.gmra.mxu0 %v514
        %v844 = vpop.f32.mrf.mxu0
        %v845 = vadd.f32 %v715, %v844
        %846 = vmatmul.f32.gmra.mxu0 %v515
        %v847 = vpop.f32.mrf.mxu0
        %v848 = vadd.f32 %v718, %v847
        %849 = vmatmul.f32.gmra.mxu0 %v516
        %v850 = vpop.f32.mrf.mxu0
        %v851 = vadd.f32 %v721, %v850
        %852 = vmatmul.f32.gmra.mxu0 %v517
        %v853 = vpop.f32.mrf.mxu0
        %v854 = vadd.f32 %v724, %v853
        %855 = vmatmul.f32.gmra.mxu0 %v518
        %v856 = vpop.f32.mrf.mxu0
        %v857 = vadd.f32 %v727, %v856
        %858 = vdwg.mxu0
        %859 = vmatpush.msra.mxu0 %v502
        %860 = vmatpush.msra.mxu0 %v500
        %861 = vmatpush.msra.mxu0 %v498
        %862 = vmatpush.msra.mxu0 %v496
        %863 = vmatpush.msra.mxu0 %v494
        %864 = vmatpush.msra.mxu0 %v492
        %865 = vmatpush.msra.mxu0 %v490
        %866 = vmatpush.msra.mxu0 %v488
        %867 = vmatpush.msra.mxu0 %v486
        %868 = vmatpush.msra.mxu0 %v484
        %869 = vmatpush.msra.mxu0 %v482
        %870 = vmatpush.msra.mxu0 %v480
        %871 = vmatpush.msra.mxu0 %v478
        %872 = vmatpush.msra.mxu0 %v476
        %873 = vmatpush.msra.mxu0 %v474
        %874 = vmatpush.msra.mxu0 %v472
        %875 = vmatmul.f32.gmra.mxu0 %v503
        %v876 = vpop.f32.mrf.mxu0
        %v877 = vadd.f32 %v747, %v876
        %878 = vmatmul.f32.gmra.mxu0 %v504
        %v879 = vpop.f32.mrf.mxu0
        %v880 = vadd.f32 %v750, %v879
        %881 = vmatmul.f32.gmra.mxu0 %v505
        %v882 = vpop.f32.mrf.mxu0
        %v883 = vadd.f32 %v753, %v882
        %884 = vmatmul.f32.gmra.mxu0 %v506
        %v885 = vpop.f32.mrf.mxu0
        %v886 = vadd.f32 %v756, %v885
        %887 = vmatmul.f32.gmra.mxu0 %v507
        %v888 = vpop.f32.mrf.mxu0
        %v889 = vadd.f32 %v759, %v888
        %890 = vmatmul.f32.gmra.mxu0 %v508
        %v891 = vpop.f32.mrf.mxu0
        %v892 = vadd.f32 %v762, %v891
        %893 = vmatmul.f32.gmra.mxu0 %v509
        %v894 = vpop.f32.mrf.mxu0
        %v895 = vadd.f32 %v765, %v894
        %896 = vmatmul.f32.gmra.mxu0 %v510
        %v897 = vpop.f32.mrf.mxu0
        %v898 = vadd.f32 %v768, %v897
        %899 = vmatmul.f32.gmra.mxu0 %v511
        %v900 = vpop.f32.mrf.mxu0
        %v901 = vadd.f32 %v771, %v900
        %902 = vmatmul.f32.gmra.mxu0 %v512
        %v903 = vpop.f32.mrf.mxu0
        %v904 = vadd.f32 %v774, %v903
        %905 = vmatmul.f32.gmra.mxu0 %v513
        %v906 = vpop.f32.mrf.mxu0
        %v907 = vadd.f32 %v777, %v906
        %908 = vmatmul.f32.gmra.mxu0 %v514
        %v909 = vpop.f32.mrf.mxu0
        %v910 = vadd.f32 %v780, %v909
        %911 = vmatmul.f32.gmra.mxu0 %v515
        %v912 = vpop.f32.mrf.mxu0
        %v913 = vadd.f32 %v783, %v912
        %914 = vmatmul.f32.gmra.mxu0 %v516
        %v915 = vpop.f32.mrf.mxu0
        %v916 = vadd.f32 %v786, %v915
        %917 = vmatmul.f32.gmra.mxu0 %v517
        %v918 = vpop.f32.mrf.mxu0
        %v919 = vadd.f32 %v789, %v918
        %920 = vmatmul.f32.gmra.mxu0 %v518
        %v921 = vpop.f32.mrf.mxu0
        %v922 = vadd.f32 %v792, %v921
        %923 = vdwg.mxu0
        %924 = vrot.lane.b32.xlu0 %v251, 15
        %v925 = vpop.permute.xlu0 %924
        %926 = vrot.lane.b32.xlu0 %v253, 15
        %v927 = vpop.permute.xlu0 %926
        %928 = vrot.lane.b32.xlu0 %v255, 15
        %v929 = vpop.permute.xlu0 %928
        %930 = vrot.lane.b32.xlu0 %v257, 15
        %v931 = vpop.permute.xlu0 %930
        %932 = vrot.lane.b32.xlu0 %v259, 15
        %v933 = vpop.permute.xlu0 %932
        %934 = vrot.lane.b32.xlu0 %v261, 15
        %v935 = vpop.permute.xlu0 %934
        %936 = vrot.lane.b32.xlu0 %v263, 15
        %v937 = vpop.permute.xlu0 %936
        %938 = vrot.lane.b32.xlu0 %v265, 15
        %v939 = vpop.permute.xlu0 %938
        %940 = vrot.lane.b32.xlu0 %v267, 15
        %v941 = vpop.permute.xlu0 %940
        %942 = vrot.lane.b32.xlu0 %v269, 15
        %v943 = vpop.permute.xlu0 %942
        %944 = vrot.lane.b32.xlu0 %v271, 15
        %v945 = vpop.permute.xlu0 %944
        %946 = vrot.lane.b32.xlu0 %v273, 15
        %v947 = vpop.permute.xlu0 %946
        %948 = vrot.lane.b32.xlu0 %v275, 15
        %v949 = vpop.permute.xlu0 %948
        %950 = vrot.lane.b32.xlu0 %v277, 15
        %v951 = vpop.permute.xlu0 %950
        %952 = vrot.lane.b32.xlu0 %v279, 15
        %v953 = vpop.permute.xlu0 %952
        %954 = vrot.lane.b32.xlu0 %v281, 15
        %v955 = vpop.permute.xlu0 %954
        %956 = vrot.lane.b32.xlu0 %v252, 15
        %v957 = vpop.permute.xlu0 %956
        %958 = vrot.lane.b32.xlu0 %v254, 15
        %v959 = vpop.permute.xlu0 %958
        %960 = vrot.lane.b32.xlu0 %v256, 15
        %v961 = vpop.permute.xlu0 %960
        %962 = vrot.lane.b32.xlu0 %v258, 15
        %v963 = vpop.permute.xlu0 %962
        %964 = vrot.lane.b32.xlu0 %v260, 15
        %v965 = vpop.permute.xlu0 %964
        %966 = vrot.lane.b32.xlu0 %v262, 15
        %v967 = vpop.permute.xlu0 %966
        %968 = vrot.lane.b32.xlu0 %v264, 15
        %v969 = vpop.permute.xlu0 %968
        %970 = vrot.lane.b32.xlu0 %v266, 15
        %v971 = vpop.permute.xlu0 %970
        %972 = vrot.lane.b32.xlu0 %v268, 15
        %v973 = vpop.permute.xlu0 %972
        %974 = vrot.lane.b32.xlu0 %v270, 15
        %v975 = vpop.permute.xlu0 %974
        %976 = vrot.lane.b32.xlu0 %v272, 15
        %v977 = vpop.permute.xlu0 %976
        %978 = vrot.lane.b32.xlu0 %v274, 15
        %v979 = vpop.permute.xlu0 %978
        %980 = vrot.lane.b32.xlu0 %v276, 15
        %v981 = vpop.permute.xlu0 %980
        %982 = vrot.lane.b32.xlu0 %v278, 15
        %v983 = vpop.permute.xlu0 %982
        %984 = vrot.lane.b32.xlu0 %v280, 15
        %v985 = vpop.permute.xlu0 %984
        %986 = vrot.lane.b32.xlu0 %v282, 15
        %v987 = vpop.permute.xlu0 %986
        %vm988 = vcmp.lt.s32.totalorder %v284, 15
        %v989 = vsel %vm988, %v925, %v957
        %v990 = vsel %vm988, %v927, %v959
        %v991 = vsel %vm988, %v929, %v961
        %v992 = vsel %vm988, %v931, %v963
        %v993 = vsel %vm988, %v933, %v965
        %v994 = vsel %vm988, %v935, %v967
        %v995 = vsel %vm988, %v937, %v969
        %v996 = vsel %vm988, %v939, %v971
        %v997 = vsel %vm988, %v941, %v973
        %v998 = vsel %vm988, %v943, %v975
        %v999 = vsel %vm988, %v945, %v977
        %v1000 = vsel %vm988, %v947, %v979
        %v1001 = vsel %vm988, %v949, %v981
        %v1002 = vsel %vm988, %v951, %v983
        %v1003 = vsel %vm988, %v953, %v985
        %v1004 = vsel %vm988, %v955, %v987
        %v1005 = vsel %vm988, %v957, %v925
        %v1006 = vsel %vm988, %v959, %v927
        %v1007 = vsel %vm988, %v961, %v929
        %v1008 = vsel %vm988, %v963, %v931
        %v1009 = vsel %vm988, %v965, %v933
        %v1010 = vsel %vm988, %v967, %v935
        %v1011 = vsel %vm988, %v969, %v937
        %v1012 = vsel %vm988, %v971, %v939
        %v1013 = vsel %vm988, %v973, %v941
        %v1014 = vsel %vm988, %v975, %v943
        %v1015 = vsel %vm988, %v977, %v945
        %v1016 = vsel %vm988, %v979, %v947
        %v1017 = vsel %vm988, %v981, %v949
        %v1018 = vsel %vm988, %v983, %v951
        %v1019 = vsel %vm988, %v985, %v953
        %v1020 = vsel %vm988, %v987, %v955
        %v1021 = vmul.f32 %v1005, %v334
        %v1022 = vmul.f32 %v989, %v335
        %v1023 = vmul.f32 %v1006, %v334
        %v1024 = vmul.f32 %v990, %v335
        %v1025 = vmul.f32 %v1007, %v334
        %v1026 = vmul.f32 %v991, %v335
        %v1027 = vmul.f32 %v1008, %v334
        %v1028 = vmul.f32 %v992, %v335
        %v1029 = vmul.f32 %v1009, %v334
        %v1030 = vmul.f32 %v993, %v335
        %v1031 = vmul.f32 %v1010, %v334
        %v1032 = vmul.f32 %v994, %v335
        %v1033 = vmul.f32 %v1011, %v334
        %v1034 = vmul.f32 %v995, %v335
        %v1035 = vmul.f32 %v1012, %v334
        %v1036 = vmul.f32 %v996, %v335
        %v1037 = vmul.f32 %v1013, %v334
        %v1038 = vmul.f32 %v997, %v335
        %v1039 = vmul.f32 %v1014, %v334
        %v1040 = vmul.f32 %v998, %v335
        %v1041 = vmul.f32 %v1015, %v334
        %v1042 = vmul.f32 %v999, %v335
        %v1043 = vmul.f32 %v1016, %v334
        %v1044 = vmul.f32 %v1000, %v335
        %v1045 = vmul.f32 %v1017, %v334
        %v1046 = vmul.f32 %v1001, %v335
        %v1047 = vmul.f32 %v1018, %v334
        %v1048 = vmul.f32 %v1002, %v335
        %v1049 = vmul.f32 %v1019, %v334
        %v1050 = vmul.f32 %v1003, %v335
        %v1051 = vmul.f32 %v1020, %v334
        %v1052 = vmul.f32 %v1004, %v335
        %v1053 = vld [vmem:[#allocation5 + $0x100] sm:$0xff]
        %v1054 = vld [vmem:[#allocation5 + $0x108] sm:$0xff]
        %v1055 = vld [vmem:[#allocation5 + $0x110] sm:$0xff]
        %v1056 = vld [vmem:[#allocation5 + $0x118] sm:$0xff]
        %v1057 = vld [vmem:[#allocation5 + $0x120] sm:$0xff]
        %v1058 = vld [vmem:[#allocation5 + $0x128] sm:$0xff]
        %v1059 = vld [vmem:[#allocation5 + $0x130] sm:$0xff]
        %v1060 = vld [vmem:[#allocation5 + $0x138] sm:$0xff]
        %v1061 = vld [vmem:[#allocation5 + $0x140] sm:$0xff]
        %v1062 = vld [vmem:[#allocation5 + $0x148] sm:$0xff]
        %v1063 = vld [vmem:[#allocation5 + $0x150] sm:$0xff]
        %v1064 = vld [vmem:[#allocation5 + $0x158] sm:$0xff]
        %v1065 = vld [vmem:[#allocation5 + $0x160] sm:$0xff]
        %v1066 = vld [vmem:[#allocation5 + $0x168] sm:$0xff]
        %v1067 = vld [vmem:[#allocation5 + $0x170] sm:$0xff]
        %v1068 = vld [vmem:[#allocation5 + $0x178] sm:$0xff]
        %1069 = vmatpush.msra.mxu0 %v1051
        %1070 = vmatpush.msra.mxu0 %v1049
        %1071 = vmatpush.msra.mxu0 %v1047
        %1072 = vmatpush.msra.mxu0 %v1045
        %1073 = vmatpush.msra.mxu0 %v1043
        %1074 = vmatpush.msra.mxu0 %v1041
        %1075 = vmatpush.msra.mxu0 %v1039
        %1076 = vmatpush.msra.mxu0 %v1037
        %1077 = vmatpush.msra.mxu0 %v1035
        %1078 = vmatpush.msra.mxu0 %v1033
        %1079 = vmatpush.msra.mxu0 %v1031
        %1080 = vmatpush.msra.mxu0 %v1029
        %1081 = vmatpush.msra.mxu0 %v1027
        %1082 = vmatpush.msra.mxu0 %v1025
        %1083 = vmatpush.msra.mxu0 %v1023
        %1084 = vmatpush.msra.mxu0 %v1021
        %1085 = vmatmul.f32.gmra.mxu0 %v1053
        %v1086 = vpop.f32.mrf.mxu0
        %v1087 = vadd.f32 0.0, %v1086
        %1088 = vmatmul.f32.gmra.mxu0 %v1054
        %v1089 = vpop.f32.mrf.mxu0
        %v1090 = vadd.f32 0.0, %v1089
        %1091 = vmatmul.f32.gmra.mxu0 %v1055
        %v1092 = vpop.f32.mrf.mxu0
        %v1093 = vadd.f32 0.0, %v1092
        %1094 = vmatmul.f32.gmra.mxu0 %v1056
        %v1095 = vpop.f32.mrf.mxu0
        %v1096 = vadd.f32 0.0, %v1095
        %1097 = vmatmul.f32.gmra.mxu0 %v1057
        %v1098 = vpop.f32.mrf.mxu0
        %v1099 = vadd.f32 0.0, %v1098
        %1100 = vmatmul.f32.gmra.mxu0 %v1058
        %v1101 = vpop.f32.mrf.mxu0
        %v1102 = vadd.f32 0.0, %v1101
        %1103 = vmatmul.f32.gmra.mxu0 %v1059
        %v1104 = vpop.f32.mrf.mxu0
        %v1105 = vadd.f32 0.0, %v1104
        %1106 = vmatmul.f32.gmra.mxu0 %v1060
        %v1107 = vpop.f32.mrf.mxu0
        %v1108 = vadd.f32 0.0, %v1107
        %1109 = vmatmul.f32.gmra.mxu0 %v1061
        %v1110 = vpop.f32.mrf.mxu0
        %v1111 = vadd.f32 0.0, %v1110
        %1112 = vmatmul.f32.gmra.mxu0 %v1062
        %v1113 = vpop.f32.mrf.mxu0
        %v1114 = vadd.f32 0.0, %v1113
        %1115 = vmatmul.f32.gmra.mxu0 %v1063
        %v1116 = vpop.f32.mrf.mxu0
        %v1117 = vadd.f32 0.0, %v1116
        %1118 = vmatmul.f32.gmra.mxu0 %v1064
        %v1119 = vpop.f32.mrf.mxu0
        %v1120 = vadd.f32 0.0, %v1119
        %1121 = vmatmul.f32.gmra.mxu0 %v1065
        %v1122 = vpop.f32.mrf.mxu0
        %v1123 = vadd.f32 0.0, %v1122
        %1124 = vmatmul.f32.gmra.mxu0 %v1066
        %v1125 = vpop.f32.mrf.mxu0
        %v1126 = vadd.f32 0.0, %v1125
        %1127 = vmatmul.f32.gmra.mxu0 %v1067
        %v1128 = vpop.f32.mrf.mxu0
        %v1129 = vadd.f32 0.0, %v1128
        %1130 = vmatmul.f32.gmra.mxu0 %v1068
        %v1131 = vpop.f32.mrf.mxu0
        %v1132 = vadd.f32 0.0, %v1131
        %1133 = vdwg.mxu0
        %1134 = vmatpush.msra.mxu0 %v1052
        %1135 = vmatpush.msra.mxu0 %v1050
        %1136 = vmatpush.msra.mxu0 %v1048
        %1137 = vmatpush.msra.mxu0 %v1046
        %1138 = vmatpush.msra.mxu0 %v1044
        %1139 = vmatpush.msra.mxu0 %v1042
        %1140 = vmatpush.msra.mxu0 %v1040
        %1141 = vmatpush.msra.mxu0 %v1038
        %1142 = vmatpush.msra.mxu0 %v1036
        %1143 = vmatpush.msra.mxu0 %v1034
        %1144 = vmatpush.msra.mxu0 %v1032
        %1145 = vmatpush.msra.mxu0 %v1030
        %1146 = vmatpush.msra.mxu0 %v1028
        %1147 = vmatpush.msra.mxu0 %v1026
        %1148 = vmatpush.msra.mxu0 %v1024
        %1149 = vmatpush.msra.mxu0 %v1022
        %1150 = vmatmul.f32.gmra.mxu0 %v1053
        %v1151 = vpop.f32.mrf.mxu0
        %v1152 = vadd.f32 0.0, %v1151
        %1153 = vmatmul.f32.gmra.mxu0 %v1054
        %v1154 = vpop.f32.mrf.mxu0
        %v1155 = vadd.f32 0.0, %v1154
        %1156 = vmatmul.f32.gmra.mxu0 %v1055
        %v1157 = vpop.f32.mrf.mxu0
        %v1158 = vadd.f32 0.0, %v1157
        %1159 = vmatmul.f32.gmra.mxu0 %v1056
        %v1160 = vpop.f32.mrf.mxu0
        %v1161 = vadd.f32 0.0, %v1160
        %1162 = vmatmul.f32.gmra.mxu0 %v1057
        %v1163 = vpop.f32.mrf.mxu0
        %v1164 = vadd.f32 0.0, %v1163
        %1165 = vmatmul.f32.gmra.mxu0 %v1058
        %v1166 = vpop.f32.mrf.mxu0
        %v1167 = vadd.f32 0.0, %v1166
        %1168 = vmatmul.f32.gmra.mxu0 %v1059
        %v1169 = vpop.f32.mrf.mxu0
        %v1170 = vadd.f32 0.0, %v1169
        %1171 = vmatmul.f32.gmra.mxu0 %v1060
        %v1172 = vpop.f32.mrf.mxu0
        %v1173 = vadd.f32 0.0, %v1172
        %1174 = vmatmul.f32.gmra.mxu0 %v1061
        %v1175 = vpop.f32.mrf.mxu0
        %v1176 = vadd.f32 0.0, %v1175
        %1177 = vmatmul.f32.gmra.mxu0 %v1062
        %v1178 = vpop.f32.mrf.mxu0
        %v1179 = vadd.f32 0.0, %v1178
        %1180 = vmatmul.f32.gmra.mxu0 %v1063
        %v1181 = vpop.f32.mrf.mxu0
        %v1182 = vadd.f32 0.0, %v1181
        %1183 = vmatmul.f32.gmra.mxu0 %v1064
        %v1184 = vpop.f32.mrf.mxu0
        %v1185 = vadd.f32 0.0, %v1184
        %1186 = vmatmul.f32.gmra.mxu0 %v1065
        %v1187 = vpop.f32.mrf.mxu0
        %v1188 = vadd.f32 0.0, %v1187
        %1189 = vmatmul.f32.gmra.mxu0 %v1066
        %v1190 = vpop.f32.mrf.mxu0
        %v1191 = vadd.f32 0.0, %v1190
        %1192 = vmatmul.f32.gmra.mxu0 %v1067
        %v1193 = vpop.f32.mrf.mxu0
        %v1194 = vadd.f32 0.0, %v1193
        %1195 = vmatmul.f32.gmra.mxu0 %v1068
        %v1196 = vpop.f32.mrf.mxu0
        %v1197 = vadd.f32 0.0, %v1196
        %1198 = vdwg.mxu0
        %v1199 = vadd.f32 %v812, %v1087
        %v1200 = vadd.f32 %v877, %v1152
        %v1201 = vadd.f32 %v815, %v1090
        %v1202 = vadd.f32 %v880, %v1155
        %v1203 = vadd.f32 %v818, %v1093
        %v1204 = vadd.f32 %v883, %v1158
        %v1205 = vadd.f32 %v821, %v1096
        %v1206 = vadd.f32 %v886, %v1161
        %v1207 = vadd.f32 %v824, %v1099
        %v1208 = vadd.f32 %v889, %v1164
        %v1209 = vadd.f32 %v827, %v1102
        %v1210 = vadd.f32 %v892, %v1167
        %v1211 = vadd.f32 %v830, %v1105
        %v1212 = vadd.f32 %v895, %v1170
        %v1213 = vadd.f32 %v833, %v1108
        %v1214 = vadd.f32 %v898, %v1173
        %v1215 = vadd.f32 %v836, %v1111
        %v1216 = vadd.f32 %v901, %v1176
        %v1217 = vadd.f32 %v839, %v1114
        %v1218 = vadd.f32 %v904, %v1179
        %v1219 = vadd.f32 %v842, %v1117
        %v1220 = vadd.f32 %v907, %v1182
        %v1221 = vadd.f32 %v845, %v1120
        %v1222 = vadd.f32 %v910, %v1185
        %v1223 = vadd.f32 %v848, %v1123
        %v1224 = vadd.f32 %v913, %v1188
        %v1225 = vadd.f32 %v851, %v1126
        %v1226 = vadd.f32 %v916, %v1191
        %v1227 = vadd.f32 %v854, %v1129
        %v1228 = vadd.f32 %v919, %v1194
        %v1229 = vadd.f32 %v857, %v1132
        %v1230 = vadd.f32 %v922, %v1197
        %1231 = vrot.lane.b32.xlu0 %v251, 1
        %v1232 = vpop.permute.xlu0 %1231
        %1233 = vrot.lane.b32.xlu0 %v253, 1
        %v1234 = vpop.permute.xlu0 %1233
        %1235 = vrot.lane.b32.xlu0 %v255, 1
        %v1236 = vpop.permute.xlu0 %1235
        %1237 = vrot.lane.b32.xlu0 %v257, 1
        %v1238 = vpop.permute.xlu0 %1237
        %1239 = vrot.lane.b32.xlu0 %v259, 1
        %v1240 = vpop.permute.xlu0 %1239
        %1241 = vrot.lane.b32.xlu0 %v261, 1
        %v1242 = vpop.permute.xlu0 %1241
        %1243 = vrot.lane.b32.xlu0 %v263, 1
        %v1244 = vpop.permute.xlu0 %1243
        %1245 = vrot.lane.b32.xlu0 %v265, 1
        %v1246 = vpop.permute.xlu0 %1245
        %1247 = vrot.lane.b32.xlu0 %v267, 1
        %v1248 = vpop.permute.xlu0 %1247
        %1249 = vrot.lane.b32.xlu0 %v269, 1
        %v1250 = vpop.permute.xlu0 %1249
        %1251 = vrot.lane.b32.xlu0 %v271, 1
        %v1252 = vpop.permute.xlu0 %1251
        %1253 = vrot.lane.b32.xlu0 %v273, 1
        %v1254 = vpop.permute.xlu0 %1253
        %1255 = vrot.lane.b32.xlu0 %v275, 1
        %v1256 = vpop.permute.xlu0 %1255
        %1257 = vrot.lane.b32.xlu0 %v277, 1
        %v1258 = vpop.permute.xlu0 %1257
        %1259 = vrot.lane.b32.xlu0 %v279, 1
        %v1260 = vpop.permute.xlu0 %1259
        %1261 = vrot.lane.b32.xlu0 %v281, 1
        %v1262 = vpop.permute.xlu0 %1261
        %1263 = vrot.lane.b32.xlu0 %v252, 1
        %v1264 = vpop.permute.xlu0 %1263
        %1265 = vrot.lane.b32.xlu0 %v254, 1
        %v1266 = vpop.permute.xlu0 %1265
        %1267 = vrot.lane.b32.xlu0 %v256, 1
        %v1268 = vpop.permute.xlu0 %1267
        %1269 = vrot.lane.b32.xlu0 %v258, 1
        %v1270 = vpop.permute.xlu0 %1269
        %1271 = vrot.lane.b32.xlu0 %v260, 1
        %v1272 = vpop.permute.xlu0 %1271
        %1273 = vrot.lane.b32.xlu0 %v262, 1
        %v1274 = vpop.permute.xlu0 %1273
        %1275 = vrot.lane.b32.xlu0 %v264, 1
        %v1276 = vpop.permute.xlu0 %1275
        %1277 = vrot.lane.b32.xlu0 %v266, 1
        %v1278 = vpop.permute.xlu0 %1277
        %1279 = vrot.lane.b32.xlu0 %v268, 1
        %v1280 = vpop.permute.xlu0 %1279
        %1281 = vrot.lane.b32.xlu0 %v270, 1
        %v1282 = vpop.permute.xlu0 %1281
        %1283 = vrot.lane.b32.xlu0 %v272, 1
        %v1284 = vpop.permute.xlu0 %1283
        %1285 = vrot.lane.b32.xlu0 %v274, 1
        %v1286 = vpop.permute.xlu0 %1285
        %1287 = vrot.lane.b32.xlu0 %v276, 1
        %v1288 = vpop.permute.xlu0 %1287
        %1289 = vrot.lane.b32.xlu0 %v278, 1
        %v1290 = vpop.permute.xlu0 %1289
        %1291 = vrot.lane.b32.xlu0 %v280, 1
        %v1292 = vpop.permute.xlu0 %1291
        %1293 = vrot.lane.b32.xlu0 %v282, 1
        %v1294 = vpop.permute.xlu0 %1293
        %vm1295 = vcmp.lt.s32.totalorder %v284, 1
        %v1296 = vsel %vm1295, %v1232, %v1264
        %v1297 = vsel %vm1295, %v1234, %v1266
        %v1298 = vsel %vm1295, %v1236, %v1268
        %v1299 = vsel %vm1295, %v1238, %v1270
        %v1300 = vsel %vm1295, %v1240, %v1272
        %v1301 = vsel %vm1295, %v1242, %v1274
        %v1302 = vsel %vm1295, %v1244, %v1276
        %v1303 = vsel %vm1295, %v1246, %v1278
        %v1304 = vsel %vm1295, %v1248, %v1280
        %v1305 = vsel %vm1295, %v1250, %v1282
        %v1306 = vsel %vm1295, %v1252, %v1284
        %v1307 = vsel %vm1295, %v1254, %v1286
        %v1308 = vsel %vm1295, %v1256, %v1288
        %v1309 = vsel %vm1295, %v1258, %v1290
        %v1310 = vsel %vm1295, %v1260, %v1292
        %v1311 = vsel %vm1295, %v1262, %v1294
        %v1312 = vsel %vm1295, %v1264, %v1232
        %v1313 = vsel %vm1295, %v1266, %v1234
        %v1314 = vsel %vm1295, %v1268, %v1236
        %v1315 = vsel %vm1295, %v1270, %v1238
        %v1316 = vsel %vm1295, %v1272, %v1240
        %v1317 = vsel %vm1295, %v1274, %v1242
        %v1318 = vsel %vm1295, %v1276, %v1244
        %v1319 = vsel %vm1295, %v1278, %v1246
        %v1320 = vsel %vm1295, %v1280, %v1248
        %v1321 = vsel %vm1295, %v1282, %v1250
        %v1322 = vsel %vm1295, %v1284, %v1252
        %v1323 = vsel %vm1295, %v1286, %v1254
        %v1324 = vsel %vm1295, %v1288, %v1256
        %v1325 = vsel %vm1295, %v1290, %v1258
        %v1326 = vsel %vm1295, %v1292, %v1260
        %v1327 = vsel %vm1295, %v1294, %v1262
        %v1328 = vmul.f32 %v1312, %v342
        %v1329 = vmul.f32 %v1296, %v343
        %v1330 = vmul.f32 %v1313, %v342
        %v1331 = vmul.f32 %v1297, %v343
        %v1332 = vmul.f32 %v1314, %v342
        %v1333 = vmul.f32 %v1298, %v343
        %v1334 = vmul.f32 %v1315, %v342
        %v1335 = vmul.f32 %v1299, %v343
        %v1336 = vmul.f32 %v1316, %v342
        %v1337 = vmul.f32 %v1300, %v343
        %v1338 = vmul.f32 %v1317, %v342
        %v1339 = vmul.f32 %v1301, %v343
        %v1340 = vmul.f32 %v1318, %v342
        %v1341 = vmul.f32 %v1302, %v343
        %v1342 = vmul.f32 %v1319, %v342
        %v1343 = vmul.f32 %v1303, %v343
        %v1344 = vmul.f32 %v1320, %v342
        %v1345 = vmul.f32 %v1304, %v343
        %v1346 = vmul.f32 %v1321, %v342
        %v1347 = vmul.f32 %v1305, %v343
        %v1348 = vmul.f32 %v1322, %v342
        %v1349 = vmul.f32 %v1306, %v343
        %v1350 = vmul.f32 %v1323, %v342
        %v1351 = vmul.f32 %v1307, %v343
        %v1352 = vmul.f32 %v1324, %v342
        %v1353 = vmul.f32 %v1308, %v343
        %v1354 = vmul.f32 %v1325, %v342
        %v1355 = vmul.f32 %v1309, %v343
        %v1356 = vmul.f32 %v1326, %v342
        %v1357 = vmul.f32 %v1310, %v343
        %v1358 = vmul.f32 %v1327, %v342
        %v1359 = vmul.f32 %v1311, %v343
        %v1360 = vld [vmem:[#allocation5 + $0x180] sm:$0xff]
        %v1361 = vld [vmem:[#allocation5 + $0x188] sm:$0xff]
        %v1362 = vld [vmem:[#allocation5 + $0x190] sm:$0xff]
        %v1363 = vld [vmem:[#allocation5 + $0x198] sm:$0xff]
        %v1364 = vld [vmem:[#allocation5 + $0x1a0] sm:$0xff]
        %v1365 = vld [vmem:[#allocation5 + $0x1a8] sm:$0xff]
        %v1366 = vld [vmem:[#allocation5 + $0x1b0] sm:$0xff]
        %v1367 = vld [vmem:[#allocation5 + $0x1b8] sm:$0xff]
        %v1368 = vld [vmem:[#allocation5 + $0x1c0] sm:$0xff]
        %v1369 = vld [vmem:[#allocation5 + $0x1c8] sm:$0xff]
        %v1370 = vld [vmem:[#allocation5 + $0x1d0] sm:$0xff]
        %v1371 = vld [vmem:[#allocation5 + $0x1d8] sm:$0xff]
        %v1372 = vld [vmem:[#allocation5 + $0x1e0] sm:$0xff]
        %v1373 = vld [vmem:[#allocation5 + $0x1e8] sm:$0xff]
        %v1374 = vld [vmem:[#allocation5 + $0x1f0] sm:$0xff]
        %v1375 = vld [vmem:[#allocation5 + $0x1f8] sm:$0xff]
        %1376 = vmatpush.msra.mxu0 %v1358
        %1377 = vmatpush.msra.mxu0 %v1356
        %1378 = vmatpush.msra.mxu0 %v1354
        %1379 = vmatpush.msra.mxu0 %v1352
        %1380 = vmatpush.msra.mxu0 %v1350
        %1381 = vmatpush.msra.mxu0 %v1348
        %1382 = vmatpush.msra.mxu0 %v1346
        %1383 = vmatpush.msra.mxu0 %v1344
        %1384 = vmatpush.msra.mxu0 %v1342
        %1385 = vmatpush.msra.mxu0 %v1340
        %1386 = vmatpush.msra.mxu0 %v1338
        %1387 = vmatpush.msra.mxu0 %v1336
        %1388 = vmatpush.msra.mxu0 %v1334
        %1389 = vmatpush.msra.mxu0 %v1332
        %1390 = vmatpush.msra.mxu0 %v1330
        %1391 = vmatpush.msra.mxu0 %v1328
        %1392 = vmatmul.f32.gmra.mxu0 %v1360
        %v1393 = vpop.f32.mrf.mxu0
        %v1394 = vadd.f32 0.0, %v1393
        %1395 = vmatmul.f32.gmra.mxu0 %v1361
        %v1396 = vpop.f32.mrf.mxu0
        %v1397 = vadd.f32 0.0, %v1396
        %1398 = vmatmul.f32.gmra.mxu0 %v1362
        %v1399 = vpop.f32.mrf.mxu0
        %v1400 = vadd.f32 0.0, %v1399
        %1401 = vmatmul.f32.gmra.mxu0 %v1363
        %v1402 = vpop.f32.mrf.mxu0
        %v1403 = vadd.f32 0.0, %v1402
        %1404 = vmatmul.f32.gmra.mxu0 %v1364
        %v1405 = vpop.f32.mrf.mxu0
        %v1406 = vadd.f32 0.0, %v1405
        %1407 = vmatmul.f32.gmra.mxu0 %v1365
        %v1408 = vpop.f32.mrf.mxu0
        %v1409 = vadd.f32 0.0, %v1408
        %1410 = vmatmul.f32.gmra.mxu0 %v1366
        %v1411 = vpop.f32.mrf.mxu0
        %v1412 = vadd.f32 0.0, %v1411
        %1413 = vmatmul.f32.gmra.mxu0 %v1367
        %v1414 = vpop.f32.mrf.mxu0
        %v1415 = vadd.f32 0.0, %v1414
        %1416 = vmatmul.f32.gmra.mxu0 %v1368
        %v1417 = vpop.f32.mrf.mxu0
        %v1418 = vadd.f32 0.0, %v1417
        %1419 = vmatmul.f32.gmra.mxu0 %v1369
        %v1420 = vpop.f32.mrf.mxu0
        %v1421 = vadd.f32 0.0, %v1420
        %1422 = vmatmul.f32.gmra.mxu0 %v1370
        %v1423 = vpop.f32.mrf.mxu0
        %v1424 = vadd.f32 0.0, %v1423
        %1425 = vmatmul.f32.gmra.mxu0 %v1371
        %v1426 = vpop.f32.mrf.mxu0
        %v1427 = vadd.f32 0.0, %v1426
        %1428 = vmatmul.f32.gmra.mxu0 %v1372
        %v1429 = vpop.f32.mrf.mxu0
        %v1430 = vadd.f32 0.0, %v1429
        %1431 = vmatmul.f32.gmra.mxu0 %v1373
        %v1432 = vpop.f32.mrf.mxu0
        %v1433 = vadd.f32 0.0, %v1432
        %1434 = vmatmul.f32.gmra.mxu0 %v1374
        %v1435 = vpop.f32.mrf.mxu0
        %v1436 = vadd.f32 0.0, %v1435
        %1437 = vmatmul.f32.gmra.mxu0 %v1375
        %v1438 = vpop.f32.mrf.mxu0
        %v1439 = vadd.f32 0.0, %v1438
        %1440 = vdwg.mxu0
        %1441 = vmatpush.msra.mxu0 %v1359
        %1442 = vmatpush.msra.mxu0 %v1357
        %1443 = vmatpush.msra.mxu0 %v1355
        %1444 = vmatpush.msra.mxu0 %v1353
        %1445 = vmatpush.msra.mxu0 %v1351
        %1446 = vmatpush.msra.mxu0 %v1349
        %1447 = vmatpush.msra.mxu0 %v1347
        %1448 = vmatpush.msra.mxu0 %v1345
        %1449 = vmatpush.msra.mxu0 %v1343
        %1450 = vmatpush.msra.mxu0 %v1341
        %1451 = vmatpush.msra.mxu0 %v1339
        %1452 = vmatpush.msra.mxu0 %v1337
        %1453 = vmatpush.msra.mxu0 %v1335
        %1454 = vmatpush.msra.mxu0 %v1333
        %1455 = vmatpush.msra.mxu0 %v1331
        %1456 = vmatpush.msra.mxu0 %v1329
        %1457 = vmatmul.f32.gmra.mxu0 %v1360
        %v1458 = vpop.f32.mrf.mxu0
        %v1459 = vadd.f32 0.0, %v1458
        %1460 = vmatmul.f32.gmra.mxu0 %v1361
        %v1461 = vpop.f32.mrf.mxu0
        %v1462 = vadd.f32 0.0, %v1461
        %1463 = vmatmul.f32.gmra.mxu0 %v1362
        %v1464 = vpop.f32.mrf.mxu0
        %v1465 = vadd.f32 0.0, %v1464
        %1466 = vmatmul.f32.gmra.mxu0 %v1363
        %v1467 = vpop.f32.mrf.mxu0
        %v1468 = vadd.f32 0.0, %v1467
        %1469 = vmatmul.f32.gmra.mxu0 %v1364
        %v1470 = vpop.f32.mrf.mxu0
        %v1471 = vadd.f32 0.0, %v1470
        %1472 = vmatmul.f32.gmra.mxu0 %v1365
        %v1473 = vpop.f32.mrf.mxu0
        %v1474 = vadd.f32 0.0, %v1473
        %1475 = vmatmul.f32.gmra.mxu0 %v1366
        %v1476 = vpop.f32.mrf.mxu0
        %v1477 = vadd.f32 0.0, %v1476
        %1478 = vmatmul.f32.gmra.mxu0 %v1367
        %v1479 = vpop.f32.mrf.mxu0
        %v1480 = vadd.f32 0.0, %v1479
        %1481 = vmatmul.f32.gmra.mxu0 %v1368
        %v1482 = vpop.f32.mrf.mxu0
        %v1483 = vadd.f32 0.0, %v1482
        %1484 = vmatmul.f32.gmra.mxu0 %v1369
        %v1485 = vpop.f32.mrf.mxu0
        %v1486 = vadd.f32 0.0, %v1485
        %1487 = vmatmul.f32.gmra.mxu0 %v1370
        %v1488 = vpop.f32.mrf.mxu0
        %v1489 = vadd.f32 0.0, %v1488
        %1490 = vmatmul.f32.gmra.mxu0 %v1371
        %v1491 = vpop.f32.mrf.mxu0
        %v1492 = vadd.f32 0.0, %v1491
        %1493 = vmatmul.f32.gmra.mxu0 %v1372
        %v1494 = vpop.f32.mrf.mxu0
        %v1495 = vadd.f32 0.0, %v1494
        %1496 = vmatmul.f32.gmra.mxu0 %v1373
        %v1497 = vpop.f32.mrf.mxu0
        %v1498 = vadd.f32 0.0, %v1497
        %1499 = vmatmul.f32.gmra.mxu0 %v1374
        %v1500 = vpop.f32.mrf.mxu0
        %v1501 = vadd.f32 0.0, %v1500
        %1502 = vmatmul.f32.gmra.mxu0 %v1375
        %v1503 = vpop.f32.mrf.mxu0
        %v1504 = vadd.f32 0.0, %v1503
        %1505 = vdwg.mxu0
        %v1506 = vadd.f32 %v1199, %v1394
        %v1507 = vadd.f32 %v1200, %v1459
        %v1508 = vadd.f32 %v1201, %v1397
        %v1509 = vadd.f32 %v1202, %v1462
        %v1510 = vadd.f32 %v1203, %v1400
        %v1511 = vadd.f32 %v1204, %v1465
        %v1512 = vadd.f32 %v1205, %v1403
        %v1513 = vadd.f32 %v1206, %v1468
        %v1514 = vadd.f32 %v1207, %v1406
        %v1515 = vadd.f32 %v1208, %v1471
        %v1516 = vadd.f32 %v1209, %v1409
        %v1517 = vadd.f32 %v1210, %v1474
        %v1518 = vadd.f32 %v1211, %v1412
        %v1519 = vadd.f32 %v1212, %v1477
        %v1520 = vadd.f32 %v1213, %v1415
        %v1521 = vadd.f32 %v1214, %v1480
        %v1522 = vadd.f32 %v1215, %v1418
        %v1523 = vadd.f32 %v1216, %v1483
        %v1524 = vadd.f32 %v1217, %v1421
        %v1525 = vadd.f32 %v1218, %v1486
        %v1526 = vadd.f32 %v1219, %v1424
        %v1527 = vadd.f32 %v1220, %v1489
        %v1528 = vadd.f32 %v1221, %v1427
        %v1529 = vadd.f32 %v1222, %v1492
        %v1530 = vadd.f32 %v1223, %v1430
        %v1531 = vadd.f32 %v1224, %v1495
        %v1532 = vadd.f32 %v1225, %v1433
        %v1533 = vadd.f32 %v1226, %v1498
        %v1534 = vadd.f32 %v1227, %v1436
        %v1535 = vadd.f32 %v1228, %v1501
        %v1536 = vadd.f32 %v1229, %v1439
        %v1537 = vadd.f32 %v1230, %v1504
        %v1538 = vld [vmem:[#allocation5 + $0x200] sm:$0xff]
        %v1539 = vld [vmem:[#allocation5 + $0x208] sm:$0xff]
        %v1540 = vld [vmem:[#allocation5 + $0x210] sm:$0xff]
        %v1541 = vld [vmem:[#allocation5 + $0x218] sm:$0xff]
        %v1542 = vld [vmem:[#allocation5 + $0x220] sm:$0xff]
        %v1543 = vld [vmem:[#allocation5 + $0x228] sm:$0xff]
        %v1544 = vld [vmem:[#allocation5 + $0x230] sm:$0xff]
        %v1545 = vld [vmem:[#allocation5 + $0x238] sm:$0xff]
        %v1546 = vld [vmem:[#allocation5 + $0x240] sm:$0xff]
        %v1547 = vld [vmem:[#allocation5 + $0x248] sm:$0xff]
        %v1548 = vld [vmem:[#allocation5 + $0x250] sm:$0xff]
        %v1549 = vld [vmem:[#allocation5 + $0x258] sm:$0xff]
        %v1550 = vld [vmem:[#allocation5 + $0x260] sm:$0xff]
        %v1551 = vld [vmem:[#allocation5 + $0x268] sm:$0xff]
        %v1552 = vld [vmem:[#allocation5 + $0x270] sm:$0xff]
        %v1553 = vld [vmem:[#allocation5 + $0x278] sm:$0xff]
        %1554 = vmatpush.msra.mxu0 %v281
        %1555 = vmatpush.msra.mxu0 %v279
        %1556 = vmatpush.msra.mxu0 %v277
        %1557 = vmatpush.msra.mxu0 %v275
        %1558 = vmatpush.msra.mxu0 %v273
        %1559 = vmatpush.msra.mxu0 %v271
        %1560 = vmatpush.msra.mxu0 %v269
        %1561 = vmatpush.msra.mxu0 %v267
        %1562 = vmatpush.msra.mxu0 %v265
        %1563 = vmatpush.msra.mxu0 %v263
        %1564 = vmatpush.msra.mxu0 %v261
        %1565 = vmatpush.msra.mxu0 %v259
        %1566 = vmatpush.msra.mxu0 %v257
        %1567 = vmatpush.msra.mxu0 %v255
        %1568 = vmatpush.msra.mxu0 %v253
        %1569 = vmatpush.msra.mxu0 %v251
        %1570 = vmatmul.f32.gmra.mxu0 %v1538
        %v1571 = vpop.f32.mrf.mxu0
        %v1572 = vadd.f32 0.0, %v1571
        %1573 = vmatmul.f32.gmra.mxu0 %v1539
        %v1574 = vpop.f32.mrf.mxu0
        %v1575 = vadd.f32 0.0, %v1574
        %1576 = vmatmul.f32.gmra.mxu0 %v1540
        %v1577 = vpop.f32.mrf.mxu0
        %v1578 = vadd.f32 0.0, %v1577
        %1579 = vmatmul.f32.gmra.mxu0 %v1541
        %v1580 = vpop.f32.mrf.mxu0
        %v1581 = vadd.f32 0.0, %v1580
        %1582 = vmatmul.f32.gmra.mxu0 %v1542
        %v1583 = vpop.f32.mrf.mxu0
        %v1584 = vadd.f32 0.0, %v1583
        %1585 = vmatmul.f32.gmra.mxu0 %v1543
        %v1586 = vpop.f32.mrf.mxu0
        %v1587 = vadd.f32 0.0, %v1586
        %1588 = vmatmul.f32.gmra.mxu0 %v1544
        %v1589 = vpop.f32.mrf.mxu0
        %v1590 = vadd.f32 0.0, %v1589
        %1591 = vmatmul.f32.gmra.mxu0 %v1545
        %v1592 = vpop.f32.mrf.mxu0
        %v1593 = vadd.f32 0.0, %v1592
        %1594 = vmatmul.f32.gmra.mxu0 %v1546
        %v1595 = vpop.f32.mrf.mxu0
        %v1596 = vadd.f32 0.0, %v1595
        %1597 = vmatmul.f32.gmra.mxu0 %v1547
        %v1598 = vpop.f32.mrf.mxu0
        %v1599 = vadd.f32 0.0, %v1598
        %1600 = vmatmul.f32.gmra.mxu0 %v1548
        %v1601 = vpop.f32.mrf.mxu0
        %v1602 = vadd.f32 0.0, %v1601
        %1603 = vmatmul.f32.gmra.mxu0 %v1549
        %v1604 = vpop.f32.mrf.mxu0
        %v1605 = vadd.f32 0.0, %v1604
        %1606 = vmatmul.f32.gmra.mxu0 %v1550
        %v1607 = vpop.f32.mrf.mxu0
        %v1608 = vadd.f32 0.0, %v1607
        %1609 = vmatmul.f32.gmra.mxu0 %v1551
        %v1610 = vpop.f32.mrf.mxu0
        %v1611 = vadd.f32 0.0, %v1610
        %1612 = vmatmul.f32.gmra.mxu0 %v1552
        %v1613 = vpop.f32.mrf.mxu0
        %v1614 = vadd.f32 0.0, %v1613
        %1615 = vmatmul.f32.gmra.mxu0 %v1553
        %v1616 = vpop.f32.mrf.mxu0
        %v1617 = vadd.f32 0.0, %v1616
        %1618 = vdwg.mxu0
        %1619 = vmatpush.msra.mxu0 %v282
        %1620 = vmatpush.msra.mxu0 %v280
        %1621 = vmatpush.msra.mxu0 %v278
        %1622 = vmatpush.msra.mxu0 %v276
        %1623 = vmatpush.msra.mxu0 %v274
        %1624 = vmatpush.msra.mxu0 %v272
        %1625 = vmatpush.msra.mxu0 %v270
        %1626 = vmatpush.msra.mxu0 %v268
        %1627 = vmatpush.msra.mxu0 %v266
        %1628 = vmatpush.msra.mxu0 %v264
        %1629 = vmatpush.msra.mxu0 %v262
        %1630 = vmatpush.msra.mxu0 %v260
        %1631 = vmatpush.msra.mxu0 %v258
        %1632 = vmatpush.msra.mxu0 %v256
        %1633 = vmatpush.msra.mxu0 %v254
        %1634 = vmatpush.msra.mxu0 %v252
        %1635 = vmatmul.f32.gmra.mxu0 %v1538
        %v1636 = vpop.f32.mrf.mxu0
        %v1637 = vadd.f32 0.0, %v1636
        %1638 = vmatmul.f32.gmra.mxu0 %v1539
        %v1639 = vpop.f32.mrf.mxu0
        %v1640 = vadd.f32 0.0, %v1639
        %1641 = vmatmul.f32.gmra.mxu0 %v1540
        %v1642 = vpop.f32.mrf.mxu0
        %v1643 = vadd.f32 0.0, %v1642
        %1644 = vmatmul.f32.gmra.mxu0 %v1541
        %v1645 = vpop.f32.mrf.mxu0
        %v1646 = vadd.f32 0.0, %v1645
        %1647 = vmatmul.f32.gmra.mxu0 %v1542
        %v1648 = vpop.f32.mrf.mxu0
        %v1649 = vadd.f32 0.0, %v1648
        %1650 = vmatmul.f32.gmra.mxu0 %v1543
        %v1651 = vpop.f32.mrf.mxu0
        %v1652 = vadd.f32 0.0, %v1651
        %1653 = vmatmul.f32.gmra.mxu0 %v1544
        %v1654 = vpop.f32.mrf.mxu0
        %v1655 = vadd.f32 0.0, %v1654
        %1656 = vmatmul.f32.gmra.mxu0 %v1545
        %v1657 = vpop.f32.mrf.mxu0
        %v1658 = vadd.f32 0.0, %v1657
        %1659 = vmatmul.f32.gmra.mxu0 %v1546
        %v1660 = vpop.f32.mrf.mxu0
        %v1661 = vadd.f32 0.0, %v1660
        %1662 = vmatmul.f32.gmra.mxu0 %v1547
        %v1663 = vpop.f32.mrf.mxu0
        %v1664 = vadd.f32 0.0, %v1663
        %1665 = vmatmul.f32.gmra.mxu0 %v1548
        %v1666 = vpop.f32.mrf.mxu0
        %v1667 = vadd.f32 0.0, %v1666
        %1668 = vmatmul.f32.gmra.mxu0 %v1549
        %v1669 = vpop.f32.mrf.mxu0
        %v1670 = vadd.f32 0.0, %v1669
        %1671 = vmatmul.f32.gmra.mxu0 %v1550
        %v1672 = vpop.f32.mrf.mxu0
        %v1673 = vadd.f32 0.0, %v1672
        %1674 = vmatmul.f32.gmra.mxu0 %v1551
        %v1675 = vpop.f32.mrf.mxu0
        %v1676 = vadd.f32 0.0, %v1675
        %1677 = vmatmul.f32.gmra.mxu0 %v1552
        %v1678 = vpop.f32.mrf.mxu0
        %v1679 = vadd.f32 0.0, %v1678
        %1680 = vmatmul.f32.gmra.mxu0 %v1553
        %v1681 = vpop.f32.mrf.mxu0
        %v1682 = vadd.f32 0.0, %v1681
        %1683 = vdwg.mxu0
        %v1684 = vadd.f32 %v1506, %v1572
        %v1685 = vadd.f32 %v1507, %v1637
        %v1686 = vadd.f32 %v1508, %v1575
        %v1687 = vadd.f32 %v1509, %v1640
        %v1688 = vadd.f32 %v1510, %v1578
        %v1689 = vadd.f32 %v1511, %v1643
        %v1690 = vadd.f32 %v1512, %v1581
        %v1691 = vadd.f32 %v1513, %v1646
        %v1692 = vadd.f32 %v1514, %v1584
        %v1693 = vadd.f32 %v1515, %v1649
        %v1694 = vadd.f32 %v1516, %v1587
        %v1695 = vadd.f32 %v1517, %v1652
        %v1696 = vadd.f32 %v1518, %v1590
        %v1697 = vadd.f32 %v1519, %v1655
        %v1698 = vadd.f32 %v1520, %v1593
        %v1699 = vadd.f32 %v1521, %v1658
        %v1700 = vadd.f32 %v1522, %v1596
        %v1701 = vadd.f32 %v1523, %v1661
        %v1702 = vadd.f32 %v1524, %v1599
        %v1703 = vadd.f32 %v1525, %v1664
        %v1704 = vadd.f32 %v1526, %v1602
        %v1705 = vadd.f32 %v1527, %v1667
        %v1706 = vadd.f32 %v1528, %v1605
        %v1707 = vadd.f32 %v1529, %v1670
        %v1708 = vadd.f32 %v1530, %v1608
        %v1709 = vadd.f32 %v1531, %v1673
        %v1710 = vadd.f32 %v1532, %v1611
        %v1711 = vadd.f32 %v1533, %v1676
        %v1712 = vadd.f32 %v1534, %v1614
        %v1713 = vadd.f32 %v1535, %v1679
        %v1714 = vadd.f32 %v1536, %v1617
        %v1715 = vadd.f32 %v1537, %v1682
        %1716 = vrot.lane.b32.xlu0 %v251, 127
        %v1717 = vpop.permute.xlu0 %1716
        %1718 = vrot.lane.b32.xlu0 %v253, 127
        %v1719 = vpop.permute.xlu0 %1718
        %1720 = vrot.lane.b32.xlu0 %v255, 127
        %v1721 = vpop.permute.xlu0 %1720
        %1722 = vrot.lane.b32.xlu0 %v257, 127
        %v1723 = vpop.permute.xlu0 %1722
        %1724 = vrot.lane.b32.xlu0 %v259, 127
        %v1725 = vpop.permute.xlu0 %1724
        %1726 = vrot.lane.b32.xlu0 %v261, 127
        %v1727 = vpop.permute.xlu0 %1726
        %1728 = vrot.lane.b32.xlu0 %v263, 127
        %v1729 = vpop.permute.xlu0 %1728
        %1730 = vrot.lane.b32.xlu0 %v265, 127
        %v1731 = vpop.permute.xlu0 %1730
        %1732 = vrot.lane.b32.xlu0 %v267, 127
        %v1733 = vpop.permute.xlu0 %1732
        %1734 = vrot.lane.b32.xlu0 %v269, 127
        %v1735 = vpop.permute.xlu0 %1734
        %1736 = vrot.lane.b32.xlu0 %v271, 127
        %v1737 = vpop.permute.xlu0 %1736
        %1738 = vrot.lane.b32.xlu0 %v273, 127
        %v1739 = vpop.permute.xlu0 %1738
        %1740 = vrot.lane.b32.xlu0 %v275, 127
        %v1741 = vpop.permute.xlu0 %1740
        %1742 = vrot.lane.b32.xlu0 %v277, 127
        %v1743 = vpop.permute.xlu0 %1742
        %1744 = vrot.lane.b32.xlu0 %v279, 127
        %v1745 = vpop.permute.xlu0 %1744
        %1746 = vrot.lane.b32.xlu0 %v281, 127
        %v1747 = vpop.permute.xlu0 %1746
        %1748 = vrot.lane.b32.xlu0 %v252, 127
        %v1749 = vpop.permute.xlu0 %1748
        %1750 = vrot.lane.b32.xlu0 %v254, 127
        %v1751 = vpop.permute.xlu0 %1750
        %1752 = vrot.lane.b32.xlu0 %v256, 127
        %v1753 = vpop.permute.xlu0 %1752
        %1754 = vrot.lane.b32.xlu0 %v258, 127
        %v1755 = vpop.permute.xlu0 %1754
        %1756 = vrot.lane.b32.xlu0 %v260, 127
        %v1757 = vpop.permute.xlu0 %1756
        %1758 = vrot.lane.b32.xlu0 %v262, 127
        %v1759 = vpop.permute.xlu0 %1758
        %1760 = vrot.lane.b32.xlu0 %v264, 127
        %v1761 = vpop.permute.xlu0 %1760
        %1762 = vrot.lane.b32.xlu0 %v266, 127
        %v1763 = vpop.permute.xlu0 %1762
        %1764 = vrot.lane.b32.xlu0 %v268, 127
        %v1765 = vpop.permute.xlu0 %1764
        %1766 = vrot.lane.b32.xlu0 %v270, 127
        %v1767 = vpop.permute.xlu0 %1766
        %1768 = vrot.lane.b32.xlu0 %v272, 127
        %v1769 = vpop.permute.xlu0 %1768
        %1770 = vrot.lane.b32.xlu0 %v274, 127
        %v1771 = vpop.permute.xlu0 %1770
        %1772 = vrot.lane.b32.xlu0 %v276, 127
        %v1773 = vpop.permute.xlu0 %1772
        %1774 = vrot.lane.b32.xlu0 %v278, 127
        %v1775 = vpop.permute.xlu0 %1774
        %1776 = vrot.lane.b32.xlu0 %v280, 127
        %v1777 = vpop.permute.xlu0 %1776
        %1778 = vrot.lane.b32.xlu0 %v282, 127
        %v1779 = vpop.permute.xlu0 %1778
        %vm1780 = vcmp.lt.s32.totalorder %v284, 127
        %v1781 = vsel %vm1780, %v1717, %v1749
        %v1782 = vsel %vm1780, %v1719, %v1751
        %v1783 = vsel %vm1780, %v1721, %v1753
        %v1784 = vsel %vm1780, %v1723, %v1755
        %v1785 = vsel %vm1780, %v1725, %v1757
        %v1786 = vsel %vm1780, %v1727, %v1759
        %v1787 = vsel %vm1780, %v1729, %v1761
        %v1788 = vsel %vm1780, %v1731, %v1763
        %v1789 = vsel %vm1780, %v1733, %v1765
        %v1790 = vsel %vm1780, %v1735, %v1767
        %v1791 = vsel %vm1780, %v1737, %v1769
        %v1792 = vsel %vm1780, %v1739, %v1771
        %v1793 = vsel %vm1780, %v1741, %v1773
        %v1794 = vsel %vm1780, %v1743, %v1775
        %v1795 = vsel %vm1780, %v1745, %v1777
        %v1796 = vsel %vm1780, %v1747, %v1779
        %v1797 = vsel %vm1780, %v1749, %v1717
        %v1798 = vsel %vm1780, %v1751, %v1719
        %v1799 = vsel %vm1780, %v1753, %v1721
        %v1800 = vsel %vm1780, %v1755, %v1723
        %v1801 = vsel %vm1780, %v1757, %v1725
        %v1802 = vsel %vm1780, %v1759, %v1727
        %v1803 = vsel %vm1780, %v1761, %v1729
        %v1804 = vsel %vm1780, %v1763, %v1731
        %v1805 = vsel %vm1780, %v1765, %v1733
        %v1806 = vsel %vm1780, %v1767, %v1735
        %v1807 = vsel %vm1780, %v1769, %v1737
        %v1808 = vsel %vm1780, %v1771, %v1739
        %v1809 = vsel %vm1780, %v1773, %v1741
        %v1810 = vsel %vm1780, %v1775, %v1743
        %v1811 = vsel %vm1780, %v1777, %v1745
        %v1812 = vsel %vm1780, %v1779, %v1747
        %v1813 = vmul.f32 %v1781, %v350
        %v1814 = vmul.f32 %v1797, %v351
        %v1815 = vmul.f32 %v1782, %v350
        %v1816 = vmul.f32 %v1798, %v351
        %v1817 = vmul.f32 %v1783, %v350
        %v1818 = vmul.f32 %v1799, %v351
        %v1819 = vmul.f32 %v1784, %v350
        %v1820 = vmul.f32 %v1800, %v351
        %v1821 = vmul.f32 %v1785, %v350
        %v1822 = vmul.f32 %v1801, %v351
        %v1823 = vmul.f32 %v1786, %v350
        %v1824 = vmul.f32 %v1802, %v351
        %v1825 = vmul.f32 %v1787, %v350
        %v1826 = vmul.f32 %v1803, %v351
        %v1827 = vmul.f32 %v1788, %v350
        %v1828 = vmul.f32 %v1804, %v351
        %v1829 = vmul.f32 %v1789, %v350
        %v1830 = vmul.f32 %v1805, %v351
        %v1831 = vmul.f32 %v1790, %v350
        %v1832 = vmul.f32 %v1806, %v351
        %v1833 = vmul.f32 %v1791, %v350
        %v1834 = vmul.f32 %v1807, %v351
        %v1835 = vmul.f32 %v1792, %v350
        %v1836 = vmul.f32 %v1808, %v351
        %v1837 = vmul.f32 %v1793, %v350
        %v1838 = vmul.f32 %v1809, %v351
        %v1839 = vmul.f32 %v1794, %v350
        %v1840 = vmul.f32 %v1810, %v351
        %v1841 = vmul.f32 %v1795, %v350
        %v1842 = vmul.f32 %v1811, %v351
        %v1843 = vmul.f32 %v1796, %v350
        %v1844 = vmul.f32 %v1812, %v351
        %v1845 = vld [vmem:[#allocation5 + $0x280] sm:$0xff]
        %v1846 = vld [vmem:[#allocation5 + $0x288] sm:$0xff]
        %v1847 = vld [vmem:[#allocation5 + $0x290] sm:$0xff]
        %v1848 = vld [vmem:[#allocation5 + $0x298] sm:$0xff]
        %v1849 = vld [vmem:[#allocation5 + $0x2a0] sm:$0xff]
        %v1850 = vld [vmem:[#allocation5 + $0x2a8] sm:$0xff]
        %v1851 = vld [vmem:[#allocation5 + $0x2b0] sm:$0xff]
        %v1852 = vld [vmem:[#allocation5 + $0x2b8] sm:$0xff]
        %v1853 = vld [vmem:[#allocation5 + $0x2c0] sm:$0xff]
        %v1854 = vld [vmem:[#allocation5 + $0x2c8] sm:$0xff]
        %v1855 = vld [vmem:[#allocation5 + $0x2d0] sm:$0xff]
        %v1856 = vld [vmem:[#allocation5 + $0x2d8] sm:$0xff]
        %v1857 = vld [vmem:[#allocation5 + $0x2e0] sm:$0xff]
        %v1858 = vld [vmem:[#allocation5 + $0x2e8] sm:$0xff]
        %v1859 = vld [vmem:[#allocation5 + $0x2f0] sm:$0xff]
        %v1860 = vld [vmem:[#allocation5 + $0x2f8] sm:$0xff]
        %1861 = vmatpush.msra.mxu0 %v1843
        %1862 = vmatpush.msra.mxu0 %v1841
        %1863 = vmatpush.msra.mxu0 %v1839
        %1864 = vmatpush.msra.mxu0 %v1837
        %1865 = vmatpush.msra.mxu0 %v1835
        %1866 = vmatpush.msra.mxu0 %v1833
        %1867 = vmatpush.msra.mxu0 %v1831
        %1868 = vmatpush.msra.mxu0 %v1829
        %1869 = vmatpush.msra.mxu0 %v1827
        %1870 = vmatpush.msra.mxu0 %v1825
        %1871 = vmatpush.msra.mxu0 %v1823
        %1872 = vmatpush.msra.mxu0 %v1821
        %1873 = vmatpush.msra.mxu0 %v1819
        %1874 = vmatpush.msra.mxu0 %v1817
        %1875 = vmatpush.msra.mxu0 %v1815
        %1876 = vmatpush.msra.mxu0 %v1813
        %1877 = vmatmul.f32.gmra.mxu0 %v1845
        %v1878 = vpop.f32.mrf.mxu0
        %v1879 = vadd.f32 0.0, %v1878
        %1880 = vmatmul.f32.gmra.mxu0 %v1846
        %v1881 = vpop.f32.mrf.mxu0
        %v1882 = vadd.f32 0.0, %v1881
        %1883 = vmatmul.f32.gmra.mxu0 %v1847
        %v1884 = vpop.f32.mrf.mxu0
        %v1885 = vadd.f32 0.0, %v1884
        %1886 = vmatmul.f32.gmra.mxu0 %v1848
        %v1887 = vpop.f32.mrf.mxu0
        %v1888 = vadd.f32 0.0, %v1887
        %1889 = vmatmul.f32.gmra.mxu0 %v1849
        %v1890 = vpop.f32.mrf.mxu0
        %v1891 = vadd.f32 0.0, %v1890
        %1892 = vmatmul.f32.gmra.mxu0 %v1850
        %v1893 = vpop.f32.mrf.mxu0
        %v1894 = vadd.f32 0.0, %v1893
        %1895 = vmatmul.f32.gmra.mxu0 %v1851
        %v1896 = vpop.f32.mrf.mxu0
        %v1897 = vadd.f32 0.0, %v1896
        %1898 = vmatmul.f32.gmra.mxu0 %v1852
        %v1899 = vpop.f32.mrf.mxu0
        %v1900 = vadd.f32 0.0, %v1899
        %1901 = vmatmul.f32.gmra.mxu0 %v1853
        %v1902 = vpop.f32.mrf.mxu0
        %v1903 = vadd.f32 0.0, %v1902
        %1904 = vmatmul.f32.gmra.mxu0 %v1854
        %v1905 = vpop.f32.mrf.mxu0
        %v1906 = vadd.f32 0.0, %v1905
        %1907 = vmatmul.f32.gmra.mxu0 %v1855
        %v1908 = vpop.f32.mrf.mxu0
        %v1909 = vadd.f32 0.0, %v1908
        %1910 = vmatmul.f32.gmra.mxu0 %v1856
        %v1911 = vpop.f32.mrf.mxu0
        %v1912 = vadd.f32 0.0, %v1911
        %1913 = vmatmul.f32.gmra.mxu0 %v1857
        %v1914 = vpop.f32.mrf.mxu0
        %v1915 = vadd.f32 0.0, %v1914
        %1916 = vmatmul.f32.gmra.mxu0 %v1858
        %v1917 = vpop.f32.mrf.mxu0
        %v1918 = vadd.f32 0.0, %v1917
        %1919 = vmatmul.f32.gmra.mxu0 %v1859
        %v1920 = vpop.f32.mrf.mxu0
        %v1921 = vadd.f32 0.0, %v1920
        %1922 = vmatmul.f32.gmra.mxu0 %v1860
        %v1923 = vpop.f32.mrf.mxu0
        %v1924 = vadd.f32 0.0, %v1923
        %1925 = vdwg.mxu0
        %1926 = vmatpush.msra.mxu0 %v1844
        %1927 = vmatpush.msra.mxu0 %v1842
        %1928 = vmatpush.msra.mxu0 %v1840
        %1929 = vmatpush.msra.mxu0 %v1838
        %1930 = vmatpush.msra.mxu0 %v1836
        %1931 = vmatpush.msra.mxu0 %v1834
        %1932 = vmatpush.msra.mxu0 %v1832
        %1933 = vmatpush.msra.mxu0 %v1830
        %1934 = vmatpush.msra.mxu0 %v1828
        %1935 = vmatpush.msra.mxu0 %v1826
        %1936 = vmatpush.msra.mxu0 %v1824
        %1937 = vmatpush.msra.mxu0 %v1822
        %1938 = vmatpush.msra.mxu0 %v1820
        %1939 = vmatpush.msra.mxu0 %v1818
        %1940 = vmatpush.msra.mxu0 %v1816
        %1941 = vmatpush.msra.mxu0 %v1814
        %1942 = vmatmul.f32.gmra.mxu0 %v1845
        %v1943 = vpop.f32.mrf.mxu0
        %v1944 = vadd.f32 0.0, %v1943
        %1945 = vmatmul.f32.gmra.mxu0 %v1846
        %v1946 = vpop.f32.mrf.mxu0
        %v1947 = vadd.f32 0.0, %v1946
        %1948 = vmatmul.f32.gmra.mxu0 %v1847
        %v1949 = vpop.f32.mrf.mxu0
        %v1950 = vadd.f32 0.0, %v1949
        %1951 = vmatmul.f32.gmra.mxu0 %v1848
        %v1952 = vpop.f32.mrf.mxu0
        %v1953 = vadd.f32 0.0, %v1952
        %1954 = vmatmul.f32.gmra.mxu0 %v1849
        %v1955 = vpop.f32.mrf.mxu0
        %v1956 = vadd.f32 0.0, %v1955
        %1957 = vmatmul.f32.gmra.mxu0 %v1850
        %v1958 = vpop.f32.mrf.mxu0
        %v1959 = vadd.f32 0.0, %v1958
        %1960 = vmatmul.f32.gmra.mxu0 %v1851
        %v1961 = vpop.f32.mrf.mxu0
        %v1962 = vadd.f32 0.0, %v1961
        %1963 = vmatmul.f32.gmra.mxu0 %v1852
        %v1964 = vpop.f32.mrf.mxu0
        %v1965 = vadd.f32 0.0, %v1964
        %1966 = vmatmul.f32.gmra.mxu0 %v1853
        %v1967 = vpop.f32.mrf.mxu0
        %v1968 = vadd.f32 0.0, %v1967
        %1969 = vmatmul.f32.gmra.mxu0 %v1854
        %v1970 = vpop.f32.mrf.mxu0
        %v1971 = vadd.f32 0.0, %v1970
        %1972 = vmatmul.f32.gmra.mxu0 %v1855
        %v1973 = vpop.f32.mrf.mxu0
        %v1974 = vadd.f32 0.0, %v1973
        %1975 = vmatmul.f32.gmra.mxu0 %v1856
        %v1976 = vpop.f32.mrf.mxu0
        %v1977 = vadd.f32 0.0, %v1976
        %1978 = vmatmul.f32.gmra.mxu0 %v1857
        %v1979 = vpop.f32.mrf.mxu0
        %v1980 = vadd.f32 0.0, %v1979
        %1981 = vmatmul.f32.gmra.mxu0 %v1858
        %v1982 = vpop.f32.mrf.mxu0
        %v1983 = vadd.f32 0.0, %v1982
        %1984 = vmatmul.f32.gmra.mxu0 %v1859
        %v1985 = vpop.f32.mrf.mxu0
        %v1986 = vadd.f32 0.0, %v1985
        %1987 = vmatmul.f32.gmra.mxu0 %v1860
        %v1988 = vpop.f32.mrf.mxu0
        %v1989 = vadd.f32 0.0, %v1988
        %1990 = vdwg.mxu0
        %v1991 = vadd.f32 %v1684, %v1879
        %v1992 = vadd.f32 %v1685, %v1944
        %v1993 = vadd.f32 %v1686, %v1882
        %v1994 = vadd.f32 %v1687, %v1947
        %v1995 = vadd.f32 %v1688, %v1885
        %v1996 = vadd.f32 %v1689, %v1950
        %v1997 = vadd.f32 %v1690, %v1888
        %v1998 = vadd.f32 %v1691, %v1953
        %v1999 = vadd.f32 %v1692, %v1891
        %v2000 = vadd.f32 %v1693, %v1956
        %v2001 = vadd.f32 %v1694, %v1894
        %v2002 = vadd.f32 %v1695, %v1959
        %v2003 = vadd.f32 %v1696, %v1897
        %v2004 = vadd.f32 %v1697, %v1962
        %v2005 = vadd.f32 %v1698, %v1900
        %v2006 = vadd.f32 %v1699, %v1965
        %v2007 = vadd.f32 %v1700, %v1903
        %v2008 = vadd.f32 %v1701, %v1968
        %v2009 = vadd.f32 %v1702, %v1906
        %v2010 = vadd.f32 %v1703, %v1971
        %v2011 = vadd.f32 %v1704, %v1909
        %v2012 = vadd.f32 %v1705, %v1974
        %v2013 = vadd.f32 %v1706, %v1912
        %v2014 = vadd.f32 %v1707, %v1977
        %v2015 = vadd.f32 %v1708, %v1915
        %v2016 = vadd.f32 %v1709, %v1980
        %v2017 = vadd.f32 %v1710, %v1918
        %v2018 = vadd.f32 %v1711, %v1983
        %v2019 = vadd.f32 %v1712, %v1921
        %v2020 = vadd.f32 %v1713, %v1986
        %v2021 = vadd.f32 %v1714, %v1924
        %v2022 = vadd.f32 %v1715, %v1989
        %2023 = vrot.lane.b32.xlu0 %v251, 113
        %v2024 = vpop.permute.xlu0 %2023
        %2025 = vrot.lane.b32.xlu0 %v253, 113
        %v2026 = vpop.permute.xlu0 %2025
        %2027 = vrot.lane.b32.xlu0 %v255, 113
        %v2028 = vpop.permute.xlu0 %2027
        %2029 = vrot.lane.b32.xlu0 %v257, 113
        %v2030 = vpop.permute.xlu0 %2029
        %2031 = vrot.lane.b32.xlu0 %v259, 113
        %v2032 = vpop.permute.xlu0 %2031
        %2033 = vrot.lane.b32.xlu0 %v261, 113
        %v2034 = vpop.permute.xlu0 %2033
        %2035 = vrot.lane.b32.xlu0 %v263, 113
        %v2036 = vpop.permute.xlu0 %2035
        %2037 = vrot.lane.b32.xlu0 %v265, 113
        %v2038 = vpop.permute.xlu0 %2037
        %2039 = vrot.lane.b32.xlu0 %v267, 113
        %v2040 = vpop.permute.xlu0 %2039
        %2041 = vrot.lane.b32.xlu0 %v269, 113
        %v2042 = vpop.permute.xlu0 %2041
        %2043 = vrot.lane.b32.xlu0 %v271, 113
        %v2044 = vpop.permute.xlu0 %2043
        %2045 = vrot.lane.b32.xlu0 %v273, 113
        %v2046 = vpop.permute.xlu0 %2045
        %2047 = vrot.lane.b32.xlu0 %v275, 113
        %v2048 = vpop.permute.xlu0 %2047
        %2049 = vrot.lane.b32.xlu0 %v277, 113
        %v2050 = vpop.permute.xlu0 %2049
        %2051 = vrot.lane.b32.xlu0 %v279, 113
        %v2052 = vpop.permute.xlu0 %2051
        %2053 = vrot.lane.b32.xlu0 %v281, 113
        %v2054 = vpop.permute.xlu0 %2053
        %2055 = vrot.lane.b32.xlu0 %v252, 113
        %v2056 = vpop.permute.xlu0 %2055
        %2057 = vrot.lane.b32.xlu0 %v254, 113
        %v2058 = vpop.permute.xlu0 %2057
        %2059 = vrot.lane.b32.xlu0 %v256, 113
        %v2060 = vpop.permute.xlu0 %2059
        %2061 = vrot.lane.b32.xlu0 %v258, 113
        %v2062 = vpop.permute.xlu0 %2061
        %2063 = vrot.lane.b32.xlu0 %v260, 113
        %v2064 = vpop.permute.xlu0 %2063
        %2065 = vrot.lane.b32.xlu0 %v262, 113
        %v2066 = vpop.permute.xlu0 %2065
        %2067 = vrot.lane.b32.xlu0 %v264, 113
        %v2068 = vpop.permute.xlu0 %2067
        %2069 = vrot.lane.b32.xlu0 %v266, 113
        %v2070 = vpop.permute.xlu0 %2069
        %2071 = vrot.lane.b32.xlu0 %v268, 113
        %v2072 = vpop.permute.xlu0 %2071
        %2073 = vrot.lane.b32.xlu0 %v270, 113
        %v2074 = vpop.permute.xlu0 %2073
        %2075 = vrot.lane.b32.xlu0 %v272, 113
        %v2076 = vpop.permute.xlu0 %2075
        %2077 = vrot.lane.b32.xlu0 %v274, 113
        %v2078 = vpop.permute.xlu0 %2077
        %2079 = vrot.lane.b32.xlu0 %v276, 113
        %v2080 = vpop.permute.xlu0 %2079
        %2081 = vrot.lane.b32.xlu0 %v278, 113
        %v2082 = vpop.permute.xlu0 %2081
        %2083 = vrot.lane.b32.xlu0 %v280, 113
        %v2084 = vpop.permute.xlu0 %2083
        %2085 = vrot.lane.b32.xlu0 %v282, 113
        %v2086 = vpop.permute.xlu0 %2085
        %vm2087 = vcmp.lt.s32.totalorder %v284, 113
        %v2088 = vsel %vm2087, %v2024, %v2056
        %v2089 = vsel %vm2087, %v2026, %v2058
        %v2090 = vsel %vm2087, %v2028, %v2060
        %v2091 = vsel %vm2087, %v2030, %v2062
        %v2092 = vsel %vm2087, %v2032, %v2064
        %v2093 = vsel %vm2087, %v2034, %v2066
        %v2094 = vsel %vm2087, %v2036, %v2068
        %v2095 = vsel %vm2087, %v2038, %v2070
        %v2096 = vsel %vm2087, %v2040, %v2072
        %v2097 = vsel %vm2087, %v2042, %v2074
        %v2098 = vsel %vm2087, %v2044, %v2076
        %v2099 = vsel %vm2087, %v2046, %v2078
        %v2100 = vsel %vm2087, %v2048, %v2080
        %v2101 = vsel %vm2087, %v2050, %v2082
        %v2102 = vsel %vm2087, %v2052, %v2084
        %v2103 = vsel %vm2087, %v2054, %v2086
        %v2104 = vsel %vm2087, %v2056, %v2024
        %v2105 = vsel %vm2087, %v2058, %v2026
        %v2106 = vsel %vm2087, %v2060, %v2028
        %v2107 = vsel %vm2087, %v2062, %v2030
        %v2108 = vsel %vm2087, %v2064, %v2032
        %v2109 = vsel %vm2087, %v2066, %v2034
        %v2110 = vsel %vm2087, %v2068, %v2036
        %v2111 = vsel %vm2087, %v2070, %v2038
        %v2112 = vsel %vm2087, %v2072, %v2040
        %v2113 = vsel %vm2087, %v2074, %v2042
        %v2114 = vsel %vm2087, %v2076, %v2044
        %v2115 = vsel %vm2087, %v2078, %v2046
        %v2116 = vsel %vm2087, %v2080, %v2048
        %v2117 = vsel %vm2087, %v2082, %v2050
        %v2118 = vsel %vm2087, %v2084, %v2052
        %v2119 = vsel %vm2087, %v2086, %v2054
        %v2120 = vmul.f32 %v2088, %v358
        %v2121 = vmul.f32 %v2104, %v359
        %v2122 = vmul.f32 %v2089, %v358
        %v2123 = vmul.f32 %v2105, %v359
        %v2124 = vmul.f32 %v2090, %v358
        %v2125 = vmul.f32 %v2106, %v359
        %v2126 = vmul.f32 %v2091, %v358
        %v2127 = vmul.f32 %v2107, %v359
        %v2128 = vmul.f32 %v2092, %v358
        %v2129 = vmul.f32 %v2108, %v359
        %v2130 = vmul.f32 %v2093, %v358
        %v2131 = vmul.f32 %v2109, %v359
        %v2132 = vmul.f32 %v2094, %v358
        %v2133 = vmul.f32 %v2110, %v359
        %v2134 = vmul.f32 %v2095, %v358
        %v2135 = vmul.f32 %v2111, %v359
        %v2136 = vmul.f32 %v2096, %v358
        %v2137 = vmul.f32 %v2112, %v359
        %v2138 = vmul.f32 %v2097, %v358
        %v2139 = vmul.f32 %v2113, %v359
        %v2140 = vmul.f32 %v2098, %v358
        %v2141 = vmul.f32 %v2114, %v359
        %v2142 = vmul.f32 %v2099, %v358
        %v2143 = vmul.f32 %v2115, %v359
        %v2144 = vmul.f32 %v2100, %v358
        %v2145 = vmul.f32 %v2116, %v359
        %v2146 = vmul.f32 %v2101, %v358
        %v2147 = vmul.f32 %v2117, %v359
        %v2148 = vmul.f32 %v2102, %v358
        %v2149 = vmul.f32 %v2118, %v359
        %v2150 = vmul.f32 %v2103, %v358
        %v2151 = vmul.f32 %v2119, %v359
        %v2152 = vld [vmem:[#allocation5 + $0x300] sm:$0xff]
        %v2153 = vld [vmem:[#allocation5 + $0x308] sm:$0xff]
        %v2154 = vld [vmem:[#allocation5 + $0x310] sm:$0xff]
        %v2155 = vld [vmem:[#allocation5 + $0x318] sm:$0xff]
        %v2156 = vld [vmem:[#allocation5 + $0x320] sm:$0xff]
        %v2157 = vld [vmem:[#allocation5 + $0x328] sm:$0xff]
        %v2158 = vld [vmem:[#allocation5 + $0x330] sm:$0xff]
        %v2159 = vld [vmem:[#allocation5 + $0x338] sm:$0xff]
        %v2160 = vld [vmem:[#allocation5 + $0x340] sm:$0xff]
        %v2161 = vld [vmem:[#allocation5 + $0x348] sm:$0xff]
        %v2162 = vld [vmem:[#allocation5 + $0x350] sm:$0xff]
        %v2163 = vld [vmem:[#allocation5 + $0x358] sm:$0xff]
        %v2164 = vld [vmem:[#allocation5 + $0x360] sm:$0xff]
        %v2165 = vld [vmem:[#allocation5 + $0x368] sm:$0xff]
        %v2166 = vld [vmem:[#allocation5 + $0x370] sm:$0xff]
        %v2167 = vld [vmem:[#allocation5 + $0x378] sm:$0xff]
        %2168 = vmatpush.msra.mxu0 %v2150
        %2169 = vmatpush.msra.mxu0 %v2148
        %2170 = vmatpush.msra.mxu0 %v2146
        %2171 = vmatpush.msra.mxu0 %v2144
        %2172 = vmatpush.msra.mxu0 %v2142
        %2173 = vmatpush.msra.mxu0 %v2140
        %2174 = vmatpush.msra.mxu0 %v2138
        %2175 = vmatpush.msra.mxu0 %v2136
        %2176 = vmatpush.msra.mxu0 %v2134
        %2177 = vmatpush.msra.mxu0 %v2132
        %2178 = vmatpush.msra.mxu0 %v2130
        %2179 = vmatpush.msra.mxu0 %v2128
        %2180 = vmatpush.msra.mxu0 %v2126
        %2181 = vmatpush.msra.mxu0 %v2124
        %2182 = vmatpush.msra.mxu0 %v2122
        %2183 = vmatpush.msra.mxu0 %v2120
        %2184 = vmatmul.f32.gmra.mxu0 %v2152
        %v2185 = vpop.f32.mrf.mxu0
        %v2186 = vadd.f32 0.0, %v2185
        %2187 = vmatmul.f32.gmra.mxu0 %v2153
        %v2188 = vpop.f32.mrf.mxu0
        %v2189 = vadd.f32 0.0, %v2188
        %2190 = vmatmul.f32.gmra.mxu0 %v2154
        %v2191 = vpop.f32.mrf.mxu0
        %v2192 = vadd.f32 0.0, %v2191
        %2193 = vmatmul.f32.gmra.mxu0 %v2155
        %v2194 = vpop.f32.mrf.mxu0
        %v2195 = vadd.f32 0.0, %v2194
        %2196 = vmatmul.f32.gmra.mxu0 %v2156
        %v2197 = vpop.f32.mrf.mxu0
        %v2198 = vadd.f32 0.0, %v2197
        %2199 = vmatmul.f32.gmra.mxu0 %v2157
        %v2200 = vpop.f32.mrf.mxu0
        %v2201 = vadd.f32 0.0, %v2200
        %2202 = vmatmul.f32.gmra.mxu0 %v2158
        %v2203 = vpop.f32.mrf.mxu0
        %v2204 = vadd.f32 0.0, %v2203
        %2205 = vmatmul.f32.gmra.mxu0 %v2159
        %v2206 = vpop.f32.mrf.mxu0
        %v2207 = vadd.f32 0.0, %v2206
        %2208 = vmatmul.f32.gmra.mxu0 %v2160
        %v2209 = vpop.f32.mrf.mxu0
        %v2210 = vadd.f32 0.0, %v2209
        %2211 = vmatmul.f32.gmra.mxu0 %v2161
        %v2212 = vpop.f32.mrf.mxu0
        %v2213 = vadd.f32 0.0, %v2212
        %2214 = vmatmul.f32.gmra.mxu0 %v2162
        %v2215 = vpop.f32.mrf.mxu0
        %v2216 = vadd.f32 0.0, %v2215
        %2217 = vmatmul.f32.gmra.mxu0 %v2163
        %v2218 = vpop.f32.mrf.mxu0
        %v2219 = vadd.f32 0.0, %v2218
        %2220 = vmatmul.f32.gmra.mxu0 %v2164
        %v2221 = vpop.f32.mrf.mxu0
        %v2222 = vadd.f32 0.0, %v2221
        %2223 = vmatmul.f32.gmra.mxu0 %v2165
        %v2224 = vpop.f32.mrf.mxu0
        %v2225 = vadd.f32 0.0, %v2224
        %2226 = vmatmul.f32.gmra.mxu0 %v2166
        %v2227 = vpop.f32.mrf.mxu0
        %v2228 = vadd.f32 0.0, %v2227
        %2229 = vmatmul.f32.gmra.mxu0 %v2167
        %v2230 = vpop.f32.mrf.mxu0
        %v2231 = vadd.f32 0.0, %v2230
        %2232 = vdwg.mxu0
        %2233 = vmatpush.msra.mxu0 %v2151
        %2234 = vmatpush.msra.mxu0 %v2149
        %2235 = vmatpush.msra.mxu0 %v2147
        %2236 = vmatpush.msra.mxu0 %v2145
        %2237 = vmatpush.msra.mxu0 %v2143
        %2238 = vmatpush.msra.mxu0 %v2141
        %2239 = vmatpush.msra.mxu0 %v2139
        %2240 = vmatpush.msra.mxu0 %v2137
        %2241 = vmatpush.msra.mxu0 %v2135
        %2242 = vmatpush.msra.mxu0 %v2133
        %2243 = vmatpush.msra.mxu0 %v2131
        %2244 = vmatpush.msra.mxu0 %v2129
        %2245 = vmatpush.msra.mxu0 %v2127
        %2246 = vmatpush.msra.mxu0 %v2125
        %2247 = vmatpush.msra.mxu0 %v2123
        %2248 = vmatpush.msra.mxu0 %v2121
        %2249 = vmatmul.f32.gmra.mxu0 %v2152
        %v2250 = vpop.f32.mrf.mxu0
        %v2251 = vadd.f32 0.0, %v2250
        %2252 = vmatmul.f32.gmra.mxu0 %v2153
        %v2253 = vpop.f32.mrf.mxu0
        %v2254 = vadd.f32 0.0, %v2253
        %2255 = vmatmul.f32.gmra.mxu0 %v2154
        %v2256 = vpop.f32.mrf.mxu0
        %v2257 = vadd.f32 0.0, %v2256
        %2258 = vmatmul.f32.gmra.mxu0 %v2155
        %v2259 = vpop.f32.mrf.mxu0
        %v2260 = vadd.f32 0.0, %v2259
        %2261 = vmatmul.f32.gmra.mxu0 %v2156
        %v2262 = vpop.f32.mrf.mxu0
        %v2263 = vadd.f32 0.0, %v2262
        %2264 = vmatmul.f32.gmra.mxu0 %v2157
        %v2265 = vpop.f32.mrf.mxu0
        %v2266 = vadd.f32 0.0, %v2265
        %2267 = vmatmul.f32.gmra.mxu0 %v2158
        %v2268 = vpop.f32.mrf.mxu0
        %v2269 = vadd.f32 0.0, %v2268
        %2270 = vmatmul.f32.gmra.mxu0 %v2159
        %v2271 = vpop.f32.mrf.mxu0
        %v2272 = vadd.f32 0.0, %v2271
        %2273 = vmatmul.f32.gmra.mxu0 %v2160
        %v2274 = vpop.f32.mrf.mxu0
        %v2275 = vadd.f32 0.0, %v2274
        %2276 = vmatmul.f32.gmra.mxu0 %v2161
        %v2277 = vpop.f32.mrf.mxu0
        %v2278 = vadd.f32 0.0, %v2277
        %2279 = vmatmul.f32.gmra.mxu0 %v2162
        %v2280 = vpop.f32.mrf.mxu0
        %v2281 = vadd.f32 0.0, %v2280
        %2282 = vmatmul.f32.gmra.mxu0 %v2163
        %v2283 = vpop.f32.mrf.mxu0
        %v2284 = vadd.f32 0.0, %v2283
        %2285 = vmatmul.f32.gmra.mxu0 %v2164
        %v2286 = vpop.f32.mrf.mxu0
        %v2287 = vadd.f32 0.0, %v2286
        %2288 = vmatmul.f32.gmra.mxu0 %v2165
        %v2289 = vpop.f32.mrf.mxu0
        %v2290 = vadd.f32 0.0, %v2289
        %2291 = vmatmul.f32.gmra.mxu0 %v2166
        %v2292 = vpop.f32.mrf.mxu0
        %v2293 = vadd.f32 0.0, %v2292
        %2294 = vmatmul.f32.gmra.mxu0 %v2167
        %v2295 = vpop.f32.mrf.mxu0
        %v2296 = vadd.f32 0.0, %v2295
        %2297 = vdwg.mxu0
        %v2298 = vadd.f32 %v1991, %v2186
        %v2299 = vadd.f32 %v1992, %v2251
        %v2300 = vadd.f32 %v1993, %v2189
        %v2301 = vadd.f32 %v1994, %v2254
        %v2302 = vadd.f32 %v1995, %v2192
        %v2303 = vadd.f32 %v1996, %v2257
        %v2304 = vadd.f32 %v1997, %v2195
        %v2305 = vadd.f32 %v1998, %v2260
        %v2306 = vadd.f32 %v1999, %v2198
        %v2307 = vadd.f32 %v2000, %v2263
        %v2308 = vadd.f32 %v2001, %v2201
        %v2309 = vadd.f32 %v2002, %v2266
        %v2310 = vadd.f32 %v2003, %v2204
        %v2311 = vadd.f32 %v2004, %v2269
        %v2312 = vadd.f32 %v2005, %v2207
        %v2313 = vadd.f32 %v2006, %v2272
        %v2314 = vadd.f32 %v2007, %v2210
        %v2315 = vadd.f32 %v2008, %v2275
        %v2316 = vadd.f32 %v2009, %v2213
        %v2317 = vadd.f32 %v2010, %v2278
        %v2318 = vadd.f32 %v2011, %v2216
        %v2319 = vadd.f32 %v2012, %v2281
        %v2320 = vadd.f32 %v2013, %v2219
        %v2321 = vadd.f32 %v2014, %v2284
        %v2322 = vadd.f32 %v2015, %v2222
        %v2323 = vadd.f32 %v2016, %v2287
        %v2324 = vadd.f32 %v2017, %v2225
        %v2325 = vadd.f32 %v2018, %v2290
        %v2326 = vadd.f32 %v2019, %v2228
        %v2327 = vadd.f32 %v2020, %v2293
        %v2328 = vadd.f32 %v2021, %v2231
        %v2329 = vadd.f32 %v2022, %v2296
        %2330 = vrot.lane.b32.xlu0 %v251, 112
        %v2331 = vpop.permute.xlu0 %2330
        %2332 = vrot.lane.b32.xlu0 %v253, 112
        %v2333 = vpop.permute.xlu0 %2332
        %2334 = vrot.lane.b32.xlu0 %v255, 112
        %v2335 = vpop.permute.xlu0 %2334
        %2336 = vrot.lane.b32.xlu0 %v257, 112
        %v2337 = vpop.permute.xlu0 %2336
        %2338 = vrot.lane.b32.xlu0 %v259, 112
        %v2339 = vpop.permute.xlu0 %2338
        %2340 = vrot.lane.b32.xlu0 %v261, 112
        %v2341 = vpop.permute.xlu0 %2340
        %2342 = vrot.lane.b32.xlu0 %v263, 112
        %v2343 = vpop.permute.xlu0 %2342
        %2344 = vrot.lane.b32.xlu0 %v265, 112
        %v2345 = vpop.permute.xlu0 %2344
        %2346 = vrot.lane.b32.xlu0 %v267, 112
        %v2347 = vpop.permute.xlu0 %2346
        %2348 = vrot.lane.b32.xlu0 %v269, 112
        %v2349 = vpop.permute.xlu0 %2348
        %2350 = vrot.lane.b32.xlu0 %v271, 112
        %v2351 = vpop.permute.xlu0 %2350
        %2352 = vrot.lane.b32.xlu0 %v273, 112
        %v2353 = vpop.permute.xlu0 %2352
        %2354 = vrot.lane.b32.xlu0 %v275, 112
        %v2355 = vpop.permute.xlu0 %2354
        %2356 = vrot.lane.b32.xlu0 %v277, 112
        %v2357 = vpop.permute.xlu0 %2356
        %2358 = vrot.lane.b32.xlu0 %v279, 112
        %v2359 = vpop.permute.xlu0 %2358
        %2360 = vrot.lane.b32.xlu0 %v281, 112
        %v2361 = vpop.permute.xlu0 %2360
        %2362 = vrot.lane.b32.xlu0 %v252, 112
        %v2363 = vpop.permute.xlu0 %2362
        %2364 = vrot.lane.b32.xlu0 %v254, 112
        %v2365 = vpop.permute.xlu0 %2364
        %2366 = vrot.lane.b32.xlu0 %v256, 112
        %v2367 = vpop.permute.xlu0 %2366
        %2368 = vrot.lane.b32.xlu0 %v258, 112
        %v2369 = vpop.permute.xlu0 %2368
        %2370 = vrot.lane.b32.xlu0 %v260, 112
        %v2371 = vpop.permute.xlu0 %2370
        %2372 = vrot.lane.b32.xlu0 %v262, 112
        %v2373 = vpop.permute.xlu0 %2372
        %2374 = vrot.lane.b32.xlu0 %v264, 112
        %v2375 = vpop.permute.xlu0 %2374
        %2376 = vrot.lane.b32.xlu0 %v266, 112
        %v2377 = vpop.permute.xlu0 %2376
        %2378 = vrot.lane.b32.xlu0 %v268, 112
        %v2379 = vpop.permute.xlu0 %2378
        %2380 = vrot.lane.b32.xlu0 %v270, 112
        %v2381 = vpop.permute.xlu0 %2380
        %2382 = vrot.lane.b32.xlu0 %v272, 112
        %v2383 = vpop.permute.xlu0 %2382
        %2384 = vrot.lane.b32.xlu0 %v274, 112
        %v2385 = vpop.permute.xlu0 %2384
        %2386 = vrot.lane.b32.xlu0 %v276, 112
        %v2387 = vpop.permute.xlu0 %2386
        %2388 = vrot.lane.b32.xlu0 %v278, 112
        %v2389 = vpop.permute.xlu0 %2388
        %2390 = vrot.lane.b32.xlu0 %v280, 112
        %v2391 = vpop.permute.xlu0 %2390
        %2392 = vrot.lane.b32.xlu0 %v282, 112
        %v2393 = vpop.permute.xlu0 %2392
        %vm2394 = vcmp.lt.s32.totalorder %v284, 112
        %v2395 = vsel %vm2394, %v2331, %v2363
        %v2396 = vsel %vm2394, %v2333, %v2365
        %v2397 = vsel %vm2394, %v2335, %v2367
        %v2398 = vsel %vm2394, %v2337, %v2369
        %v2399 = vsel %vm2394, %v2339, %v2371
        %v2400 = vsel %vm2394, %v2341, %v2373
        %v2401 = vsel %vm2394, %v2343, %v2375
        %v2402 = vsel %vm2394, %v2345, %v2377
        %v2403 = vsel %vm2394, %v2347, %v2379
        %v2404 = vsel %vm2394, %v2349, %v2381
        %v2405 = vsel %vm2394, %v2351, %v2383
        %v2406 = vsel %vm2394, %v2353, %v2385
        %v2407 = vsel %vm2394, %v2355, %v2387
        %v2408 = vsel %vm2394, %v2357, %v2389
        %v2409 = vsel %vm2394, %v2359, %v2391
        %v2410 = vsel %vm2394, %v2361, %v2393
        %v2411 = vsel %vm2394, %v2363, %v2331
        %v2412 = vsel %vm2394, %v2365, %v2333
        %v2413 = vsel %vm2394, %v2367, %v2335
        %v2414 = vsel %vm2394, %v2369, %v2337
        %v2415 = vsel %vm2394, %v2371, %v2339
        %v2416 = vsel %vm2394, %v2373, %v2341
        %v2417 = vsel %vm2394, %v2375, %v2343
        %v2418 = vsel %vm2394, %v2377, %v2345
        %v2419 = vsel %vm2394, %v2379, %v2347
        %v2420 = vsel %vm2394, %v2381, %v2349
        %v2421 = vsel %vm2394, %v2383, %v2351
        %v2422 = vsel %vm2394, %v2385, %v2353
        %v2423 = vsel %vm2394, %v2387, %v2355
        %v2424 = vsel %vm2394, %v2389, %v2357
        %v2425 = vsel %vm2394, %v2391, %v2359
        %v2426 = vsel %vm2394, %v2393, %v2361
        %v2427 = vmul.f32 %v2395, %v364
        %v2428 = vmul.f32 %v2411, %v365
        %v2429 = vmul.f32 %v2396, %v364
        %v2430 = vmul.f32 %v2412, %v365
        %v2431 = vmul.f32 %v2397, %v364
        %v2432 = vmul.f32 %v2413, %v365
        %v2433 = vmul.f32 %v2398, %v364
        %v2434 = vmul.f32 %v2414, %v365
        %v2435 = vmul.f32 %v2399, %v364
        %v2436 = vmul.f32 %v2415, %v365
        %v2437 = vmul.f32 %v2400, %v364
        %v2438 = vmul.f32 %v2416, %v365
        %v2439 = vmul.f32 %v2401, %v364
        %v2440 = vmul.f32 %v2417, %v365
        %v2441 = vmul.f32 %v2402, %v364
        %v2442 = vmul.f32 %v2418, %v365
        %v2443 = vmul.f32 %v2403, %v364
        %v2444 = vmul.f32 %v2419, %v365
        %v2445 = vmul.f32 %v2404, %v364
        %v2446 = vmul.f32 %v2420, %v365
        %v2447 = vmul.f32 %v2405, %v364
        %v2448 = vmul.f32 %v2421, %v365
        %v2449 = vmul.f32 %v2406, %v364
        %v2450 = vmul.f32 %v2422, %v365
        %v2451 = vmul.f32 %v2407, %v364
        %v2452 = vmul.f32 %v2423, %v365
        %v2453 = vmul.f32 %v2408, %v364
        %v2454 = vmul.f32 %v2424, %v365
        %v2455 = vmul.f32 %v2409, %v364
        %v2456 = vmul.f32 %v2425, %v365
        %v2457 = vmul.f32 %v2410, %v364
        %v2458 = vmul.f32 %v2426, %v365
        %v2459 = vld [vmem:[#allocation5 + $0x380] sm:$0xff]
        %v2460 = vld [vmem:[#allocation5 + $0x388] sm:$0xff]
        %v2461 = vld [vmem:[#allocation5 + $0x390] sm:$0xff]
        %v2462 = vld [vmem:[#allocation5 + $0x398] sm:$0xff]
        %v2463 = vld [vmem:[#allocation5 + $0x3a0] sm:$0xff]
        %v2464 = vld [vmem:[#allocation5 + $0x3a8] sm:$0xff]
        %v2465 = vld [vmem:[#allocation5 + $0x3b0] sm:$0xff]
        %v2466 = vld [vmem:[#allocation5 + $0x3b8] sm:$0xff]
        %v2467 = vld [vmem:[#allocation5 + $0x3c0] sm:$0xff]
        %v2468 = vld [vmem:[#allocation5 + $0x3c8] sm:$0xff]
        %v2469 = vld [vmem:[#allocation5 + $0x3d0] sm:$0xff]
        %v2470 = vld [vmem:[#allocation5 + $0x3d8] sm:$0xff]
        %v2471 = vld [vmem:[#allocation5 + $0x3e0] sm:$0xff]
        %v2472 = vld [vmem:[#allocation5 + $0x3e8] sm:$0xff]
        %v2473 = vld [vmem:[#allocation5 + $0x3f0] sm:$0xff]
        %v2474 = vld [vmem:[#allocation5 + $0x3f8] sm:$0xff]
        %2475 = vmatpush.msra.mxu0 %v2457
        %2476 = vmatpush.msra.mxu0 %v2455
        %2477 = vmatpush.msra.mxu0 %v2453
        %2478 = vmatpush.msra.mxu0 %v2451
        %2479 = vmatpush.msra.mxu0 %v2449
        %2480 = vmatpush.msra.mxu0 %v2447
        %2481 = vmatpush.msra.mxu0 %v2445
        %2482 = vmatpush.msra.mxu0 %v2443
        %2483 = vmatpush.msra.mxu0 %v2441
        %2484 = vmatpush.msra.mxu0 %v2439
        %2485 = vmatpush.msra.mxu0 %v2437
        %2486 = vmatpush.msra.mxu0 %v2435
        %2487 = vmatpush.msra.mxu0 %v2433
        %2488 = vmatpush.msra.mxu0 %v2431
        %2489 = vmatpush.msra.mxu0 %v2429
        %2490 = vmatpush.msra.mxu0 %v2427
        %2491 = vmatmul.f32.gmra.mxu0 %v2459
        %v2492 = vpop.f32.mrf.mxu0
        %v2493 = vadd.f32 0.0, %v2492
        %2494 = vmatmul.f32.gmra.mxu0 %v2460
        %v2495 = vpop.f32.mrf.mxu0
        %v2496 = vadd.f32 0.0, %v2495
        %2497 = vmatmul.f32.gmra.mxu0 %v2461
        %v2498 = vpop.f32.mrf.mxu0
        %v2499 = vadd.f32 0.0, %v2498
        %2500 = vmatmul.f32.gmra.mxu0 %v2462
        %v2501 = vpop.f32.mrf.mxu0
        %v2502 = vadd.f32 0.0, %v2501
        %2503 = vmatmul.f32.gmra.mxu0 %v2463
        %v2504 = vpop.f32.mrf.mxu0
        %v2505 = vadd.f32 0.0, %v2504
        %2506 = vmatmul.f32.gmra.mxu0 %v2464
        %v2507 = vpop.f32.mrf.mxu0
        %v2508 = vadd.f32 0.0, %v2507
        %2509 = vmatmul.f32.gmra.mxu0 %v2465
        %v2510 = vpop.f32.mrf.mxu0
        %v2511 = vadd.f32 0.0, %v2510
        %2512 = vmatmul.f32.gmra.mxu0 %v2466
        %v2513 = vpop.f32.mrf.mxu0
        %v2514 = vadd.f32 0.0, %v2513
        %2515 = vmatmul.f32.gmra.mxu0 %v2467
        %v2516 = vpop.f32.mrf.mxu0
        %v2517 = vadd.f32 0.0, %v2516
        %2518 = vmatmul.f32.gmra.mxu0 %v2468
        %v2519 = vpop.f32.mrf.mxu0
        %v2520 = vadd.f32 0.0, %v2519
        %2521 = vmatmul.f32.gmra.mxu0 %v2469
        %v2522 = vpop.f32.mrf.mxu0
        %v2523 = vadd.f32 0.0, %v2522
        %2524 = vmatmul.f32.gmra.mxu0 %v2470
        %v2525 = vpop.f32.mrf.mxu0
        %v2526 = vadd.f32 0.0, %v2525
        %2527 = vmatmul.f32.gmra.mxu0 %v2471
        %v2528 = vpop.f32.mrf.mxu0
        %v2529 = vadd.f32 0.0, %v2528
        %2530 = vmatmul.f32.gmra.mxu0 %v2472
        %v2531 = vpop.f32.mrf.mxu0
        %v2532 = vadd.f32 0.0, %v2531
        %2533 = vmatmul.f32.gmra.mxu0 %v2473
        %v2534 = vpop.f32.mrf.mxu0
        %v2535 = vadd.f32 0.0, %v2534
        %2536 = vmatmul.f32.gmra.mxu0 %v2474
        %v2537 = vpop.f32.mrf.mxu0
        %v2538 = vadd.f32 0.0, %v2537
        %2539 = vdwg.mxu0
        %2540 = vmatpush.msra.mxu0 %v2458
        %2541 = vmatpush.msra.mxu0 %v2456
        %2542 = vmatpush.msra.mxu0 %v2454
        %2543 = vmatpush.msra.mxu0 %v2452
        %2544 = vmatpush.msra.mxu0 %v2450
        %2545 = vmatpush.msra.mxu0 %v2448
        %2546 = vmatpush.msra.mxu0 %v2446
        %2547 = vmatpush.msra.mxu0 %v2444
        %2548 = vmatpush.msra.mxu0 %v2442
        %2549 = vmatpush.msra.mxu0 %v2440
        %2550 = vmatpush.msra.mxu0 %v2438
        %2551 = vmatpush.msra.mxu0 %v2436
        %2552 = vmatpush.msra.mxu0 %v2434
        %2553 = vmatpush.msra.mxu0 %v2432
        %2554 = vmatpush.msra.mxu0 %v2430
        %2555 = vmatpush.msra.mxu0 %v2428
        %2556 = vmatmul.f32.gmra.mxu0 %v2459
        %v2557 = vpop.f32.mrf.mxu0
        %v2558 = vadd.f32 0.0, %v2557
        %2559 = vmatmul.f32.gmra.mxu0 %v2460
        %v2560 = vpop.f32.mrf.mxu0
        %v2561 = vadd.f32 0.0, %v2560
        %2562 = vmatmul.f32.gmra.mxu0 %v2461
        %v2563 = vpop.f32.mrf.mxu0
        %v2564 = vadd.f32 0.0, %v2563
        %2565 = vmatmul.f32.gmra.mxu0 %v2462
        %v2566 = vpop.f32.mrf.mxu0
        %v2567 = vadd.f32 0.0, %v2566
        %2568 = vmatmul.f32.gmra.mxu0 %v2463
        %v2569 = vpop.f32.mrf.mxu0
        %v2570 = vadd.f32 0.0, %v2569
        %2571 = vmatmul.f32.gmra.mxu0 %v2464
        %v2572 = vpop.f32.mrf.mxu0
        %v2573 = vadd.f32 0.0, %v2572
        %2574 = vmatmul.f32.gmra.mxu0 %v2465
        %v2575 = vpop.f32.mrf.mxu0
        %v2576 = vadd.f32 0.0, %v2575
        %2577 = vmatmul.f32.gmra.mxu0 %v2466
        %v2578 = vpop.f32.mrf.mxu0
        %v2579 = vadd.f32 0.0, %v2578
        %2580 = vmatmul.f32.gmra.mxu0 %v2467
        %v2581 = vpop.f32.mrf.mxu0
        %v2582 = vadd.f32 0.0, %v2581
        %2583 = vmatmul.f32.gmra.mxu0 %v2468
        %v2584 = vpop.f32.mrf.mxu0
        %v2585 = vadd.f32 0.0, %v2584
        %2586 = vmatmul.f32.gmra.mxu0 %v2469
        %v2587 = vpop.f32.mrf.mxu0
        %v2588 = vadd.f32 0.0, %v2587
        %2589 = vmatmul.f32.gmra.mxu0 %v2470
        %v2590 = vpop.f32.mrf.mxu0
        %v2591 = vadd.f32 0.0, %v2590
        %2592 = vmatmul.f32.gmra.mxu0 %v2471
        %v2593 = vpop.f32.mrf.mxu0
        %v2594 = vadd.f32 0.0, %v2593
        %2595 = vmatmul.f32.gmra.mxu0 %v2472
        %v2596 = vpop.f32.mrf.mxu0
        %v2597 = vadd.f32 0.0, %v2596
        %2598 = vmatmul.f32.gmra.mxu0 %v2473
        %v2599 = vpop.f32.mrf.mxu0
        %v2600 = vadd.f32 0.0, %v2599
        %2601 = vmatmul.f32.gmra.mxu0 %v2474
        %v2602 = vpop.f32.mrf.mxu0
        %v2603 = vadd.f32 0.0, %v2602
        %2604 = vdwg.mxu0
        %v2605 = vadd.f32 %v2298, %v2493
        %v2606 = vadd.f32 %v2299, %v2558
        %v2607 = vadd.f32 %v2300, %v2496
        %v2608 = vadd.f32 %v2301, %v2561
        %v2609 = vadd.f32 %v2302, %v2499
        %v2610 = vadd.f32 %v2303, %v2564
        %v2611 = vadd.f32 %v2304, %v2502
        %v2612 = vadd.f32 %v2305, %v2567
        %v2613 = vadd.f32 %v2306, %v2505
        %v2614 = vadd.f32 %v2307, %v2570
        %v2615 = vadd.f32 %v2308, %v2508
        %v2616 = vadd.f32 %v2309, %v2573
        %v2617 = vadd.f32 %v2310, %v2511
        %v2618 = vadd.f32 %v2311, %v2576
        %v2619 = vadd.f32 %v2312, %v2514
        %v2620 = vadd.f32 %v2313, %v2579
        %v2621 = vadd.f32 %v2314, %v2517
        %v2622 = vadd.f32 %v2315, %v2582
        %v2623 = vadd.f32 %v2316, %v2520
        %v2624 = vadd.f32 %v2317, %v2585
        %v2625 = vadd.f32 %v2318, %v2523
        %v2626 = vadd.f32 %v2319, %v2588
        %v2627 = vadd.f32 %v2320, %v2526
        %v2628 = vadd.f32 %v2321, %v2591
        %v2629 = vadd.f32 %v2322, %v2529
        %v2630 = vadd.f32 %v2323, %v2594
        %v2631 = vadd.f32 %v2324, %v2532
        %v2632 = vadd.f32 %v2325, %v2597
        %v2633 = vadd.f32 %v2326, %v2535
        %v2634 = vadd.f32 %v2327, %v2600
        %v2635 = vadd.f32 %v2328, %v2538
        %v2636 = vadd.f32 %v2329, %v2603
        %2637 = vrot.lane.b32.xlu0 %v251, 111
        %v2638 = vpop.permute.xlu0 %2637
        %2639 = vrot.lane.b32.xlu0 %v253, 111
        %v2640 = vpop.permute.xlu0 %2639
        %2641 = vrot.lane.b32.xlu0 %v255, 111
        %v2642 = vpop.permute.xlu0 %2641
        %2643 = vrot.lane.b32.xlu0 %v257, 111
        %v2644 = vpop.permute.xlu0 %2643
        %2645 = vrot.lane.b32.xlu0 %v259, 111
        %v2646 = vpop.permute.xlu0 %2645
        %2647 = vrot.lane.b32.xlu0 %v261, 111
        %v2648 = vpop.permute.xlu0 %2647
        %2649 = vrot.lane.b32.xlu0 %v263, 111
        %v2650 = vpop.permute.xlu0 %2649
        %2651 = vrot.lane.b32.xlu0 %v265, 111
        %v2652 = vpop.permute.xlu0 %2651
        %2653 = vrot.lane.b32.xlu0 %v267, 111
        %v2654 = vpop.permute.xlu0 %2653
        %2655 = vrot.lane.b32.xlu0 %v269, 111
        %v2656 = vpop.permute.xlu0 %2655
        %2657 = vrot.lane.b32.xlu0 %v271, 111
        %v2658 = vpop.permute.xlu0 %2657
        %2659 = vrot.lane.b32.xlu0 %v273, 111
        %v2660 = vpop.permute.xlu0 %2659
        %2661 = vrot.lane.b32.xlu0 %v275, 111
        %v2662 = vpop.permute.xlu0 %2661
        %2663 = vrot.lane.b32.xlu0 %v277, 111
        %v2664 = vpop.permute.xlu0 %2663
        %2665 = vrot.lane.b32.xlu0 %v279, 111
        %v2666 = vpop.permute.xlu0 %2665
        %2667 = vrot.lane.b32.xlu0 %v281, 111
        %v2668 = vpop.permute.xlu0 %2667
        %2669 = vrot.lane.b32.xlu0 %v252, 111
        %v2670 = vpop.permute.xlu0 %2669
        %2671 = vrot.lane.b32.xlu0 %v254, 111
        %v2672 = vpop.permute.xlu0 %2671
        %2673 = vrot.lane.b32.xlu0 %v256, 111
        %v2674 = vpop.permute.xlu0 %2673
        %2675 = vrot.lane.b32.xlu0 %v258, 111
        %v2676 = vpop.permute.xlu0 %2675
        %2677 = vrot.lane.b32.xlu0 %v260, 111
        %v2678 = vpop.permute.xlu0 %2677
        %2679 = vrot.lane.b32.xlu0 %v262, 111
        %v2680 = vpop.permute.xlu0 %2679
        %2681 = vrot.lane.b32.xlu0 %v264, 111
        %v2682 = vpop.permute.xlu0 %2681
        %2683 = vrot.lane.b32.xlu0 %v266, 111
        %v2684 = vpop.permute.xlu0 %2683
        %2685 = vrot.lane.b32.xlu0 %v268, 111
        %v2686 = vpop.permute.xlu0 %2685
        %2687 = vrot.lane.b32.xlu0 %v270, 111
        %v2688 = vpop.permute.xlu0 %2687
        %2689 = vrot.lane.b32.xlu0 %v272, 111
        %v2690 = vpop.permute.xlu0 %2689
        %2691 = vrot.lane.b32.xlu0 %v274, 111
        %v2692 = vpop.permute.xlu0 %2691
        %2693 = vrot.lane.b32.xlu0 %v276, 111
        %v2694 = vpop.permute.xlu0 %2693
        %2695 = vrot.lane.b32.xlu0 %v278, 111
        %v2696 = vpop.permute.xlu0 %2695
        %2697 = vrot.lane.b32.xlu0 %v280, 111
        %v2698 = vpop.permute.xlu0 %2697
        %2699 = vrot.lane.b32.xlu0 %v282, 111
        %v2700 = vpop.permute.xlu0 %2699
        %vm2701 = vcmp.lt.s32.totalorder %v284, 111
        %v2702 = vsel %vm2701, %v2638, %v2670
        %v2703 = vsel %vm2701, %v2640, %v2672
        %v2704 = vsel %vm2701, %v2642, %v2674
        %v2705 = vsel %vm2701, %v2644, %v2676
        %v2706 = vsel %vm2701, %v2646, %v2678
        %v2707 = vsel %vm2701, %v2648, %v2680
        %v2708 = vsel %vm2701, %v2650, %v2682
        %v2709 = vsel %vm2701, %v2652, %v2684
        %v2710 = vsel %vm2701, %v2654, %v2686
        %v2711 = vsel %vm2701, %v2656, %v2688
        %v2712 = vsel %vm2701, %v2658, %v2690
        %v2713 = vsel %vm2701, %v2660, %v2692
        %v2714 = vsel %vm2701, %v2662, %v2694
        %v2715 = vsel %vm2701, %v2664, %v2696
        %v2716 = vsel %vm2701, %v2666, %v2698
        %v2717 = vsel %vm2701, %v2668, %v2700
        %v2718 = vsel %vm2701, %v2670, %v2638
        %v2719 = vsel %vm2701, %v2672, %v2640
        %v2720 = vsel %vm2701, %v2674, %v2642
        %v2721 = vsel %vm2701, %v2676, %v2644
        %v2722 = vsel %vm2701, %v2678, %v2646
        %v2723 = vsel %vm2701, %v2680, %v2648
        %v2724 = vsel %vm2701, %v2682, %v2650
        %v2725 = vsel %vm2701, %v2684, %v2652
        %v2726 = vsel %vm2701, %v2686, %v2654
        %v2727 = vsel %vm2701, %v2688, %v2656
        %v2728 = vsel %vm2701, %v2690, %v2658
        %v2729 = vsel %vm2701, %v2692, %v2660
        %v2730 = vsel %vm2701, %v2694, %v2662
        %v2731 = vsel %vm2701, %v2696, %v2664
        %v2732 = vsel %vm2701, %v2698, %v2666
        %v2733 = vsel %vm2701, %v2700, %v2668
        %v2734 = vmul.f32 %v2702, %v372
        %v2735 = vmul.f32 %v2718, %v373
        %v2736 = vmul.f32 %v2703, %v372
        %v2737 = vmul.f32 %v2719, %v373
        %v2738 = vmul.f32 %v2704, %v372
        %v2739 = vmul.f32 %v2720, %v373
        %v2740 = vmul.f32 %v2705, %v372
        %v2741 = vmul.f32 %v2721, %v373
        %v2742 = vmul.f32 %v2706, %v372
        %v2743 = vmul.f32 %v2722, %v373
        %v2744 = vmul.f32 %v2707, %v372
        %v2745 = vmul.f32 %v2723, %v373
        %v2746 = vmul.f32 %v2708, %v372
        %v2747 = vmul.f32 %v2724, %v373
        %v2748 = vmul.f32 %v2709, %v372
        %v2749 = vmul.f32 %v2725, %v373
        %v2750 = vmul.f32 %v2710, %v372
        %v2751 = vmul.f32 %v2726, %v373
        %v2752 = vmul.f32 %v2711, %v372
        %v2753 = vmul.f32 %v2727, %v373
        %v2754 = vmul.f32 %v2712, %v372
        %v2755 = vmul.f32 %v2728, %v373
        %v2756 = vmul.f32 %v2713, %v372
        %v2757 = vmul.f32 %v2729, %v373
        %v2758 = vmul.f32 %v2714, %v372
        %v2759 = vmul.f32 %v2730, %v373
        %v2760 = vmul.f32 %v2715, %v372
        %v2761 = vmul.f32 %v2731, %v373
        %v2762 = vmul.f32 %v2716, %v372
        %v2763 = vmul.f32 %v2732, %v373
        %v2764 = vmul.f32 %v2717, %v372
        %v2765 = vmul.f32 %v2733, %v373
        %v2766 = vld [vmem:[#allocation5 + $0x400] sm:$0xff]
        %v2767 = vld [vmem:[#allocation5 + $0x408] sm:$0xff]
        %v2768 = vld [vmem:[#allocation5 + $0x410] sm:$0xff]
        %v2769 = vld [vmem:[#allocation5 + $0x418] sm:$0xff]
        %v2770 = vld [vmem:[#allocation5 + $0x420] sm:$0xff]
        %v2771 = vld [vmem:[#allocation5 + $0x428] sm:$0xff]
        %v2772 = vld [vmem:[#allocation5 + $0x430] sm:$0xff]
        %v2773 = vld [vmem:[#allocation5 + $0x438] sm:$0xff]
        %v2774 = vld [vmem:[#allocation5 + $0x440] sm:$0xff]
        %v2775 = vld [vmem:[#allocation5 + $0x448] sm:$0xff]
        %v2776 = vld [vmem:[#allocation5 + $0x450] sm:$0xff]
        %v2777 = vld [vmem:[#allocation5 + $0x458] sm:$0xff]
        %v2778 = vld [vmem:[#allocation5 + $0x460] sm:$0xff]
        %v2779 = vld [vmem:[#allocation5 + $0x468] sm:$0xff]
        %v2780 = vld [vmem:[#allocation5 + $0x470] sm:$0xff]
        %v2781 = vld [vmem:[#allocation5 + $0x478] sm:$0xff]
        %2782 = vmatpush.msra.mxu0 %v2764
        %2783 = vmatpush.msra.mxu0 %v2762
        %2784 = vmatpush.msra.mxu0 %v2760
        %2785 = vmatpush.msra.mxu0 %v2758
        %2786 = vmatpush.msra.mxu0 %v2756
        %2787 = vmatpush.msra.mxu0 %v2754
        %2788 = vmatpush.msra.mxu0 %v2752
        %2789 = vmatpush.msra.mxu0 %v2750
        %2790 = vmatpush.msra.mxu0 %v2748
        %2791 = vmatpush.msra.mxu0 %v2746
        %2792 = vmatpush.msra.mxu0 %v2744
        %2793 = vmatpush.msra.mxu0 %v2742
        %2794 = vmatpush.msra.mxu0 %v2740
        %2795 = vmatpush.msra.mxu0 %v2738
        %2796 = vmatpush.msra.mxu0 %v2736
        %2797 = vmatpush.msra.mxu0 %v2734
        %2798 = vmatmul.f32.gmra.mxu0 %v2766
        %v2799 = vpop.f32.mrf.mxu0
        %v2800 = vadd.f32 0.0, %v2799
        %2801 = vmatmul.f32.gmra.mxu0 %v2767
        %v2802 = vpop.f32.mrf.mxu0
        %v2803 = vadd.f32 0.0, %v2802
        %2804 = vmatmul.f32.gmra.mxu0 %v2768
        %v2805 = vpop.f32.mrf.mxu0
        %v2806 = vadd.f32 0.0, %v2805
        %2807 = vmatmul.f32.gmra.mxu0 %v2769
        %v2808 = vpop.f32.mrf.mxu0
        %v2809 = vadd.f32 0.0, %v2808
        %2810 = vmatmul.f32.gmra.mxu0 %v2770
        %v2811 = vpop.f32.mrf.mxu0
        %v2812 = vadd.f32 0.0, %v2811
        %2813 = vmatmul.f32.gmra.mxu0 %v2771
        %v2814 = vpop.f32.mrf.mxu0
        %v2815 = vadd.f32 0.0, %v2814
        %2816 = vmatmul.f32.gmra.mxu0 %v2772
        %v2817 = vpop.f32.mrf.mxu0
        %v2818 = vadd.f32 0.0, %v2817
        %2819 = vmatmul.f32.gmra.mxu0 %v2773
        %v2820 = vpop.f32.mrf.mxu0
        %v2821 = vadd.f32 0.0, %v2820
        %2822 = vmatmul.f32.gmra.mxu0 %v2774
        %v2823 = vpop.f32.mrf.mxu0
        %v2824 = vadd.f32 0.0, %v2823
        %2825 = vmatmul.f32.gmra.mxu0 %v2775
        %v2826 = vpop.f32.mrf.mxu0
        %v2827 = vadd.f32 0.0, %v2826
        %2828 = vmatmul.f32.gmra.mxu0 %v2776
        %v2829 = vpop.f32.mrf.mxu0
        %v2830 = vadd.f32 0.0, %v2829
        %2831 = vmatmul.f32.gmra.mxu0 %v2777
        %v2832 = vpop.f32.mrf.mxu0
        %v2833 = vadd.f32 0.0, %v2832
        %2834 = vmatmul.f32.gmra.mxu0 %v2778
        %v2835 = vpop.f32.mrf.mxu0
        %v2836 = vadd.f32 0.0, %v2835
        %2837 = vmatmul.f32.gmra.mxu0 %v2779
        %v2838 = vpop.f32.mrf.mxu0
        %v2839 = vadd.f32 0.0, %v2838
        %2840 = vmatmul.f32.gmra.mxu0 %v2780
        %v2841 = vpop.f32.mrf.mxu0
        %v2842 = vadd.f32 0.0, %v2841
        %2843 = vmatmul.f32.gmra.mxu0 %v2781
        %v2844 = vpop.f32.mrf.mxu0
        %v2845 = vadd.f32 0.0, %v2844
        %2846 = vdwg.mxu0
        %2847 = vmatpush.msra.mxu0 %v2765
        %2848 = vmatpush.msra.mxu0 %v2763
        %2849 = vmatpush.msra.mxu0 %v2761
        %2850 = vmatpush.msra.mxu0 %v2759
        %2851 = vmatpush.msra.mxu0 %v2757
        %2852 = vmatpush.msra.mxu0 %v2755
        %2853 = vmatpush.msra.mxu0 %v2753
        %2854 = vmatpush.msra.mxu0 %v2751
        %2855 = vmatpush.msra.mxu0 %v2749
        %2856 = vmatpush.msra.mxu0 %v2747
        %2857 = vmatpush.msra.mxu0 %v2745
        %2858 = vmatpush.msra.mxu0 %v2743
        %2859 = vmatpush.msra.mxu0 %v2741
        %2860 = vmatpush.msra.mxu0 %v2739
        %2861 = vmatpush.msra.mxu0 %v2737
        %2862 = vmatpush.msra.mxu0 %v2735
        %2863 = vmatmul.f32.gmra.mxu0 %v2766
        %v2864 = vpop.f32.mrf.mxu0
        %v2865 = vadd.f32 0.0, %v2864
        %2866 = vmatmul.f32.gmra.mxu0 %v2767
        %v2867 = vpop.f32.mrf.mxu0
        %v2868 = vadd.f32 0.0, %v2867
        %2869 = vmatmul.f32.gmra.mxu0 %v2768
        %v2870 = vpop.f32.mrf.mxu0
        %v2871 = vadd.f32 0.0, %v2870
        %2872 = vmatmul.f32.gmra.mxu0 %v2769
        %v2873 = vpop.f32.mrf.mxu0
        %v2874 = vadd.f32 0.0, %v2873
        %2875 = vmatmul.f32.gmra.mxu0 %v2770
        %v2876 = vpop.f32.mrf.mxu0
        %v2877 = vadd.f32 0.0, %v2876
        %2878 = vmatmul.f32.gmra.mxu0 %v2771
        %v2879 = vpop.f32.mrf.mxu0
        %v2880 = vadd.f32 0.0, %v2879
        %2881 = vmatmul.f32.gmra.mxu0 %v2772
        %v2882 = vpop.f32.mrf.mxu0
        %v2883 = vadd.f32 0.0, %v2882
        %2884 = vmatmul.f32.gmra.mxu0 %v2773
        %v2885 = vpop.f32.mrf.mxu0
        %v2886 = vadd.f32 0.0, %v2885
        %2887 = vmatmul.f32.gmra.mxu0 %v2774
        %v2888 = vpop.f32.mrf.mxu0
        %v2889 = vadd.f32 0.0, %v2888
        %2890 = vmatmul.f32.gmra.mxu0 %v2775
        %v2891 = vpop.f32.mrf.mxu0
        %v2892 = vadd.f32 0.0, %v2891
        %2893 = vmatmul.f32.gmra.mxu0 %v2776
        %v2894 = vpop.f32.mrf.mxu0
        %v2895 = vadd.f32 0.0, %v2894
        %2896 = vmatmul.f32.gmra.mxu0 %v2777
        %v2897 = vpop.f32.mrf.mxu0
        %v2898 = vadd.f32 0.0, %v2897
        %2899 = vmatmul.f32.gmra.mxu0 %v2778
        %v2900 = vpop.f32.mrf.mxu0
        %v2901 = vadd.f32 0.0, %v2900
        %2902 = vmatmul.f32.gmra.mxu0 %v2779
        %v2903 = vpop.f32.mrf.mxu0
        %v2904 = vadd.f32 0.0, %v2903
        %2905 = vmatmul.f32.gmra.mxu0 %v2780
        %v2906 = vpop.f32.mrf.mxu0
        %v2907 = vadd.f32 0.0, %v2906
        %2908 = vmatmul.f32.gmra.mxu0 %v2781
        %v2909 = vpop.f32.mrf.mxu0
        %v2910 = vadd.f32 0.0, %v2909
        %2911 = vdwg.mxu0
        %v2912 = vadd.f32 %v2605, %v2800
        %v2913 = vadd.f32 %v2606, %v2865
        %v2914 = vadd.f32 %v2607, %v2803
        %v2915 = vadd.f32 %v2608, %v2868
        %v2916 = vadd.f32 %v2609, %v2806
        %v2917 = vadd.f32 %v2610, %v2871
        %v2918 = vadd.f32 %v2611, %v2809
        %v2919 = vadd.f32 %v2612, %v2874
        %v2920 = vadd.f32 %v2613, %v2812
        %v2921 = vadd.f32 %v2614, %v2877
        %v2922 = vadd.f32 %v2615, %v2815
        %v2923 = vadd.f32 %v2616, %v2880
        %v2924 = vadd.f32 %v2617, %v2818
        %v2925 = vadd.f32 %v2618, %v2883
        %v2926 = vadd.f32 %v2619, %v2821
        %v2927 = vadd.f32 %v2620, %v2886
        %v2928 = vadd.f32 %v2621, %v2824
        %v2929 = vadd.f32 %v2622, %v2889
        %v2930 = vadd.f32 %v2623, %v2827
        %v2931 = vadd.f32 %v2624, %v2892
        %v2932 = vadd.f32 %v2625, %v2830
        %v2933 = vadd.f32 %v2626, %v2895
        %v2934 = vadd.f32 %v2627, %v2833
        %v2935 = vadd.f32 %v2628, %v2898
        %v2936 = vadd.f32 %v2629, %v2836
        %v2937 = vadd.f32 %v2630, %v2901
        %v2938 = vadd.f32 %v2631, %v2839
        %v2939 = vadd.f32 %v2632, %v2904
        %v2940 = vadd.f32 %v2633, %v2842
        %v2941 = vadd.f32 %v2634, %v2907
        %v2942 = vadd.f32 %v2635, %v2845
        %v2943 = vadd.f32 %v2636, %v2910
        %v2944 = vld [vmem:[%s3] sm:$0xff]
        %v2945 = vld [vmem:[%s3 + $0x8] sm:$0xff]
        %v2946 = vld [vmem:[%s3 + $0x10] sm:$0xff]
        %v2947 = vld [vmem:[%s3 + $0x18] sm:$0xff]
        %v2948 = vld [vmem:[%s3 + $0x20] sm:$0xff]
        %v2949 = vld [vmem:[%s3 + $0x28] sm:$0xff]
        %v2950 = vld [vmem:[%s3 + $0x30] sm:$0xff]
        %v2951 = vld [vmem:[%s3 + $0x38] sm:$0xff]
        %v2952 = vld [vmem:[%s3 + $0x40] sm:$0xff]
        %v2953 = vld [vmem:[%s3 + $0x48] sm:$0xff]
        %v2954 = vld [vmem:[%s3 + $0x50] sm:$0xff]
        %v2955 = vld [vmem:[%s3 + $0x58] sm:$0xff]
        %v2956 = vld [vmem:[%s3 + $0x60] sm:$0xff]
        %v2957 = vld [vmem:[%s3 + $0x68] sm:$0xff]
        %v2958 = vld [vmem:[%s3 + $0x70] sm:$0xff]
        %v2959 = vld [vmem:[%s3 + $0x78] sm:$0xff]
        %2961 = vset.pattern.permute.xlu0 0
        %2962 = vperm.xlu0 %2961, %v2944
        %v2963 = vpop.permute.xlu0 %2962
        %2966 = vset.pattern.permute.xlu0 0
        %2967 = vperm.xlu0 %2966, %v2945
        %v2968 = vpop.permute.xlu0 %2967
        %2971 = vset.pattern.permute.xlu0 0
        %2972 = vperm.xlu0 %2971, %v2946
        %v2973 = vpop.permute.xlu0 %2972
        %2976 = vset.pattern.permute.xlu0 0
        %2977 = vperm.xlu0 %2976, %v2947
        %v2978 = vpop.permute.xlu0 %2977
        %2981 = vset.pattern.permute.xlu0 0
        %2982 = vperm.xlu0 %2981, %v2948
        %v2983 = vpop.permute.xlu0 %2982
        %2986 = vset.pattern.permute.xlu0 0
        %2987 = vperm.xlu0 %2986, %v2949
        %v2988 = vpop.permute.xlu0 %2987
        %2991 = vset.pattern.permute.xlu0 0
        %2992 = vperm.xlu0 %2991, %v2950
        %v2993 = vpop.permute.xlu0 %2992
        %2996 = vset.pattern.permute.xlu0 0
        %2997 = vperm.xlu0 %2996, %v2951
        %v2998 = vpop.permute.xlu0 %2997
        %3001 = vset.pattern.permute.xlu0 0
        %3002 = vperm.xlu0 %3001, %v2952
        %v3003 = vpop.permute.xlu0 %3002
        %3006 = vset.pattern.permute.xlu0 0
        %3007 = vperm.xlu0 %3006, %v2953
        %v3008 = vpop.permute.xlu0 %3007
        %3011 = vset.pattern.permute.xlu0 0
        %3012 = vperm.xlu0 %3011, %v2954
        %v3013 = vpop.permute.xlu0 %3012
        %3016 = vset.pattern.permute.xlu0 0
        %3017 = vperm.xlu0 %3016, %v2955
        %v3018 = vpop.permute.xlu0 %3017
        %3021 = vset.pattern.permute.xlu0 0
        %3022 = vperm.xlu0 %3021, %v2956
        %v3023 = vpop.permute.xlu0 %3022
        %3026 = vset.pattern.permute.xlu0 0
        %3027 = vperm.xlu0 %3026, %v2957
        %v3028 = vpop.permute.xlu0 %3027
        %3031 = vset.pattern.permute.xlu0 0
        %3032 = vperm.xlu0 %3031, %v2958
        %v3033 = vpop.permute.xlu0 %3032
        %3036 = vset.pattern.permute.xlu0 0
        %3037 = vperm.xlu0 %3036, %v2959
        %v3038 = vpop.permute.xlu0 %3037
        %v3040 = vadd.f32 %v2912, %v2963
        %v3041 = vadd.f32 %v2913, %v2963
        %v3042 = vadd.f32 %v2914, %v2968
        %v3043 = vadd.f32 %v2915, %v2968
        %v3044 = vadd.f32 %v2916, %v2973
        %v3045 = vadd.f32 %v2917, %v2973
        %v3046 = vadd.f32 %v2918, %v2978
        %v3047 = vadd.f32 %v2919, %v2978
        %v3048 = vadd.f32 %v2920, %v2983
        %v3049 = vadd.f32 %v2921, %v2983
        %v3050 = vadd.f32 %v2922, %v2988
        %v3051 = vadd.f32 %v2923, %v2988
        %v3052 = vadd.f32 %v2924, %v2993
        %v3053 = vadd.f32 %v2925, %v2993
        %v3054 = vadd.f32 %v2926, %v2998
        %v3055 = vadd.f32 %v2927, %v2998
        %v3056 = vadd.f32 %v2928, %v3003
        %v3057 = vadd.f32 %v2929, %v3003
        %v3058 = vadd.f32 %v2930, %v3008
        %v3059 = vadd.f32 %v2931, %v3008
        %v3060 = vadd.f32 %v2932, %v3013
        %v3061 = vadd.f32 %v2933, %v3013
        %v3062 = vadd.f32 %v2934, %v3018
        %v3063 = vadd.f32 %v2935, %v3018
        %v3064 = vadd.f32 %v2936, %v3023
        %v3065 = vadd.f32 %v2937, %v3023
        %v3066 = vadd.f32 %v2938, %v3028
        %v3067 = vadd.f32 %v2939, %v3028
        %v3068 = vadd.f32 %v2940, %v3033
        %v3069 = vadd.f32 %v2941, %v3033
        %v3070 = vadd.f32 %v2942, %v3038
        %v3071 = vadd.f32 %v2943, %v3038
        %v3072 = vmax.f32 %v3040, 0.0
        %v3073 = vmax.f32 %v3041, 0.0
        %v3074 = vmax.f32 %v3042, 0.0
        %v3075 = vmax.f32 %v3043, 0.0
        %v3076 = vmax.f32 %v3044, 0.0
        %v3077 = vmax.f32 %v3045, 0.0
        %v3078 = vmax.f32 %v3046, 0.0
        %v3079 = vmax.f32 %v3047, 0.0
        %v3080 = vmax.f32 %v3048, 0.0
        %v3081 = vmax.f32 %v3049, 0.0
        %v3082 = vmax.f32 %v3050, 0.0
        %v3083 = vmax.f32 %v3051, 0.0
        %v3084 = vmax.f32 %v3052, 0.0
        %v3085 = vmax.f32 %v3053, 0.0
        %v3086 = vmax.f32 %v3054, 0.0
        %v3087 = vmax.f32 %v3055, 0.0
        %v3088 = vmax.f32 %v3056, 0.0
        %v3089 = vmax.f32 %v3057, 0.0
        %v3090 = vmax.f32 %v3058, 0.0
        %v3091 = vmax.f32 %v3059, 0.0
        %v3092 = vmax.f32 %v3060, 0.0
        %v3093 = vmax.f32 %v3061, 0.0
        %v3094 = vmax.f32 %v3062, 0.0
        %v3095 = vmax.f32 %v3063, 0.0
        %v3096 = vmax.f32 %v3064, 0.0
        %v3097 = vmax.f32 %v3065, 0.0
        %v3098 = vmax.f32 %v3066, 0.0
        %v3099 = vmax.f32 %v3067, 0.0
        %v3100 = vmax.f32 %v3068, 0.0
        %v3101 = vmax.f32 %v3069, 0.0
        %v3102 = vmax.f32 %v3070, 0.0
        %v3103 = vmax.f32 %v3071, 0.0
        %3104 = vrot.lane.b32.xlu0 %v3072, 17
        %v3105 = vpop.permute.xlu0 %3104
        %3106 = vrot.lane.b32.xlu0 %v3074, 17
        %v3107 = vpop.permute.xlu0 %3106
        %3108 = vrot.lane.b32.xlu0 %v3076, 17
        %v3109 = vpop.permute.xlu0 %3108
        %3110 = vrot.lane.b32.xlu0 %v3078, 17
        %v3111 = vpop.permute.xlu0 %3110
        %3112 = vrot.lane.b32.xlu0 %v3080, 17
        %v3113 = vpop.permute.xlu0 %3112
        %3114 = vrot.lane.b32.xlu0 %v3082, 17
        %v3115 = vpop.permute.xlu0 %3114
        %3116 = vrot.lane.b32.xlu0 %v3084, 17
        %v3117 = vpop.permute.xlu0 %3116
        %3118 = vrot.lane.b32.xlu0 %v3086, 17
        %v3119 = vpop.permute.xlu0 %3118
        %3120 = vrot.lane.b32.xlu0 %v3088, 17
        %v3121 = vpop.permute.xlu0 %3120
        %3122 = vrot.lane.b32.xlu0 %v3090, 17
        %v3123 = vpop.permute.xlu0 %3122
        %3124 = vrot.lane.b32.xlu0 %v3092, 17
        %v3125 = vpop.permute.xlu0 %3124
        %3126 = vrot.lane.b32.xlu0 %v3094, 17
        %v3127 = vpop.permute.xlu0 %3126
        %3128 = vrot.lane.b32.xlu0 %v3096, 17
        %v3129 = vpop.permute.xlu0 %3128
        %3130 = vrot.lane.b32.xlu0 %v3098, 17
        %v3131 = vpop.permute.xlu0 %3130
        %3132 = vrot.lane.b32.xlu0 %v3100, 17
        %v3133 = vpop.permute.xlu0 %3132
        %3134 = vrot.lane.b32.xlu0 %v3102, 17
        %v3135 = vpop.permute.xlu0 %3134
        %3136 = vrot.lane.b32.xlu0 %v3073, 17
        %v3137 = vpop.permute.xlu0 %3136
        %3138 = vrot.lane.b32.xlu0 %v3075, 17
        %v3139 = vpop.permute.xlu0 %3138
        %3140 = vrot.lane.b32.xlu0 %v3077, 17
        %v3141 = vpop.permute.xlu0 %3140
        %3142 = vrot.lane.b32.xlu0 %v3079, 17
        %v3143 = vpop.permute.xlu0 %3142
        %3144 = vrot.lane.b32.xlu0 %v3081, 17
        %v3145 = vpop.permute.xlu0 %3144
        %3146 = vrot.lane.b32.xlu0 %v3083, 17
        %v3147 = vpop.permute.xlu0 %3146
        %3148 = vrot.lane.b32.xlu0 %v3085, 17
        %v3149 = vpop.permute.xlu0 %3148
        %3150 = vrot.lane.b32.xlu0 %v3087, 17
        %v3151 = vpop.permute.xlu0 %3150
        %3152 = vrot.lane.b32.xlu0 %v3089, 17
        %v3153 = vpop.permute.xlu0 %3152
        %3154 = vrot.lane.b32.xlu0 %v3091, 17
        %v3155 = vpop.permute.xlu0 %3154
        %3156 = vrot.lane.b32.xlu0 %v3093, 17
        %v3157 = vpop.permute.xlu0 %3156
        %3158 = vrot.lane.b32.xlu0 %v3095, 17
        %v3159 = vpop.permute.xlu0 %3158
        %3160 = vrot.lane.b32.xlu0 %v3097, 17
        %v3161 = vpop.permute.xlu0 %3160
        %3162 = vrot.lane.b32.xlu0 %v3099, 17
        %v3163 = vpop.permute.xlu0 %3162
        %3164 = vrot.lane.b32.xlu0 %v3101, 17
        %v3165 = vpop.permute.xlu0 %3164
        %3166 = vrot.lane.b32.xlu0 %v3103, 17
        %v3167 = vpop.permute.xlu0 %3166
        %v3168 = vsel %vm438, %v3105, %v3137
        %v3169 = vsel %vm438, %v3107, %v3139
        %v3170 = vsel %vm438, %v3109, %v3141
        %v3171 = vsel %vm438, %v3111, %v3143
        %v3172 = vsel %vm438, %v3113, %v3145
        %v3173 = vsel %vm438, %v3115, %v3147
        %v3174 = vsel %vm438, %v3117, %v3149
        %v3175 = vsel %vm438, %v3119, %v3151
        %v3176 = vsel %vm438, %v3121, %v3153
        %v3177 = vsel %vm438, %v3123, %v3155
        %v3178 = vsel %vm438, %v3125, %v3157
        %v3179 = vsel %vm438, %v3127, %v3159
        %v3180 = vsel %vm438, %v3129, %v3161
        %v3181 = vsel %vm438, %v3131, %v3163
        %v3182 = vsel %vm438, %v3133, %v3165
        %v3183 = vsel %vm438, %v3135, %v3167
        %v3184 = vsel %vm438, %v3137, %v3105
        %v3185 = vsel %vm438, %v3139, %v3107
        %v3186 = vsel %vm438, %v3141, %v3109
        %v3187 = vsel %vm438, %v3143, %v3111
        %v3188 = vsel %vm438, %v3145, %v3113
        %v3189 = vsel %vm438, %v3147, %v3115
        %v3190 = vsel %vm438, %v3149, %v3117
        %v3191 = vsel %vm438, %v3151, %v3119
        %v3192 = vsel %vm438, %v3153, %v3121
        %v3193 = vsel %vm438, %v3155, %v3123
        %v3194 = vsel %vm438, %v3157, %v3125
        %v3195 = vsel %vm438, %v3159, %v3127
        %v3196 = vsel %vm438, %v3161, %v3129
        %v3197 = vsel %vm438, %v3163, %v3131
        %v3198 = vsel %vm438, %v3165, %v3133
        %v3199 = vsel %vm438, %v3167, %v3135
        %v3200 = vmul.f32 %v3184, %v318
        %v3201 = vmul.f32 %v3168, %v319
        %v3202 = vmul.f32 %v3185, %v318
        %v3203 = vmul.f32 %v3169, %v319
        %v3204 = vmul.f32 %v3186, %v318
        %v3205 = vmul.f32 %v3170, %v319
        %v3206 = vmul.f32 %v3187, %v318
        %v3207 = vmul.f32 %v3171, %v319
        %v3208 = vmul.f32 %v3188, %v318
        %v3209 = vmul.f32 %v3172, %v319
        %v3210 = vmul.f32 %v3189, %v318
        %v3211 = vmul.f32 %v3173, %v319
        %v3212 = vmul.f32 %v3190, %v318
        %v3213 = vmul.f32 %v3174, %v319
        %v3214 = vmul.f32 %v3191, %v318
        %v3215 = vmul.f32 %v3175, %v319
        %v3216 = vmul.f32 %v3192, %v318
        %v3217 = vmul.f32 %v3176, %v319
        %v3218 = vmul.f32 %v3193, %v318
        %v3219 = vmul.f32 %v3177, %v319
        %v3220 = vmul.f32 %v3194, %v318
        %v3221 = vmul.f32 %v3178, %v319
        %v3222 = vmul.f32 %v3195, %v318
        %v3223 = vmul.f32 %v3179, %v319
        %v3224 = vmul.f32 %v3196, %v318
        %v3225 = vmul.f32 %v3180, %v319
        %v3226 = vmul.f32 %v3197, %v318
        %v3227 = vmul.f32 %v3181, %v319
        %v3228 = vmul.f32 %v3198, %v318
        %v3229 = vmul.f32 %v3182, %v319
        %v3230 = vmul.f32 %v3199, %v318
        %v3231 = vmul.f32 %v3183, %v319
        %v3232 = vld [vmem:[#allocation7] sm:$0xff]
        %v3233 = vld [vmem:[#allocation7 + $0x8] sm:$0xff]
        %v3234 = vld [vmem:[#allocation7 + $0x10] sm:$0xff]
        %v3235 = vld [vmem:[#allocation7 + $0x18] sm:$0xff]
        %v3236 = vld [vmem:[#allocation7 + $0x20] sm:$0xff]
        %v3237 = vld [vmem:[#allocation7 + $0x28] sm:$0xff]
        %v3238 = vld [vmem:[#allocation7 + $0x30] sm:$0xff]
        %v3239 = vld [vmem:[#allocation7 + $0x38] sm:$0xff]
        %v3240 = vld [vmem:[#allocation7 + $0x40] sm:$0xff]
        %v3241 = vld [vmem:[#allocation7 + $0x48] sm:$0xff]
        %v3242 = vld [vmem:[#allocation7 + $0x50] sm:$0xff]
        %v3243 = vld [vmem:[#allocation7 + $0x58] sm:$0xff]
        %v3244 = vld [vmem:[#allocation7 + $0x60] sm:$0xff]
        %v3245 = vld [vmem:[#allocation7 + $0x68] sm:$0xff]
        %v3246 = vld [vmem:[#allocation7 + $0x70] sm:$0xff]
        %v3247 = vld [vmem:[#allocation7 + $0x78] sm:$0xff]
        %3248 = vrot.lane.b32.xlu0 %v3072, 16
        %v3249 = vpop.permute.xlu0 %3248
        %3250 = vrot.lane.b32.xlu0 %v3074, 16
        %v3251 = vpop.permute.xlu0 %3250
        %3252 = vrot.lane.b32.xlu0 %v3076, 16
        %v3253 = vpop.permute.xlu0 %3252
        %3254 = vrot.lane.b32.xlu0 %v3078, 16
        %v3255 = vpop.permute.xlu0 %3254
        %3256 = vrot.lane.b32.xlu0 %v3080, 16
        %v3257 = vpop.permute.xlu0 %3256
        %3258 = vrot.lane.b32.xlu0 %v3082, 16
        %v3259 = vpop.permute.xlu0 %3258
        %3260 = vrot.lane.b32.xlu0 %v3084, 16
        %v3261 = vpop.permute.xlu0 %3260
        %3262 = vrot.lane.b32.xlu0 %v3086, 16
        %v3263 = vpop.permute.xlu0 %3262
        %3264 = vrot.lane.b32.xlu0 %v3088, 16
        %v3265 = vpop.permute.xlu0 %3264
        %3266 = vrot.lane.b32.xlu0 %v3090, 16
        %v3267 = vpop.permute.xlu0 %3266
        %3268 = vrot.lane.b32.xlu0 %v3092, 16
        %v3269 = vpop.permute.xlu0 %3268
        %3270 = vrot.lane.b32.xlu0 %v3094, 16
        %v3271 = vpop.permute.xlu0 %3270
        %3272 = vrot.lane.b32.xlu0 %v3096, 16
        %v3273 = vpop.permute.xlu0 %3272
        %3274 = vrot.lane.b32.xlu0 %v3098, 16
        %v3275 = vpop.permute.xlu0 %3274
        %3276 = vrot.lane.b32.xlu0 %v3100, 16
        %v3277 = vpop.permute.xlu0 %3276
        %3278 = vrot.lane.b32.xlu0 %v3102, 16
        %v3279 = vpop.permute.xlu0 %3278
        %3280 = vrot.lane.b32.xlu0 %v3073, 16
        %v3281 = vpop.permute.xlu0 %3280
        %3282 = vrot.lane.b32.xlu0 %v3075, 16
        %v3283 = vpop.permute.xlu0 %3282
        %3284 = vrot.lane.b32.xlu0 %v3077, 16
        %v3285 = vpop.permute.xlu0 %3284
        %3286 = vrot.lane.b32.xlu0 %v3079, 16
        %v3287 = vpop.permute.xlu0 %3286
        %3288 = vrot.lane.b32.xlu0 %v3081, 16
        %v3289 = vpop.permute.xlu0 %3288
        %3290 = vrot.lane.b32.xlu0 %v3083, 16
        %v3291 = vpop.permute.xlu0 %3290
        %3292 = vrot.lane.b32.xlu0 %v3085, 16
        %v3293 = vpop.permute.xlu0 %3292
        %3294 = vrot.lane.b32.xlu0 %v3087, 16
        %v3295 = vpop.permute.xlu0 %3294
        %3296 = vrot.lane.b32.xlu0 %v3089, 16
        %v3297 = vpop.permute.xlu0 %3296
        %3298 = vrot.lane.b32.xlu0 %v3091, 16
        %v3299 = vpop.permute.xlu0 %3298
        %3300 = vrot.lane.b32.xlu0 %v3093, 16
        %v3301 = vpop.permute.xlu0 %3300
        %3302 = vrot.lane.b32.xlu0 %v3095, 16
        %v3303 = vpop.permute.xlu0 %3302
        %3304 = vrot.lane.b32.xlu0 %v3097, 16
        %v3305 = vpop.permute.xlu0 %3304
        %3306 = vrot.lane.b32.xlu0 %v3099, 16
        %v3307 = vpop.permute.xlu0 %3306
        %3308 = vrot.lane.b32.xlu0 %v3101, 16
        %v3309 = vpop.permute.xlu0 %3308
        %3310 = vrot.lane.b32.xlu0 %v3103, 16
        %v3311 = vpop.permute.xlu0 %3310
        %v3312 = vsel %vm583, %v3249, %v3281
        %v3313 = vsel %vm583, %v3251, %v3283
        %v3314 = vsel %vm583, %v3253, %v3285
        %v3315 = vsel %vm583, %v3255, %v3287
        %v3316 = vsel %vm583, %v3257, %v3289
        %v3317 = vsel %vm583, %v3259, %v3291
        %v3318 = vsel %vm583, %v3261, %v3293
        %v3319 = vsel %vm583, %v3263, %v3295
        %v3320 = vsel %vm583, %v3265, %v3297
        %v3321 = vsel %vm583, %v3267, %v3299
        %v3322 = vsel %vm583, %v3269, %v3301
        %v3323 = vsel %vm583, %v3271, %v3303
        %v3324 = vsel %vm583, %v3273, %v3305
        %v3325 = vsel %vm583, %v3275, %v3307
        %v3326 = vsel %vm583, %v3277, %v3309
        %v3327 = vsel %vm583, %v3279, %v3311
        %v3328 = vsel %vm583, %v3281, %v3249
        %v3329 = vsel %vm583, %v3283, %v3251
        %v3330 = vsel %vm583, %v3285, %v3253
        %v3331 = vsel %vm583, %v3287, %v3255
        %v3332 = vsel %vm583, %v3289, %v3257
        %v3333 = vsel %vm583, %v3291, %v3259
        %v3334 = vsel %vm583, %v3293, %v3261
        %v3335 = vsel %vm583, %v3295, %v3263
        %v3336 = vsel %vm583, %v3297, %v3265
        %v3337 = vsel %vm583, %v3299, %v3267
        %v3338 = vsel %vm583, %v3301, %v3269
        %v3339 = vsel %vm583, %v3303, %v3271
        %v3340 = vsel %vm583, %v3305, %v3273
        %v3341 = vsel %vm583, %v3307, %v3275
        %v3342 = vsel %vm583, %v3309, %v3277
        %v3343 = vsel %vm583, %v3311, %v3279
        %v3344 = vmul.f32 %v3328, %v324
        %v3345 = vmul.f32 %v3312, %v325
        %v3346 = vmul.f32 %v3329, %v324
        %v3347 = vmul.f32 %v3313, %v325
        %v3348 = vmul.f32 %v3330, %v324
        %v3349 = vmul.f32 %v3314, %v325
        %v3350 = vmul.f32 %v3331, %v324
        %v3351 = vmul.f32 %v3315, %v325
        %v3352 = vmul.f32 %v3332, %v324
        %v3353 = vmul.f32 %v3316, %v325
        %v3354 = vmul.f32 %v3333, %v324
        %v3355 = vmul.f32 %v3317, %v325
        %v3356 = vmul.f32 %v3334, %v324
        %v3357 = vmul.f32 %v3318, %v325
        %v3358 = vmul.f32 %v3335, %v324
        %v3359 = vmul.f32 %v3319, %v325
        %v3360 = vmul.f32 %v3336, %v324
        %v3361 = vmul.f32 %v3320, %v325
        %v3362 = vmul.f32 %v3337, %v324
        %v3363 = vmul.f32 %v3321, %v325
        %v3364 = vmul.f32 %v3338, %v324
        %v3365 = vmul.f32 %v3322, %v325
        %v3366 = vmul.f32 %v3339, %v324
        %v3367 = vmul.f32 %v3323, %v325
        %v3368 = vmul.f32 %v3340, %v324
        %v3369 = vmul.f32 %v3324, %v325
        %v3370 = vmul.f32 %v3341, %v324
        %v3371 = vmul.f32 %v3325, %v325
        %v3372 = vmul.f32 %v3342, %v324
        %v3373 = vmul.f32 %v3326, %v325
        %v3374 = vmul.f32 %v3343, %v324
        %v3375 = vmul.f32 %v3327, %v325
        %v3376 = vld [vmem:[#allocation7 + $0x80] sm:$0xff]
        %v3377 = vld [vmem:[#allocation7 + $0x88] sm:$0xff]
        %v3378 = vld [vmem:[#allocation7 + $0x90] sm:$0xff]
        %v3379 = vld [vmem:[#allocation7 + $0x98] sm:$0xff]
        %v3380 = vld [vmem:[#allocation7 + $0xa0] sm:$0xff]
        %v3381 = vld [vmem:[#allocation7 + $0xa8] sm:$0xff]
        %v3382 = vld [vmem:[#allocation7 + $0xb0] sm:$0xff]
        %v3383 = vld [vmem:[#allocation7 + $0xb8] sm:$0xff]
        %v3384 = vld [vmem:[#allocation7 + $0xc0] sm:$0xff]
        %v3385 = vld [vmem:[#allocation7 + $0xc8] sm:$0xff]
        %v3386 = vld [vmem:[#allocation7 + $0xd0] sm:$0xff]
        %v3387 = vld [vmem:[#allocation7 + $0xd8] sm:$0xff]
        %v3388 = vld [vmem:[#allocation7 + $0xe0] sm:$0xff]
        %v3389 = vld [vmem:[#allocation7 + $0xe8] sm:$0xff]
        %v3390 = vld [vmem:[#allocation7 + $0xf0] sm:$0xff]
        %v3391 = vld [vmem:[#allocation7 + $0xf8] sm:$0xff]
        %3392 = vmatpush.msra.mxu0 %v3374
        %3393 = vmatpush.msra.mxu0 %v3372
        %3394 = vmatpush.msra.mxu0 %v3370
        %3395 = vmatpush.msra.mxu0 %v3368
        %3396 = vmatpush.msra.mxu0 %v3366
        %3397 = vmatpush.msra.mxu0 %v3364
        %3398 = vmatpush.msra.mxu0 %v3362
        %3399 = vmatpush.msra.mxu0 %v3360
        %3400 = vmatpush.msra.mxu0 %v3358
        %3401 = vmatpush.msra.mxu0 %v3356
        %3402 = vmatpush.msra.mxu0 %v3354
        %3403 = vmatpush.msra.mxu0 %v3352
        %3404 = vmatpush.msra.mxu0 %v3350
        %3405 = vmatpush.msra.mxu0 %v3348
        %3406 = vmatpush.msra.mxu0 %v3346
        %3407 = vmatpush.msra.mxu0 %v3344
        %3408 = vmatmul.f32.gmra.mxu0 %v3376
        %v3409 = vpop.f32.mrf.mxu0
        %v3410 = vadd.f32 0.0, %v3409
        %3411 = vmatmul.f32.gmra.mxu0 %v3377
        %v3412 = vpop.f32.mrf.mxu0
        %v3413 = vadd.f32 0.0, %v3412
        %3414 = vmatmul.f32.gmra.mxu0 %v3378
        %v3415 = vpop.f32.mrf.mxu0
        %v3416 = vadd.f32 0.0, %v3415
        %3417 = vmatmul.f32.gmra.mxu0 %v3379
        %v3418 = vpop.f32.mrf.mxu0
        %v3419 = vadd.f32 0.0, %v3418
        %3420 = vmatmul.f32.gmra.mxu0 %v3380
        %v3421 = vpop.f32.mrf.mxu0
        %v3422 = vadd.f32 0.0, %v3421
        %3423 = vmatmul.f32.gmra.mxu0 %v3381
        %v3424 = vpop.f32.mrf.mxu0
        %v3425 = vadd.f32 0.0, %v3424
        %3426 = vmatmul.f32.gmra.mxu0 %v3382
        %v3427 = vpop.f32.mrf.mxu0
        %v3428 = vadd.f32 0.0, %v3427
        %3429 = vmatmul.f32.gmra.mxu0 %v3383
        %v3430 = vpop.f32.mrf.mxu0
        %v3431 = vadd.f32 0.0, %v3430
        %3432 = vmatmul.f32.gmra.mxu0 %v3384
        %v3433 = vpop.f32.mrf.mxu0
        %v3434 = vadd.f32 0.0, %v3433
        %3435 = vmatmul.f32.gmra.mxu0 %v3385
        %v3436 = vpop.f32.mrf.mxu0
        %v3437 = vadd.f32 0.0, %v3436
        %3438 = vmatmul.f32.gmra.mxu0 %v3386
        %v3439 = vpop.f32.mrf.mxu0
        %v3440 = vadd.f32 0.0, %v3439
        %3441 = vmatmul.f32.gmra.mxu0 %v3387
        %v3442 = vpop.f32.mrf.mxu0
        %v3443 = vadd.f32 0.0, %v3442
        %3444 = vmatmul.f32.gmra.mxu0 %v3388
        %v3445 = vpop.f32.mrf.mxu0
        %v3446 = vadd.f32 0.0, %v3445
        %3447 = vmatmul.f32.gmra.mxu0 %v3389
        %v3448 = vpop.f32.mrf.mxu0
        %v3449 = vadd.f32 0.0, %v3448
        %3450 = vmatmul.f32.gmra.mxu0 %v3390
        %v3451 = vpop.f32.mrf.mxu0
        %v3452 = vadd.f32 0.0, %v3451
        %3453 = vmatmul.f32.gmra.mxu0 %v3391
        %v3454 = vpop.f32.mrf.mxu0
        %v3455 = vadd.f32 0.0, %v3454
        %3456 = vdwg.mxu0
        %3457 = vmatpush.msra.mxu0 %v3375
        %3458 = vmatpush.msra.mxu0 %v3373
        %3459 = vmatpush.msra.mxu0 %v3371
        %3460 = vmatpush.msra.mxu0 %v3369
        %3461 = vmatpush.msra.mxu0 %v3367
        %3462 = vmatpush.msra.mxu0 %v3365
        %3463 = vmatpush.msra.mxu0 %v3363
        %3464 = vmatpush.msra.mxu0 %v3361
        %3465 = vmatpush.msra.mxu0 %v3359
        %3466 = vmatpush.msra.mxu0 %v3357
        %3467 = vmatpush.msra.mxu0 %v3355
        %3468 = vmatpush.msra.mxu0 %v3353
        %3469 = vmatpush.msra.mxu0 %v3351
        %3470 = vmatpush.msra.mxu0 %v3349
        %3471 = vmatpush.msra.mxu0 %v3347
        %3472 = vmatpush.msra.mxu0 %v3345
        %3473 = vmatmul.f32.gmra.mxu0 %v3376
        %v3474 = vpop.f32.mrf.mxu0
        %v3475 = vadd.f32 0.0, %v3474
        %3476 = vmatmul.f32.gmra.mxu0 %v3377
        %v3477 = vpop.f32.mrf.mxu0
        %v3478 = vadd.f32 0.0, %v3477
        %3479 = vmatmul.f32.gmra.mxu0 %v3378
        %v3480 = vpop.f32.mrf.mxu0
        %v3481 = vadd.f32 0.0, %v3480
        %3482 = vmatmul.f32.gmra.mxu0 %v3379
        %v3483 = vpop.f32.mrf.mxu0
        %v3484 = vadd.f32 0.0, %v3483
        %3485 = vmatmul.f32.gmra.mxu0 %v3380
        %v3486 = vpop.f32.mrf.mxu0
        %v3487 = vadd.f32 0.0, %v3486
        %3488 = vmatmul.f32.gmra.mxu0 %v3381
        %v3489 = vpop.f32.mrf.mxu0
        %v3490 = vadd.f32 0.0, %v3489
        %3491 = vmatmul.f32.gmra.mxu0 %v3382
        %v3492 = vpop.f32.mrf.mxu0
        %v3493 = vadd.f32 0.0, %v3492
        %3494 = vmatmul.f32.gmra.mxu0 %v3383
        %v3495 = vpop.f32.mrf.mxu0
        %v3496 = vadd.f32 0.0, %v3495
        %3497 = vmatmul.f32.gmra.mxu0 %v3384
        %v3498 = vpop.f32.mrf.mxu0
        %v3499 = vadd.f32 0.0, %v3498
        %3500 = vmatmul.f32.gmra.mxu0 %v3385
        %v3501 = vpop.f32.mrf.mxu0
        %v3502 = vadd.f32 0.0, %v3501
        %3503 = vmatmul.f32.gmra.mxu0 %v3386
        %v3504 = vpop.f32.mrf.mxu0
        %v3505 = vadd.f32 0.0, %v3504
        %3506 = vmatmul.f32.gmra.mxu0 %v3387
        %v3507 = vpop.f32.mrf.mxu0
        %v3508 = vadd.f32 0.0, %v3507
        %3509 = vmatmul.f32.gmra.mxu0 %v3388
        %v3510 = vpop.f32.mrf.mxu0
        %v3511 = vadd.f32 0.0, %v3510
        %3512 = vmatmul.f32.gmra.mxu0 %v3389
        %v3513 = vpop.f32.mrf.mxu0
        %v3514 = vadd.f32 0.0, %v3513
        %3515 = vmatmul.f32.gmra.mxu0 %v3390
        %v3516 = vpop.f32.mrf.mxu0
        %v3517 = vadd.f32 0.0, %v3516
        %3518 = vmatmul.f32.gmra.mxu0 %v3391
        %v3519 = vpop.f32.mrf.mxu0
        %v3520 = vadd.f32 0.0, %v3519
        %3521 = vdwg.mxu0
        %3522 = vmatpush.msra.mxu0 %v3230
        %3523 = vmatpush.msra.mxu0 %v3228
        %3524 = vmatpush.msra.mxu0 %v3226
        %3525 = vmatpush.msra.mxu0 %v3224
        %3526 = vmatpush.msra.mxu0 %v3222
        %3527 = vmatpush.msra.mxu0 %v3220
        %3528 = vmatpush.msra.mxu0 %v3218
        %3529 = vmatpush.msra.mxu0 %v3216
        %3530 = vmatpush.msra.mxu0 %v3214
        %3531 = vmatpush.msra.mxu0 %v3212
        %3532 = vmatpush.msra.mxu0 %v3210
        %3533 = vmatpush.msra.mxu0 %v3208
        %3534 = vmatpush.msra.mxu0 %v3206
        %3535 = vmatpush.msra.mxu0 %v3204
        %3536 = vmatpush.msra.mxu0 %v3202
        %3537 = vmatpush.msra.mxu0 %v3200
        %3538 = vmatmul.f32.gmra.mxu0 %v3232
        %v3539 = vpop.f32.mrf.mxu0
        %v3540 = vadd.f32 %v3410, %v3539
        %3541 = vmatmul.f32.gmra.mxu0 %v3233
        %v3542 = vpop.f32.mrf.mxu0
        %v3543 = vadd.f32 %v3413, %v3542
        %3544 = vmatmul.f32.gmra.mxu0 %v3234
        %v3545 = vpop.f32.mrf.mxu0
        %v3546 = vadd.f32 %v3416, %v3545
        %3547 = vmatmul.f32.gmra.mxu0 %v3235
        %v3548 = vpop.f32.mrf.mxu0
        %v3549 = vadd.f32 %v3419, %v3548
        %3550 = vmatmul.f32.gmra.mxu0 %v3236
        %v3551 = vpop.f32.mrf.mxu0
        %v3552 = vadd.f32 %v3422, %v3551
        %3553 = vmatmul.f32.gmra.mxu0 %v3237
        %v3554 = vpop.f32.mrf.mxu0
        %v3555 = vadd.f32 %v3425, %v3554
        %3556 = vmatmul.f32.gmra.mxu0 %v3238
        %v3557 = vpop.f32.mrf.mxu0
        %v3558 = vadd.f32 %v3428, %v3557
        %3559 = vmatmul.f32.gmra.mxu0 %v3239
        %v3560 = vpop.f32.mrf.mxu0
        %v3561 = vadd.f32 %v3431, %v3560
        %3562 = vmatmul.f32.gmra.mxu0 %v3240
        %v3563 = vpop.f32.mrf.mxu0
        %v3564 = vadd.f32 %v3434, %v3563
        %3565 = vmatmul.f32.gmra.mxu0 %v3241
        %v3566 = vpop.f32.mrf.mxu0
        %v3567 = vadd.f32 %v3437, %v3566
        %3568 = vmatmul.f32.gmra.mxu0 %v3242
        %v3569 = vpop.f32.mrf.mxu0
        %v3570 = vadd.f32 %v3440, %v3569
        %3571 = vmatmul.f32.gmra.mxu0 %v3243
        %v3572 = vpop.f32.mrf.mxu0
        %v3573 = vadd.f32 %v3443, %v3572
        %3574 = vmatmul.f32.gmra.mxu0 %v3244
        %v3575 = vpop.f32.mrf.mxu0
        %v3576 = vadd.f32 %v3446, %v3575
        %3577 = vmatmul.f32.gmra.mxu0 %v3245
        %v3578 = vpop.f32.mrf.mxu0
        %v3579 = vadd.f32 %v3449, %v3578
        %3580 = vmatmul.f32.gmra.mxu0 %v3246
        %v3581 = vpop.f32.mrf.mxu0
        %v3582 = vadd.f32 %v3452, %v3581
        %3583 = vmatmul.f32.gmra.mxu0 %v3247
        %v3584 = vpop.f32.mrf.mxu0
        %v3585 = vadd.f32 %v3455, %v3584
        %3586 = vdwg.mxu0
        %3587 = vmatpush.msra.mxu0 %v3231
        %3588 = vmatpush.msra.mxu0 %v3229
        %3589 = vmatpush.msra.mxu0 %v3227
        %3590 = vmatpush.msra.mxu0 %v3225
        %3591 = vmatpush.msra.mxu0 %v3223
        %3592 = vmatpush.msra.mxu0 %v3221
        %3593 = vmatpush.msra.mxu0 %v3219
        %3594 = vmatpush.msra.mxu0 %v3217
        %3595 = vmatpush.msra.mxu0 %v3215
        %3596 = vmatpush.msra.mxu0 %v3213
        %3597 = vmatpush.msra.mxu0 %v3211
        %3598 = vmatpush.msra.mxu0 %v3209
        %3599 = vmatpush.msra.mxu0 %v3207
        %3600 = vmatpush.msra.mxu0 %v3205
        %3601 = vmatpush.msra.mxu0 %v3203
        %3602 = vmatpush.msra.mxu0 %v3201
        %3603 = vmatmul.f32.gmra.mxu0 %v3232
        %v3604 = vpop.f32.mrf.mxu0
        %v3605 = vadd.f32 %v3475, %v3604
        %3606 = vmatmul.f32.gmra.mxu0 %v3233
        %v3607 = vpop.f32.mrf.mxu0
        %v3608 = vadd.f32 %v3478, %v3607
        %3609 = vmatmul.f32.gmra.mxu0 %v3234
        %v3610 = vpop.f32.mrf.mxu0
        %v3611 = vadd.f32 %v3481, %v3610
        %3612 = vmatmul.f32.gmra.mxu0 %v3235
        %v3613 = vpop.f32.mrf.mxu0
        %v3614 = vadd.f32 %v3484, %v3613
        %3615 = vmatmul.f32.gmra.mxu0 %v3236
        %v3616 = vpop.f32.mrf.mxu0
        %v3617 = vadd.f32 %v3487, %v3616
        %3618 = vmatmul.f32.gmra.mxu0 %v3237
        %v3619 = vpop.f32.mrf.mxu0
        %v3620 = vadd.f32 %v3490, %v3619
        %3621 = vmatmul.f32.gmra.mxu0 %v3238
        %v3622 = vpop.f32.mrf.mxu0
        %v3623 = vadd.f32 %v3493, %v3622
        %3624 = vmatmul.f32.gmra.mxu0 %v3239
        %v3625 = vpop.f32.mrf.mxu0
        %v3626 = vadd.f32 %v3496, %v3625
        %3627 = vmatmul.f32.gmra.mxu0 %v3240
        %v3628 = vpop.f32.mrf.mxu0
        %v3629 = vadd.f32 %v3499, %v3628
        %3630 = vmatmul.f32.gmra.mxu0 %v3241
        %v3631 = vpop.f32.mrf.mxu0
        %v3632 = vadd.f32 %v3502, %v3631
        %3633 = vmatmul.f32.gmra.mxu0 %v3242
        %v3634 = vpop.f32.mrf.mxu0
        %v3635 = vadd.f32 %v3505, %v3634
        %3636 = vmatmul.f32.gmra.mxu0 %v3243
        %v3637 = vpop.f32.mrf.mxu0
        %v3638 = vadd.f32 %v3508, %v3637
        %3639 = vmatmul.f32.gmra.mxu0 %v3244
        %v3640 = vpop.f32.mrf.mxu0
        %v3641 = vadd.f32 %v3511, %v3640
        %3642 = vmatmul.f32.gmra.mxu0 %v3245
        %v3643 = vpop.f32.mrf.mxu0
        %v3644 = vadd.f32 %v3514, %v3643
        %3645 = vmatmul.f32.gmra.mxu0 %v3246
        %v3646 = vpop.f32.mrf.mxu0
        %v3647 = vadd.f32 %v3517, %v3646
        %3648 = vmatmul.f32.gmra.mxu0 %v3247
        %v3649 = vpop.f32.mrf.mxu0
        %v3650 = vadd.f32 %v3520, %v3649
        %3651 = vdwg.mxu0
        %3652 = vrot.lane.b32.xlu0 %v3072, 15
        %v3653 = vpop.permute.xlu0 %3652
        %3654 = vrot.lane.b32.xlu0 %v3074, 15
        %v3655 = vpop.permute.xlu0 %3654
        %3656 = vrot.lane.b32.xlu0 %v3076, 15
        %v3657 = vpop.permute.xlu0 %3656
        %3658 = vrot.lane.b32.xlu0 %v3078, 15
        %v3659 = vpop.permute.xlu0 %3658
        %3660 = vrot.lane.b32.xlu0 %v3080, 15
        %v3661 = vpop.permute.xlu0 %3660
        %3662 = vrot.lane.b32.xlu0 %v3082, 15
        %v3663 = vpop.permute.xlu0 %3662
        %3664 = vrot.lane.b32.xlu0 %v3084, 15
        %v3665 = vpop.permute.xlu0 %3664
        %3666 = vrot.lane.b32.xlu0 %v3086, 15
        %v3667 = vpop.permute.xlu0 %3666
        %3668 = vrot.lane.b32.xlu0 %v3088, 15
        %v3669 = vpop.permute.xlu0 %3668
        %3670 = vrot.lane.b32.xlu0 %v3090, 15
        %v3671 = vpop.permute.xlu0 %3670
        %3672 = vrot.lane.b32.xlu0 %v3092, 15
        %v3673 = vpop.permute.xlu0 %3672
        %3674 = vrot.lane.b32.xlu0 %v3094, 15
        %v3675 = vpop.permute.xlu0 %3674
        %3676 = vrot.lane.b32.xlu0 %v3096, 15
        %v3677 = vpop.permute.xlu0 %3676
        %3678 = vrot.lane.b32.xlu0 %v3098, 15
        %v3679 = vpop.permute.xlu0 %3678
        %3680 = vrot.lane.b32.xlu0 %v3100, 15
        %v3681 = vpop.permute.xlu0 %3680
        %3682 = vrot.lane.b32.xlu0 %v3102, 15
        %v3683 = vpop.permute.xlu0 %3682
        %3684 = vrot.lane.b32.xlu0 %v3073, 15
        %v3685 = vpop.permute.xlu0 %3684
        %3686 = vrot.lane.b32.xlu0 %v3075, 15
        %v3687 = vpop.permute.xlu0 %3686
        %3688 = vrot.lane.b32.xlu0 %v3077, 15
        %v3689 = vpop.permute.xlu0 %3688
        %3690 = vrot.lane.b32.xlu0 %v3079, 15
        %v3691 = vpop.permute.xlu0 %3690
        %3692 = vrot.lane.b32.xlu0 %v3081, 15
        %v3693 = vpop.permute.xlu0 %3692
        %3694 = vrot.lane.b32.xlu0 %v3083, 15
        %v3695 = vpop.permute.xlu0 %3694
        %3696 = vrot.lane.b32.xlu0 %v3085, 15
        %v3697 = vpop.permute.xlu0 %3696
        %3698 = vrot.lane.b32.xlu0 %v3087, 15
        %v3699 = vpop.permute.xlu0 %3698
        %3700 = vrot.lane.b32.xlu0 %v3089, 15
        %v3701 = vpop.permute.xlu0 %3700
        %3702 = vrot.lane.b32.xlu0 %v3091, 15
        %v3703 = vpop.permute.xlu0 %3702
        %3704 = vrot.lane.b32.xlu0 %v3093, 15
        %v3705 = vpop.permute.xlu0 %3704
        %3706 = vrot.lane.b32.xlu0 %v3095, 15
        %v3707 = vpop.permute.xlu0 %3706
        %3708 = vrot.lane.b32.xlu0 %v3097, 15
        %v3709 = vpop.permute.xlu0 %3708
        %3710 = vrot.lane.b32.xlu0 %v3099, 15
        %v3711 = vpop.permute.xlu0 %3710
        %3712 = vrot.lane.b32.xlu0 %v3101, 15
        %v3713 = vpop.permute.xlu0 %3712
        %3714 = vrot.lane.b32.xlu0 %v3103, 15
        %v3715 = vpop.permute.xlu0 %3714
        %v3716 = vsel %vm988, %v3653, %v3685
        %v3717 = vsel %vm988, %v3655, %v3687
        %v3718 = vsel %vm988, %v3657, %v3689
        %v3719 = vsel %vm988, %v3659, %v3691
        %v3720 = vsel %vm988, %v3661, %v3693
        %v3721 = vsel %vm988, %v3663, %v3695
        %v3722 = vsel %vm988, %v3665, %v3697
        %v3723 = vsel %vm988, %v3667, %v3699
        %v3724 = vsel %vm988, %v3669, %v3701
        %v3725 = vsel %vm988, %v3671, %v3703
        %v3726 = vsel %vm988, %v3673, %v3705
        %v3727 = vsel %vm988, %v3675, %v3707
        %v3728 = vsel %vm988, %v3677, %v3709
        %v3729 = vsel %vm988, %v3679, %v3711
        %v3730 = vsel %vm988, %v3681, %v3713
        %v3731 = vsel %vm988, %v3683, %v3715
        %v3732 = vsel %vm988, %v3685, %v3653
        %v3733 = vsel %vm988, %v3687, %v3655
        %v3734 = vsel %vm988, %v3689, %v3657
        %v3735 = vsel %vm988, %v3691, %v3659
        %v3736 = vsel %vm988, %v3693, %v3661
        %v3737 = vsel %vm988, %v3695, %v3663
        %v3738 = vsel %vm988, %v3697, %v3665
        %v3739 = vsel %vm988, %v3699, %v3667
        %v3740 = vsel %vm988, %v3701, %v3669
        %v3741 = vsel %vm988, %v3703, %v3671
        %v3742 = vsel %vm988, %v3705, %v3673
        %v3743 = vsel %vm988, %v3707, %v3675
        %v3744 = vsel %vm988, %v3709, %v3677
        %v3745 = vsel %vm988, %v3711, %v3679
        %v3746 = vsel %vm988, %v3713, %v3681
        %v3747 = vsel %vm988, %v3715, %v3683
        %v3748 = vmul.f32 %v3732, %v334
        %v3749 = vmul.f32 %v3716, %v335
        %v3750 = vmul.f32 %v3733, %v334
        %v3751 = vmul.f32 %v3717, %v335
        %v3752 = vmul.f32 %v3734, %v334
        %v3753 = vmul.f32 %v3718, %v335
        %v3754 = vmul.f32 %v3735, %v334
        %v3755 = vmul.f32 %v3719, %v335
        %v3756 = vmul.f32 %v3736, %v334
        %v3757 = vmul.f32 %v3720, %v335
        %v3758 = vmul.f32 %v3737, %v334
        %v3759 = vmul.f32 %v3721, %v335
        %v3760 = vmul.f32 %v3738, %v334
        %v3761 = vmul.f32 %v3722, %v335
        %v3762 = vmul.f32 %v3739, %v334
        %v3763 = vmul.f32 %v3723, %v335
        %v3764 = vmul.f32 %v3740, %v334
        %v3765 = vmul.f32 %v3724, %v335
        %v3766 = vmul.f32 %v3741, %v334
        %v3767 = vmul.f32 %v3725, %v335
        %v3768 = vmul.f32 %v3742, %v334
        %v3769 = vmul.f32 %v3726, %v335
        %v3770 = vmul.f32 %v3743, %v334
        %v3771 = vmul.f32 %v3727, %v335
        %v3772 = vmul.f32 %v3744, %v334
        %v3773 = vmul.f32 %v3728, %v335
        %v3774 = vmul.f32 %v3745, %v334
        %v3775 = vmul.f32 %v3729, %v335
        %v3776 = vmul.f32 %v3746, %v334
        %v3777 = vmul.f32 %v3730, %v335
        %v3778 = vmul.f32 %v3747, %v334
        %v3779 = vmul.f32 %v3731, %v335
        %v3780 = vld [vmem:[#allocation7 + $0x100] sm:$0xff]
        %v3781 = vld [vmem:[#allocation7 + $0x108] sm:$0xff]
        %v3782 = vld [vmem:[#allocation7 + $0x110] sm:$0xff]
        %v3783 = vld [vmem:[#allocation7 + $0x118] sm:$0xff]
        %v3784 = vld [vmem:[#allocation7 + $0x120] sm:$0xff]
        %v3785 = vld [vmem:[#allocation7 + $0x128] sm:$0xff]
        %v3786 = vld [vmem:[#allocation7 + $0x130] sm:$0xff]
        %v3787 = vld [vmem:[#allocation7 + $0x138] sm:$0xff]
        %v3788 = vld [vmem:[#allocation7 + $0x140] sm:$0xff]
        %v3789 = vld [vmem:[#allocation7 + $0x148] sm:$0xff]
        %v3790 = vld [vmem:[#allocation7 + $0x150] sm:$0xff]
        %v3791 = vld [vmem:[#allocation7 + $0x158] sm:$0xff]
        %v3792 = vld [vmem:[#allocation7 + $0x160] sm:$0xff]
        %v3793 = vld [vmem:[#allocation7 + $0x168] sm:$0xff]
        %v3794 = vld [vmem:[#allocation7 + $0x170] sm:$0xff]
        %v3795 = vld [vmem:[#allocation7 + $0x178] sm:$0xff]
        %3796 = vmatpush.msra.mxu0 %v3778
        %3797 = vmatpush.msra.mxu0 %v3776
        %3798 = vmatpush.msra.mxu0 %v3774
        %3799 = vmatpush.msra.mxu0 %v3772
        %3800 = vmatpush.msra.mxu0 %v3770
        %3801 = vmatpush.msra.mxu0 %v3768
        %3802 = vmatpush.msra.mxu0 %v3766
        %3803 = vmatpush.msra.mxu0 %v3764
        %3804 = vmatpush.msra.mxu0 %v3762
        %3805 = vmatpush.msra.mxu0 %v3760
        %3806 = vmatpush.msra.mxu0 %v3758
        %3807 = vmatpush.msra.mxu0 %v3756
        %3808 = vmatpush.msra.mxu0 %v3754
        %3809 = vmatpush.msra.mxu0 %v3752
        %3810 = vmatpush.msra.mxu0 %v3750
        %3811 = vmatpush.msra.mxu0 %v3748
        %3812 = vmatmul.f32.gmra.mxu0 %v3780
        %v3813 = vpop.f32.mrf.mxu0
        %v3814 = vadd.f32 0.0, %v3813
        %3815 = vmatmul.f32.gmra.mxu0 %v3781
        %v3816 = vpop.f32.mrf.mxu0
        %v3817 = vadd.f32 0.0, %v3816
        %3818 = vmatmul.f32.gmra.mxu0 %v3782
        %v3819 = vpop.f32.mrf.mxu0
        %v3820 = vadd.f32 0.0, %v3819
        %3821 = vmatmul.f32.gmra.mxu0 %v3783
        %v3822 = vpop.f32.mrf.mxu0
        %v3823 = vadd.f32 0.0, %v3822
        %3824 = vmatmul.f32.gmra.mxu0 %v3784
        %v3825 = vpop.f32.mrf.mxu0
        %v3826 = vadd.f32 0.0, %v3825
        %3827 = vmatmul.f32.gmra.mxu0 %v3785
        %v3828 = vpop.f32.mrf.mxu0
        %v3829 = vadd.f32 0.0, %v3828
        %3830 = vmatmul.f32.gmra.mxu0 %v3786
        %v3831 = vpop.f32.mrf.mxu0
        %v3832 = vadd.f32 0.0, %v3831
        %3833 = vmatmul.f32.gmra.mxu0 %v3787
        %v3834 = vpop.f32.mrf.mxu0
        %v3835 = vadd.f32 0.0, %v3834
        %3836 = vmatmul.f32.gmra.mxu0 %v3788
        %v3837 = vpop.f32.mrf.mxu0
        %v3838 = vadd.f32 0.0, %v3837
        %3839 = vmatmul.f32.gmra.mxu0 %v3789
        %v3840 = vpop.f32.mrf.mxu0
        %v3841 = vadd.f32 0.0, %v3840
        %3842 = vmatmul.f32.gmra.mxu0 %v3790
        %v3843 = vpop.f32.mrf.mxu0
        %v3844 = vadd.f32 0.0, %v3843
        %3845 = vmatmul.f32.gmra.mxu0 %v3791
        %v3846 = vpop.f32.mrf.mxu0
        %v3847 = vadd.f32 0.0, %v3846
        %3848 = vmatmul.f32.gmra.mxu0 %v3792
        %v3849 = vpop.f32.mrf.mxu0
        %v3850 = vadd.f32 0.0, %v3849
        %3851 = vmatmul.f32.gmra.mxu0 %v3793
        %v3852 = vpop.f32.mrf.mxu0
        %v3853 = vadd.f32 0.0, %v3852
        %3854 = vmatmul.f32.gmra.mxu0 %v3794
        %v3855 = vpop.f32.mrf.mxu0
        %v3856 = vadd.f32 0.0, %v3855
        %3857 = vmatmul.f32.gmra.mxu0 %v3795
        %v3858 = vpop.f32.mrf.mxu0
        %v3859 = vadd.f32 0.0, %v3858
        %3860 = vdwg.mxu0
        %3861 = vmatpush.msra.mxu0 %v3779
        %3862 = vmatpush.msra.mxu0 %v3777
        %3863 = vmatpush.msra.mxu0 %v3775
        %3864 = vmatpush.msra.mxu0 %v3773
        %3865 = vmatpush.msra.mxu0 %v3771
        %3866 = vmatpush.msra.mxu0 %v3769
        %3867 = vmatpush.msra.mxu0 %v3767
        %3868 = vmatpush.msra.mxu0 %v3765
        %3869 = vmatpush.msra.mxu0 %v3763
        %3870 = vmatpush.msra.mxu0 %v3761
        %3871 = vmatpush.msra.mxu0 %v3759
        %3872 = vmatpush.msra.mxu0 %v3757
        %3873 = vmatpush.msra.mxu0 %v3755
        %3874 = vmatpush.msra.mxu0 %v3753
        %3875 = vmatpush.msra.mxu0 %v3751
        %3876 = vmatpush.msra.mxu0 %v3749
        %3877 = vmatmul.f32.gmra.mxu0 %v3780
        %v3878 = vpop.f32.mrf.mxu0
        %v3879 = vadd.f32 0.0, %v3878
        %3880 = vmatmul.f32.gmra.mxu0 %v3781
        %v3881 = vpop.f32.mrf.mxu0
        %v3882 = vadd.f32 0.0, %v3881
        %3883 = vmatmul.f32.gmra.mxu0 %v3782
        %v3884 = vpop.f32.mrf.mxu0
        %v3885 = vadd.f32 0.0, %v3884
        %3886 = vmatmul.f32.gmra.mxu0 %v3783
        %v3887 = vpop.f32.mrf.mxu0
        %v3888 = vadd.f32 0.0, %v3887
        %3889 = vmatmul.f32.gmra.mxu0 %v3784
        %v3890 = vpop.f32.mrf.mxu0
        %v3891 = vadd.f32 0.0, %v3890
        %3892 = vmatmul.f32.gmra.mxu0 %v3785
        %v3893 = vpop.f32.mrf.mxu0
        %v3894 = vadd.f32 0.0, %v3893
        %3895 = vmatmul.f32.gmra.mxu0 %v3786
        %v3896 = vpop.f32.mrf.mxu0
        %v3897 = vadd.f32 0.0, %v3896
        %3898 = vmatmul.f32.gmra.mxu0 %v3787
        %v3899 = vpop.f32.mrf.mxu0
        %v3900 = vadd.f32 0.0, %v3899
        %3901 = vmatmul.f32.gmra.mxu0 %v3788
        %v3902 = vpop.f32.mrf.mxu0
        %v3903 = vadd.f32 0.0, %v3902
        %3904 = vmatmul.f32.gmra.mxu0 %v3789
        %v3905 = vpop.f32.mrf.mxu0
        %v3906 = vadd.f32 0.0, %v3905
        %3907 = vmatmul.f32.gmra.mxu0 %v3790
        %v3908 = vpop.f32.mrf.mxu0
        %v3909 = vadd.f32 0.0, %v3908
        %3910 = vmatmul.f32.gmra.mxu0 %v3791
        %v3911 = vpop.f32.mrf.mxu0
        %v3912 = vadd.f32 0.0, %v3911
        %3913 = vmatmul.f32.gmra.mxu0 %v3792
        %v3914 = vpop.f32.mrf.mxu0
        %v3915 = vadd.f32 0.0, %v3914
        %3916 = vmatmul.f32.gmra.mxu0 %v3793
        %v3917 = vpop.f32.mrf.mxu0
        %v3918 = vadd.f32 0.0, %v3917
        %3919 = vmatmul.f32.gmra.mxu0 %v3794
        %v3920 = vpop.f32.mrf.mxu0
        %v3921 = vadd.f32 0.0, %v3920
        %3922 = vmatmul.f32.gmra.mxu0 %v3795
        %v3923 = vpop.f32.mrf.mxu0
        %v3924 = vadd.f32 0.0, %v3923
        %3925 = vdwg.mxu0
        %v3926 = vadd.f32 %v3540, %v3814
        %v3927 = vadd.f32 %v3605, %v3879
        %v3928 = vadd.f32 %v3543, %v3817
        %v3929 = vadd.f32 %v3608, %v3882
        %v3930 = vadd.f32 %v3546, %v3820
        %v3931 = vadd.f32 %v3611, %v3885
        %v3932 = vadd.f32 %v3549, %v3823
        %v3933 = vadd.f32 %v3614, %v3888
        %v3934 = vadd.f32 %v3552, %v3826
        %v3935 = vadd.f32 %v3617, %v3891
        %v3936 = vadd.f32 %v3555, %v3829
        %v3937 = vadd.f32 %v3620, %v3894
        %v3938 = vadd.f32 %v3558, %v3832
        %v3939 = vadd.f32 %v3623, %v3897
        %v3940 = vadd.f32 %v3561, %v3835
        %v3941 = vadd.f32 %v3626, %v3900
        %v3942 = vadd.f32 %v3564, %v3838
        %v3943 = vadd.f32 %v3629, %v3903
        %v3944 = vadd.f32 %v3567, %v3841
        %v3945 = vadd.f32 %v3632, %v3906
        %v3946 = vadd.f32 %v3570, %v3844
        %v3947 = vadd.f32 %v3635, %v3909
        %v3948 = vadd.f32 %v3573, %v3847
        %v3949 = vadd.f32 %v3638, %v3912
        %v3950 = vadd.f32 %v3576, %v3850
        %v3951 = vadd.f32 %v3641, %v3915
        %v3952 = vadd.f32 %v3579, %v3853
        %v3953 = vadd.f32 %v3644, %v3918
        %v3954 = vadd.f32 %v3582, %v3856
        %v3955 = vadd.f32 %v3647, %v3921
        %v3956 = vadd.f32 %v3585, %v3859
        %v3957 = vadd.f32 %v3650, %v3924
        %3958 = vrot.lane.b32.xlu0 %v3072, 1
        %v3959 = vpop.permute.xlu0 %3958
        %3960 = vrot.lane.b32.xlu0 %v3074, 1
        %v3961 = vpop.permute.xlu0 %3960
        %3962 = vrot.lane.b32.xlu0 %v3076, 1
        %v3963 = vpop.permute.xlu0 %3962
        %3964 = vrot.lane.b32.xlu0 %v3078, 1
        %v3965 = vpop.permute.xlu0 %3964
        %3966 = vrot.lane.b32.xlu0 %v3080, 1
        %v3967 = vpop.permute.xlu0 %3966
        %3968 = vrot.lane.b32.xlu0 %v3082, 1
        %v3969 = vpop.permute.xlu0 %3968
        %3970 = vrot.lane.b32.xlu0 %v3084, 1
        %v3971 = vpop.permute.xlu0 %3970
        %3972 = vrot.lane.b32.xlu0 %v3086, 1
        %v3973 = vpop.permute.xlu0 %3972
        %3974 = vrot.lane.b32.xlu0 %v3088, 1
        %v3975 = vpop.permute.xlu0 %3974
        %3976 = vrot.lane.b32.xlu0 %v3090, 1
        %v3977 = vpop.permute.xlu0 %3976
        %3978 = vrot.lane.b32.xlu0 %v3092, 1
        %v3979 = vpop.permute.xlu0 %3978
        %3980 = vrot.lane.b32.xlu0 %v3094, 1
        %v3981 = vpop.permute.xlu0 %3980
        %3982 = vrot.lane.b32.xlu0 %v3096, 1
        %v3983 = vpop.permute.xlu0 %3982
        %3984 = vrot.lane.b32.xlu0 %v3098, 1
        %v3985 = vpop.permute.xlu0 %3984
        %3986 = vrot.lane.b32.xlu0 %v3100, 1
        %v3987 = vpop.permute.xlu0 %3986
        %3988 = vrot.lane.b32.xlu0 %v3102, 1
        %v3989 = vpop.permute.xlu0 %3988
        %3990 = vrot.lane.b32.xlu0 %v3073, 1
        %v3991 = vpop.permute.xlu0 %3990
        %3992 = vrot.lane.b32.xlu0 %v3075, 1
        %v3993 = vpop.permute.xlu0 %3992
        %3994 = vrot.lane.b32.xlu0 %v3077, 1
        %v3995 = vpop.permute.xlu0 %3994
        %3996 = vrot.lane.b32.xlu0 %v3079, 1
        %v3997 = vpop.permute.xlu0 %3996
        %3998 = vrot.lane.b32.xlu0 %v3081, 1
        %v3999 = vpop.permute.xlu0 %3998
        %4000 = vrot.lane.b32.xlu0 %v3083, 1
        %v4001 = vpop.permute.xlu0 %4000
        %4002 = vrot.lane.b32.xlu0 %v3085, 1
        %v4003 = vpop.permute.xlu0 %4002
        %4004 = vrot.lane.b32.xlu0 %v3087, 1
        %v4005 = vpop.permute.xlu0 %4004
        %4006 = vrot.lane.b32.xlu0 %v3089, 1
        %v4007 = vpop.permute.xlu0 %4006
        %4008 = vrot.lane.b32.xlu0 %v3091, 1
        %v4009 = vpop.permute.xlu0 %4008
        %4010 = vrot.lane.b32.xlu0 %v3093, 1
        %v4011 = vpop.permute.xlu0 %4010
        %4012 = vrot.lane.b32.xlu0 %v3095, 1
        %v4013 = vpop.permute.xlu0 %4012
        %4014 = vrot.lane.b32.xlu0 %v3097, 1
        %v4015 = vpop.permute.xlu0 %4014
        %4016 = vrot.lane.b32.xlu0 %v3099, 1
        %v4017 = vpop.permute.xlu0 %4016
        %4018 = vrot.lane.b32.xlu0 %v3101, 1
        %v4019 = vpop.permute.xlu0 %4018
        %4020 = vrot.lane.b32.xlu0 %v3103, 1
        %v4021 = vpop.permute.xlu0 %4020
        %v4022 = vsel %vm1295, %v3959, %v3991
        %v4023 = vsel %vm1295, %v3961, %v3993
        %v4024 = vsel %vm1295, %v3963, %v3995
        %v4025 = vsel %vm1295, %v3965, %v3997
        %v4026 = vsel %vm1295, %v3967, %v3999
        %v4027 = vsel %vm1295, %v3969, %v4001
        %v4028 = vsel %vm1295, %v3971, %v4003
        %v4029 = vsel %vm1295, %v3973, %v4005
        %v4030 = vsel %vm1295, %v3975, %v4007
        %v4031 = vsel %vm1295, %v3977, %v4009
        %v4032 = vsel %vm1295, %v3979, %v4011
        %v4033 = vsel %vm1295, %v3981, %v4013
        %v4034 = vsel %vm1295, %v3983, %v4015
        %v4035 = vsel %vm1295, %v3985, %v4017
        %v4036 = vsel %vm1295, %v3987, %v4019
        %v4037 = vsel %vm1295, %v3989, %v4021
        %v4038 = vsel %vm1295, %v3991, %v3959
        %v4039 = vsel %vm1295, %v3993, %v3961
        %v4040 = vsel %vm1295, %v3995, %v3963
        %v4041 = vsel %vm1295, %v3997, %v3965
        %v4042 = vsel %vm1295, %v3999, %v3967
        %v4043 = vsel %vm1295, %v4001, %v3969
        %v4044 = vsel %vm1295, %v4003, %v3971
        %v4045 = vsel %vm1295, %v4005, %v3973
        %v4046 = vsel %vm1295, %v4007, %v3975
        %v4047 = vsel %vm1295, %v4009, %v3977
        %v4048 = vsel %vm1295, %v4011, %v3979
        %v4049 = vsel %vm1295, %v4013, %v3981
        %v4050 = vsel %vm1295, %v4015, %v3983
        %v4051 = vsel %vm1295, %v4017, %v3985
        %v4052 = vsel %vm1295, %v4019, %v3987
        %v4053 = vsel %vm1295, %v4021, %v3989
        %v4054 = vmul.f32 %v4038, %v342
        %v4055 = vmul.f32 %v4022, %v343
        %v4056 = vmul.f32 %v4039, %v342
        %v4057 = vmul.f32 %v4023, %v343
        %v4058 = vmul.f32 %v4040, %v342
        %v4059 = vmul.f32 %v4024, %v343
        %v4060 = vmul.f32 %v4041, %v342
        %v4061 = vmul.f32 %v4025, %v343
        %v4062 = vmul.f32 %v4042, %v342
        %v4063 = vmul.f32 %v4026, %v343
        %v4064 = vmul.f32 %v4043, %v342
        %v4065 = vmul.f32 %v4027, %v343
        %v4066 = vmul.f32 %v4044, %v342
        %v4067 = vmul.f32 %v4028, %v343
        %v4068 = vmul.f32 %v4045, %v342
        %v4069 = vmul.f32 %v4029, %v343
        %v4070 = vmul.f32 %v4046, %v342
        %v4071 = vmul.f32 %v4030, %v343
        %v4072 = vmul.f32 %v4047, %v342
        %v4073 = vmul.f32 %v4031, %v343
        %v4074 = vmul.f32 %v4048, %v342
        %v4075 = vmul.f32 %v4032, %v343
        %v4076 = vmul.f32 %v4049, %v342
        %v4077 = vmul.f32 %v4033, %v343
        %v4078 = vmul.f32 %v4050, %v342
        %v4079 = vmul.f32 %v4034, %v343
        %v4080 = vmul.f32 %v4051, %v342
        %v4081 = vmul.f32 %v4035, %v343
        %v4082 = vmul.f32 %v4052, %v342
        %v4083 = vmul.f32 %v4036, %v343
        %v4084 = vmul.f32 %v4053, %v342
        %v4085 = vmul.f32 %v4037, %v343
        %v4086 = vld [vmem:[#allocation7 + $0x180] sm:$0xff]
        %v4087 = vld [vmem:[#allocation7 + $0x188] sm:$0xff]
        %v4088 = vld [vmem:[#allocation7 + $0x190] sm:$0xff]
        %v4089 = vld [vmem:[#allocation7 + $0x198] sm:$0xff]
        %v4090 = vld [vmem:[#allocation7 + $0x1a0] sm:$0xff]
        %v4091 = vld [vmem:[#allocation7 + $0x1a8] sm:$0xff]
        %v4092 = vld [vmem:[#allocation7 + $0x1b0] sm:$0xff]
        %v4093 = vld [vmem:[#allocation7 + $0x1b8] sm:$0xff]
        %v4094 = vld [vmem:[#allocation7 + $0x1c0] sm:$0xff]
        %v4095 = vld [vmem:[#allocation7 + $0x1c8] sm:$0xff]
        %v4096 = vld [vmem:[#allocation7 + $0x1d0] sm:$0xff]
        %v4097 = vld [vmem:[#allocation7 + $0x1d8] sm:$0xff]
        %v4098 = vld [vmem:[#allocation7 + $0x1e0] sm:$0xff]
        %v4099 = vld [vmem:[#allocation7 + $0x1e8] sm:$0xff]
        %v4100 = vld [vmem:[#allocation7 + $0x1f0] sm:$0xff]
        %v4101 = vld [vmem:[#allocation7 + $0x1f8] sm:$0xff]
        %4102 = vmatpush.msra.mxu0 %v4084
        %4103 = vmatpush.msra.mxu0 %v4082
        %4104 = vmatpush.msra.mxu0 %v4080
        %4105 = vmatpush.msra.mxu0 %v4078
        %4106 = vmatpush.msra.mxu0 %v4076
        %4107 = vmatpush.msra.mxu0 %v4074
        %4108 = vmatpush.msra.mxu0 %v4072
        %4109 = vmatpush.msra.mxu0 %v4070
        %4110 = vmatpush.msra.mxu0 %v4068
        %4111 = vmatpush.msra.mxu0 %v4066
        %4112 = vmatpush.msra.mxu0 %v4064
        %4113 = vmatpush.msra.mxu0 %v4062
        %4114 = vmatpush.msra.mxu0 %v4060
        %4115 = vmatpush.msra.mxu0 %v4058
        %4116 = vmatpush.msra.mxu0 %v4056
        %4117 = vmatpush.msra.mxu0 %v4054
        %4118 = vmatmul.f32.gmra.mxu0 %v4086
        %v4119 = vpop.f32.mrf.mxu0
        %v4120 = vadd.f32 0.0, %v4119
        %4121 = vmatmul.f32.gmra.mxu0 %v4087
        %v4122 = vpop.f32.mrf.mxu0
        %v4123 = vadd.f32 0.0, %v4122
        %4124 = vmatmul.f32.gmra.mxu0 %v4088
        %v4125 = vpop.f32.mrf.mxu0
        %v4126 = vadd.f32 0.0, %v4125
        %4127 = vmatmul.f32.gmra.mxu0 %v4089
        %v4128 = vpop.f32.mrf.mxu0
        %v4129 = vadd.f32 0.0, %v4128
        %4130 = vmatmul.f32.gmra.mxu0 %v4090
        %v4131 = vpop.f32.mrf.mxu0
        %v4132 = vadd.f32 0.0, %v4131
        %4133 = vmatmul.f32.gmra.mxu0 %v4091
        %v4134 = vpop.f32.mrf.mxu0
        %v4135 = vadd.f32 0.0, %v4134
        %4136 = vmatmul.f32.gmra.mxu0 %v4092
        %v4137 = vpop.f32.mrf.mxu0
        %v4138 = vadd.f32 0.0, %v4137
        %4139 = vmatmul.f32.gmra.mxu0 %v4093
        %v4140 = vpop.f32.mrf.mxu0
        %v4141 = vadd.f32 0.0, %v4140
        %4142 = vmatmul.f32.gmra.mxu0 %v4094
        %v4143 = vpop.f32.mrf.mxu0
        %v4144 = vadd.f32 0.0, %v4143
        %4145 = vmatmul.f32.gmra.mxu0 %v4095
        %v4146 = vpop.f32.mrf.mxu0
        %v4147 = vadd.f32 0.0, %v4146
        %4148 = vmatmul.f32.gmra.mxu0 %v4096
        %v4149 = vpop.f32.mrf.mxu0
        %v4150 = vadd.f32 0.0, %v4149
        %4151 = vmatmul.f32.gmra.mxu0 %v4097
        %v4152 = vpop.f32.mrf.mxu0
        %v4153 = vadd.f32 0.0, %v4152
        %4154 = vmatmul.f32.gmra.mxu0 %v4098
        %v4155 = vpop.f32.mrf.mxu0
        %v4156 = vadd.f32 0.0, %v4155
        %4157 = vmatmul.f32.gmra.mxu0 %v4099
        %v4158 = vpop.f32.mrf.mxu0
        %v4159 = vadd.f32 0.0, %v4158
        %4160 = vmatmul.f32.gmra.mxu0 %v4100
        %v4161 = vpop.f32.mrf.mxu0
        %v4162 = vadd.f32 0.0, %v4161
        %4163 = vmatmul.f32.gmra.mxu0 %v4101
        %v4164 = vpop.f32.mrf.mxu0
        %v4165 = vadd.f32 0.0, %v4164
        %4166 = vdwg.mxu0
        %4167 = vmatpush.msra.mxu0 %v4085
        %4168 = vmatpush.msra.mxu0 %v4083
        %4169 = vmatpush.msra.mxu0 %v4081
        %4170 = vmatpush.msra.mxu0 %v4079
        %4171 = vmatpush.msra.mxu0 %v4077
        %4172 = vmatpush.msra.mxu0 %v4075
        %4173 = vmatpush.msra.mxu0 %v4073
        %4174 = vmatpush.msra.mxu0 %v4071
        %4175 = vmatpush.msra.mxu0 %v4069
        %4176 = vmatpush.msra.mxu0 %v4067
        %4177 = vmatpush.msra.mxu0 %v4065
        %4178 = vmatpush.msra.mxu0 %v4063
        %4179 = vmatpush.msra.mxu0 %v4061
        %4180 = vmatpush.msra.mxu0 %v4059
        %4181 = vmatpush.msra.mxu0 %v4057
        %4182 = vmatpush.msra.mxu0 %v4055
        %4183 = vmatmul.f32.gmra.mxu0 %v4086
        %v4184 = vpop.f32.mrf.mxu0
        %v4185 = vadd.f32 0.0, %v4184
        %4186 = vmatmul.f32.gmra.mxu0 %v4087
        %v4187 = vpop.f32.mrf.mxu0
        %v4188 = vadd.f32 0.0, %v4187
        %4189 = vmatmul.f32.gmra.mxu0 %v4088
        %v4190 = vpop.f32.mrf.mxu0
        %v4191 = vadd.f32 0.0, %v4190
        %4192 = vmatmul.f32.gmra.mxu0 %v4089
        %v4193 = vpop.f32.mrf.mxu0
        %v4194 = vadd.f32 0.0, %v4193
        %4195 = vmatmul.f32.gmra.mxu0 %v4090
        %v4196 = vpop.f32.mrf.mxu0
        %v4197 = vadd.f32 0.0, %v4196
        %4198 = vmatmul.f32.gmra.mxu0 %v4091
        %v4199 = vpop.f32.mrf.mxu0
        %v4200 = vadd.f32 0.0, %v4199
        %4201 = vmatmul.f32.gmra.mxu0 %v4092
        %v4202 = vpop.f32.mrf.mxu0
        %v4203 = vadd.f32 0.0, %v4202
        %4204 = vmatmul.f32.gmra.mxu0 %v4093
        %v4205 = vpop.f32.mrf.mxu0
        %v4206 = vadd.f32 0.0, %v4205
        %4207 = vmatmul.f32.gmra.mxu0 %v4094
        %v4208 = vpop.f32.mrf.mxu0
        %v4209 = vadd.f32 0.0, %v4208
        %4210 = vmatmul.f32.gmra.mxu0 %v4095
        %v4211 = vpop.f32.mrf.mxu0
        %v4212 = vadd.f32 0.0, %v4211
        %4213 = vmatmul.f32.gmra.mxu0 %v4096
        %v4214 = vpop.f32.mrf.mxu0
        %v4215 = vadd.f32 0.0, %v4214
        %4216 = vmatmul.f32.gmra.mxu0 %v4097
        %v4217 = vpop.f32.mrf.mxu0
        %v4218 = vadd.f32 0.0, %v4217
        %4219 = vmatmul.f32.gmra.mxu0 %v4098
        %v4220 = vpop.f32.mrf.mxu0
        %v4221 = vadd.f32 0.0, %v4220
        %4222 = vmatmul.f32.gmra.mxu0 %v4099
        %v4223 = vpop.f32.mrf.mxu0
        %v4224 = vadd.f32 0.0, %v4223
        %4225 = vmatmul.f32.gmra.mxu0 %v4100
        %v4226 = vpop.f32.mrf.mxu0
        %v4227 = vadd.f32 0.0, %v4226
        %4228 = vmatmul.f32.gmra.mxu0 %v4101
        %v4229 = vpop.f32.mrf.mxu0
        %v4230 = vadd.f32 0.0, %v4229
        %4231 = vdwg.mxu0
        %v4232 = vadd.f32 %v3926, %v4120
        %v4233 = vadd.f32 %v3927, %v4185
        %v4234 = vadd.f32 %v3928, %v4123
        %v4235 = vadd.f32 %v3929, %v4188
        %v4236 = vadd.f32 %v3930, %v4126
        %v4237 = vadd.f32 %v3931, %v4191
        %v4238 = vadd.f32 %v3932, %v4129
        %v4239 = vadd.f32 %v3933, %v4194
        %v4240 = vadd.f32 %v3934, %v4132
        %v4241 = vadd.f32 %v3935, %v4197
        %v4242 = vadd.f32 %v3936, %v4135
        %v4243 = vadd.f32 %v3937, %v4200
        %v4244 = vadd.f32 %v3938, %v4138
        %v4245 = vadd.f32 %v3939, %v4203
        %v4246 = vadd.f32 %v3940, %v4141
        %v4247 = vadd.f32 %v3941, %v4206
        %v4248 = vadd.f32 %v3942, %v4144
        %v4249 = vadd.f32 %v3943, %v4209
        %v4250 = vadd.f32 %v3944, %v4147
        %v4251 = vadd.f32 %v3945, %v4212
        %v4252 = vadd.f32 %v3946, %v4150
        %v4253 = vadd.f32 %v3947, %v4215
        %v4254 = vadd.f32 %v3948, %v4153
        %v4255 = vadd.f32 %v3949, %v4218
        %v4256 = vadd.f32 %v3950, %v4156
        %v4257 = vadd.f32 %v3951, %v4221
        %v4258 = vadd.f32 %v3952, %v4159
        %v4259 = vadd.f32 %v3953, %v4224
        %v4260 = vadd.f32 %v3954, %v4162
        %v4261 = vadd.f32 %v3955, %v4227
        %v4262 = vadd.f32 %v3956, %v4165
        %v4263 = vadd.f32 %v3957, %v4230
        %v4264 = vld [vmem:[#allocation7 + $0x200] sm:$0xff]
        %v4265 = vld [vmem:[#allocation7 + $0x208] sm:$0xff]
        %v4266 = vld [vmem:[#allocation7 + $0x210] sm:$0xff]
        %v4267 = vld [vmem:[#allocation7 + $0x218] sm:$0xff]
        %v4268 = vld [vmem:[#allocation7 + $0x220] sm:$0xff]
        %v4269 = vld [vmem:[#allocation7 + $0x228] sm:$0xff]
        %v4270 = vld [vmem:[#allocation7 + $0x230] sm:$0xff]
        %v4271 = vld [vmem:[#allocation7 + $0x238] sm:$0xff]
        %v4272 = vld [vmem:[#allocation7 + $0x240] sm:$0xff]
        %v4273 = vld [vmem:[#allocation7 + $0x248] sm:$0xff]
        %v4274 = vld [vmem:[#allocation7 + $0x250] sm:$0xff]
        %v4275 = vld [vmem:[#allocation7 + $0x258] sm:$0xff]
        %v4276 = vld [vmem:[#allocation7 + $0x260] sm:$0xff]
        %v4277 = vld [vmem:[#allocation7 + $0x268] sm:$0xff]
        %v4278 = vld [vmem:[#allocation7 + $0x270] sm:$0xff]
        %v4279 = vld [vmem:[#allocation7 + $0x278] sm:$0xff]
        %4280 = vmatpush.msra.mxu0 %v3102
        %4281 = vmatpush.msra.mxu0 %v3100
        %4282 = vmatpush.msra.mxu0 %v3098
        %4283 = vmatpush.msra.mxu0 %v3096
        %4284 = vmatpush.msra.mxu0 %v3094
        %4285 = vmatpush.msra.mxu0 %v3092
        %4286 = vmatpush.msra.mxu0 %v3090
        %4287 = vmatpush.msra.mxu0 %v3088
        %4288 = vmatpush.msra.mxu0 %v3086
        %4289 = vmatpush.msra.mxu0 %v3084
        %4290 = vmatpush.msra.mxu0 %v3082
        %4291 = vmatpush.msra.mxu0 %v3080
        %4292 = vmatpush.msra.mxu0 %v3078
        %4293 = vmatpush.msra.mxu0 %v3076
        %4294 = vmatpush.msra.mxu0 %v3074
        %4295 = vmatpush.msra.mxu0 %v3072
        %4296 = vmatmul.f32.gmra.mxu0 %v4264
        %v4297 = vpop.f32.mrf.mxu0
        %v4298 = vadd.f32 0.0, %v4297
        %4299 = vmatmul.f32.gmra.mxu0 %v4265
        %v4300 = vpop.f32.mrf.mxu0
        %v4301 = vadd.f32 0.0, %v4300
        %4302 = vmatmul.f32.gmra.mxu0 %v4266
        %v4303 = vpop.f32.mrf.mxu0
        %v4304 = vadd.f32 0.0, %v4303
        %4305 = vmatmul.f32.gmra.mxu0 %v4267
        %v4306 = vpop.f32.mrf.mxu0
        %v4307 = vadd.f32 0.0, %v4306
        %4308 = vmatmul.f32.gmra.mxu0 %v4268
        %v4309 = vpop.f32.mrf.mxu0
        %v4310 = vadd.f32 0.0, %v4309
        %4311 = vmatmul.f32.gmra.mxu0 %v4269
        %v4312 = vpop.f32.mrf.mxu0
        %v4313 = vadd.f32 0.0, %v4312
        %4314 = vmatmul.f32.gmra.mxu0 %v4270
        %v4315 = vpop.f32.mrf.mxu0
        %v4316 = vadd.f32 0.0, %v4315
        %4317 = vmatmul.f32.gmra.mxu0 %v4271
        %v4318 = vpop.f32.mrf.mxu0
        %v4319 = vadd.f32 0.0, %v4318
        %4320 = vmatmul.f32.gmra.mxu0 %v4272
        %v4321 = vpop.f32.mrf.mxu0
        %v4322 = vadd.f32 0.0, %v4321
        %4323 = vmatmul.f32.gmra.mxu0 %v4273
        %v4324 = vpop.f32.mrf.mxu0
        %v4325 = vadd.f32 0.0, %v4324
        %4326 = vmatmul.f32.gmra.mxu0 %v4274
        %v4327 = vpop.f32.mrf.mxu0
        %v4328 = vadd.f32 0.0, %v4327
        %4329 = vmatmul.f32.gmra.mxu0 %v4275
        %v4330 = vpop.f32.mrf.mxu0
        %v4331 = vadd.f32 0.0, %v4330
        %4332 = vmatmul.f32.gmra.mxu0 %v4276
        %v4333 = vpop.f32.mrf.mxu0
        %v4334 = vadd.f32 0.0, %v4333
        %4335 = vmatmul.f32.gmra.mxu0 %v4277
        %v4336 = vpop.f32.mrf.mxu0
        %v4337 = vadd.f32 0.0, %v4336
        %4338 = vmatmul.f32.gmra.mxu0 %v4278
        %v4339 = vpop.f32.mrf.mxu0
        %v4340 = vadd.f32 0.0, %v4339
        %4341 = vmatmul.f32.gmra.mxu0 %v4279
        %v4342 = vpop.f32.mrf.mxu0
        %v4343 = vadd.f32 0.0, %v4342
        %4344 = vdwg.mxu0
        %4345 = vmatpush.msra.mxu0 %v3103
        %4346 = vmatpush.msra.mxu0 %v3101
        %4347 = vmatpush.msra.mxu0 %v3099
        %4348 = vmatpush.msra.mxu0 %v3097
        %4349 = vmatpush.msra.mxu0 %v3095
        %4350 = vmatpush.msra.mxu0 %v3093
        %4351 = vmatpush.msra.mxu0 %v3091
        %4352 = vmatpush.msra.mxu0 %v3089
        %4353 = vmatpush.msra.mxu0 %v3087
        %4354 = vmatpush.msra.mxu0 %v3085
        %4355 = vmatpush.msra.mxu0 %v3083
        %4356 = vmatpush.msra.mxu0 %v3081
        %4357 = vmatpush.msra.mxu0 %v3079
        %4358 = vmatpush.msra.mxu0 %v3077
        %4359 = vmatpush.msra.mxu0 %v3075
        %4360 = vmatpush.msra.mxu0 %v3073
        %4361 = vmatmul.f32.gmra.mxu0 %v4264
        %v4362 = vpop.f32.mrf.mxu0
        %v4363 = vadd.f32 0.0, %v4362
        %4364 = vmatmul.f32.gmra.mxu0 %v4265
        %v4365 = vpop.f32.mrf.mxu0
        %v4366 = vadd.f32 0.0, %v4365
        %4367 = vmatmul.f32.gmra.mxu0 %v4266
        %v4368 = vpop.f32.mrf.mxu0
        %v4369 = vadd.f32 0.0, %v4368
        %4370 = vmatmul.f32.gmra.mxu0 %v4267
        %v4371 = vpop.f32.mrf.mxu0
        %v4372 = vadd.f32 0.0, %v4371
        %4373 = vmatmul.f32.gmra.mxu0 %v4268
        %v4374 = vpop.f32.mrf.mxu0
        %v4375 = vadd.f32 0.0, %v4374
        %4376 = vmatmul.f32.gmra.mxu0 %v4269
        %v4377 = vpop.f32.mrf.mxu0
        %v4378 = vadd.f32 0.0, %v4377
        %4379 = vmatmul.f32.gmra.mxu0 %v4270
        %v4380 = vpop.f32.mrf.mxu0
        %v4381 = vadd.f32 0.0, %v4380
        %4382 = vmatmul.f32.gmra.mxu0 %v4271
        %v4383 = vpop.f32.mrf.mxu0
        %v4384 = vadd.f32 0.0, %v4383
        %4385 = vmatmul.f32.gmra.mxu0 %v4272
        %v4386 = vpop.f32.mrf.mxu0
        %v4387 = vadd.f32 0.0, %v4386
        %4388 = vmatmul.f32.gmra.mxu0 %v4273
        %v4389 = vpop.f32.mrf.mxu0
        %v4390 = vadd.f32 0.0, %v4389
        %4391 = vmatmul.f32.gmra.mxu0 %v4274
        %v4392 = vpop.f32.mrf.mxu0
        %v4393 = vadd.f32 0.0, %v4392
        %4394 = vmatmul.f32.gmra.mxu0 %v4275
        %v4395 = vpop.f32.mrf.mxu0
        %v4396 = vadd.f32 0.0, %v4395
        %4397 = vmatmul.f32.gmra.mxu0 %v4276
        %v4398 = vpop.f32.mrf.mxu0
        %v4399 = vadd.f32 0.0, %v4398
        %4400 = vmatmul.f32.gmra.mxu0 %v4277
        %v4401 = vpop.f32.mrf.mxu0
        %v4402 = vadd.f32 0.0, %v4401
        %4403 = vmatmul.f32.gmra.mxu0 %v4278
        %v4404 = vpop.f32.mrf.mxu0
        %v4405 = vadd.f32 0.0, %v4404
        %4406 = vmatmul.f32.gmra.mxu0 %v4279
        %v4407 = vpop.f32.mrf.mxu0
        %v4408 = vadd.f32 0.0, %v4407
        %4409 = vdwg.mxu0
        %v4410 = vadd.f32 %v4232, %v4298
        %v4411 = vadd.f32 %v4233, %v4363
        %v4412 = vadd.f32 %v4234, %v4301
        %v4413 = vadd.f32 %v4235, %v4366
        %v4414 = vadd.f32 %v4236, %v4304
        %v4415 = vadd.f32 %v4237, %v4369
        %v4416 = vadd.f32 %v4238, %v4307
        %v4417 = vadd.f32 %v4239, %v4372
        %v4418 = vadd.f32 %v4240, %v4310
        %v4419 = vadd.f32 %v4241, %v4375
        %v4420 = vadd.f32 %v4242, %v4313
        %v4421 = vadd.f32 %v4243, %v4378
        %v4422 = vadd.f32 %v4244, %v4316
        %v4423 = vadd.f32 %v4245, %v4381
        %v4424 = vadd.f32 %v4246, %v4319
        %v4425 = vadd.f32 %v4247, %v4384
        %v4426 = vadd.f32 %v4248, %v4322
        %v4427 = vadd.f32 %v4249, %v4387
        %v4428 = vadd.f32 %v4250, %v4325
        %v4429 = vadd.f32 %v4251, %v4390
        %v4430 = vadd.f32 %v4252, %v4328
        %v4431 = vadd.f32 %v4253, %v4393
        %v4432 = vadd.f32 %v4254, %v4331
        %v4433 = vadd.f32 %v4255, %v4396
        %v4434 = vadd.f32 %v4256, %v4334
        %v4435 = vadd.f32 %v4257, %v4399
        %v4436 = vadd.f32 %v4258, %v4337
        %v4437 = vadd.f32 %v4259, %v4402
        %v4438 = vadd.f32 %v4260, %v4340
        %v4439 = vadd.f32 %v4261, %v4405
        %v4440 = vadd.f32 %v4262, %v4343
        %v4441 = vadd.f32 %v4263, %v4408
        %4442 = vrot.lane.b32.xlu0 %v3072, 127
        %v4443 = vpop.permute.xlu0 %4442
        %4444 = vrot.lane.b32.xlu0 %v3074, 127
        %v4445 = vpop.permute.xlu0 %4444
        %4446 = vrot.lane.b32.xlu0 %v3076, 127
        %v4447 = vpop.permute.xlu0 %4446
        %4448 = vrot.lane.b32.xlu0 %v3078, 127
        %v4449 = vpop.permute.xlu0 %4448
        %4450 = vrot.lane.b32.xlu0 %v3080, 127
        %v4451 = vpop.permute.xlu0 %4450
        %4452 = vrot.lane.b32.xlu0 %v3082, 127
        %v4453 = vpop.permute.xlu0 %4452
        %4454 = vrot.lane.b32.xlu0 %v3084, 127
        %v4455 = vpop.permute.xlu0 %4454
        %4456 = vrot.lane.b32.xlu0 %v3086, 127
        %v4457 = vpop.permute.xlu0 %4456
        %4458 = vrot.lane.b32.xlu0 %v3088, 127
        %v4459 = vpop.permute.xlu0 %4458
        %4460 = vrot.lane.b32.xlu0 %v3090, 127
        %v4461 = vpop.permute.xlu0 %4460
        %4462 = vrot.lane.b32.xlu0 %v3092, 127
        %v4463 = vpop.permute.xlu0 %4462
        %4464 = vrot.lane.b32.xlu0 %v3094, 127
        %v4465 = vpop.permute.xlu0 %4464
        %4466 = vrot.lane.b32.xlu0 %v3096, 127
        %v4467 = vpop.permute.xlu0 %4466
        %4468 = vrot.lane.b32.xlu0 %v3098, 127
        %v4469 = vpop.permute.xlu0 %4468
        %4470 = vrot.lane.b32.xlu0 %v3100, 127
        %v4471 = vpop.permute.xlu0 %4470
        %4472 = vrot.lane.b32.xlu0 %v3102, 127
        %v4473 = vpop.permute.xlu0 %4472
        %4474 = vrot.lane.b32.xlu0 %v3073, 127
        %v4475 = vpop.permute.xlu0 %4474
        %4476 = vrot.lane.b32.xlu0 %v3075, 127
        %v4477 = vpop.permute.xlu0 %4476
        %4478 = vrot.lane.b32.xlu0 %v3077, 127
        %v4479 = vpop.permute.xlu0 %4478
        %4480 = vrot.lane.b32.xlu0 %v3079, 127
        %v4481 = vpop.permute.xlu0 %4480
        %4482 = vrot.lane.b32.xlu0 %v3081, 127
        %v4483 = vpop.permute.xlu0 %4482
        %4484 = vrot.lane.b32.xlu0 %v3083, 127
        %v4485 = vpop.permute.xlu0 %4484
        %4486 = vrot.lane.b32.xlu0 %v3085, 127
        %v4487 = vpop.permute.xlu0 %4486
        %4488 = vrot.lane.b32.xlu0 %v3087, 127
        %v4489 = vpop.permute.xlu0 %4488
        %4490 = vrot.lane.b32.xlu0 %v3089, 127
        %v4491 = vpop.permute.xlu0 %4490
        %4492 = vrot.lane.b32.xlu0 %v3091, 127
        %v4493 = vpop.permute.xlu0 %4492
        %4494 = vrot.lane.b32.xlu0 %v3093, 127
        %v4495 = vpop.permute.xlu0 %4494
        %4496 = vrot.lane.b32.xlu0 %v3095, 127
        %v4497 = vpop.permute.xlu0 %4496
        %4498 = vrot.lane.b32.xlu0 %v3097, 127
        %v4499 = vpop.permute.xlu0 %4498
        %4500 = vrot.lane.b32.xlu0 %v3099, 127
        %v4501 = vpop.permute.xlu0 %4500
        %4502 = vrot.lane.b32.xlu0 %v3101, 127
        %v4503 = vpop.permute.xlu0 %4502
        %4504 = vrot.lane.b32.xlu0 %v3103, 127
        %v4505 = vpop.permute.xlu0 %4504
        %v4506 = vsel %vm1780, %v4443, %v4475
        %v4507 = vsel %vm1780, %v4445, %v4477
        %v4508 = vsel %vm1780, %v4447, %v4479
        %v4509 = vsel %vm1780, %v4449, %v4481
        %v4510 = vsel %vm1780, %v4451, %v4483
        %v4511 = vsel %vm1780, %v4453, %v4485
        %v4512 = vsel %vm1780, %v4455, %v4487
        %v4513 = vsel %vm1780, %v4457, %v4489
        %v4514 = vsel %vm1780, %v4459, %v4491
        %v4515 = vsel %vm1780, %v4461, %v4493
        %v4516 = vsel %vm1780, %v4463, %v4495
        %v4517 = vsel %vm1780, %v4465, %v4497
        %v4518 = vsel %vm1780, %v4467, %v4499
        %v4519 = vsel %vm1780, %v4469, %v4501
        %v4520 = vsel %vm1780, %v4471, %v4503
        %v4521 = vsel %vm1780, %v4473, %v4505
        %v4522 = vsel %vm1780, %v4475, %v4443
        %v4523 = vsel %vm1780, %v4477, %v4445
        %v4524 = vsel %vm1780, %v4479, %v4447
        %v4525 = vsel %vm1780, %v4481, %v4449
        %v4526 = vsel %vm1780, %v4483, %v4451
        %v4527 = vsel %vm1780, %v4485, %v4453
        %v4528 = vsel %vm1780, %v4487, %v4455
        %v4529 = vsel %vm1780, %v4489, %v4457
        %v4530 = vsel %vm1780, %v4491, %v4459
        %v4531 = vsel %vm1780, %v4493, %v4461
        %v4532 = vsel %vm1780, %v4495, %v4463
        %v4533 = vsel %vm1780, %v4497, %v4465
        %v4534 = vsel %vm1780, %v4499, %v4467
        %v4535 = vsel %vm1780, %v4501, %v4469
        %v4536 = vsel %vm1780, %v4503, %v4471
        %v4537 = vsel %vm1780, %v4505, %v4473
        %v4538 = vmul.f32 %v4506, %v350
        %v4539 = vmul.f32 %v4522, %v351
        %v4540 = vmul.f32 %v4507, %v350
        %v4541 = vmul.f32 %v4523, %v351
        %v4542 = vmul.f32 %v4508, %v350
        %v4543 = vmul.f32 %v4524, %v351
        %v4544 = vmul.f32 %v4509, %v350
        %v4545 = vmul.f32 %v4525, %v351
        %v4546 = vmul.f32 %v4510, %v350
        %v4547 = vmul.f32 %v4526, %v351
        %v4548 = vmul.f32 %v4511, %v350
        %v4549 = vmul.f32 %v4527, %v351
        %v4550 = vmul.f32 %v4512, %v350
        %v4551 = vmul.f32 %v4528, %v351
        %v4552 = vmul.f32 %v4513, %v350
        %v4553 = vmul.f32 %v4529, %v351
        %v4554 = vmul.f32 %v4514, %v350
        %v4555 = vmul.f32 %v4530, %v351
        %v4556 = vmul.f32 %v4515, %v350
        %v4557 = vmul.f32 %v4531, %v351
        %v4558 = vmul.f32 %v4516, %v350
        %v4559 = vmul.f32 %v4532, %v351
        %v4560 = vmul.f32 %v4517, %v350
        %v4561 = vmul.f32 %v4533, %v351
        %v4562 = vmul.f32 %v4518, %v350
        %v4563 = vmul.f32 %v4534, %v351
        %v4564 = vmul.f32 %v4519, %v350
        %v4565 = vmul.f32 %v4535, %v351
        %v4566 = vmul.f32 %v4520, %v350
        %v4567 = vmul.f32 %v4536, %v351
        %v4568 = vmul.f32 %v4521, %v350
        %v4569 = vmul.f32 %v4537, %v351
        %v4570 = vld [vmem:[#allocation7 + $0x280] sm:$0xff]
        %v4571 = vld [vmem:[#allocation7 + $0x288] sm:$0xff]
        %v4572 = vld [vmem:[#allocation7 + $0x290] sm:$0xff]
        %v4573 = vld [vmem:[#allocation7 + $0x298] sm:$0xff]
        %v4574 = vld [vmem:[#allocation7 + $0x2a0] sm:$0xff]
        %v4575 = vld [vmem:[#allocation7 + $0x2a8] sm:$0xff]
        %v4576 = vld [vmem:[#allocation7 + $0x2b0] sm:$0xff]
        %v4577 = vld [vmem:[#allocation7 + $0x2b8] sm:$0xff]
        %v4578 = vld [vmem:[#allocation7 + $0x2c0] sm:$0xff]
        %v4579 = vld [vmem:[#allocation7 + $0x2c8] sm:$0xff]
        %v4580 = vld [vmem:[#allocation7 + $0x2d0] sm:$0xff]
        %v4581 = vld [vmem:[#allocation7 + $0x2d8] sm:$0xff]
        %v4582 = vld [vmem:[#allocation7 + $0x2e0] sm:$0xff]
        %v4583 = vld [vmem:[#allocation7 + $0x2e8] sm:$0xff]
        %v4584 = vld [vmem:[#allocation7 + $0x2f0] sm:$0xff]
        %v4585 = vld [vmem:[#allocation7 + $0x2f8] sm:$0xff]
        %4586 = vmatpush.msra.mxu0 %v4568
        %4587 = vmatpush.msra.mxu0 %v4566
        %4588 = vmatpush.msra.mxu0 %v4564
        %4589 = vmatpush.msra.mxu0 %v4562
        %4590 = vmatpush.msra.mxu0 %v4560
        %4591 = vmatpush.msra.mxu0 %v4558
        %4592 = vmatpush.msra.mxu0 %v4556
        %4593 = vmatpush.msra.mxu0 %v4554
        %4594 = vmatpush.msra.mxu0 %v4552
        %4595 = vmatpush.msra.mxu0 %v4550
        %4596 = vmatpush.msra.mxu0 %v4548
        %4597 = vmatpush.msra.mxu0 %v4546
        %4598 = vmatpush.msra.mxu0 %v4544
        %4599 = vmatpush.msra.mxu0 %v4542
        %4600 = vmatpush.msra.mxu0 %v4540
        %4601 = vmatpush.msra.mxu0 %v4538
        %4602 = vmatmul.f32.gmra.mxu0 %v4570
        %v4603 = vpop.f32.mrf.mxu0
        %v4604 = vadd.f32 0.0, %v4603
        %4605 = vmatmul.f32.gmra.mxu0 %v4571
        %v4606 = vpop.f32.mrf.mxu0
        %v4607 = vadd.f32 0.0, %v4606
        %4608 = vmatmul.f32.gmra.mxu0 %v4572
        %v4609 = vpop.f32.mrf.mxu0
        %v4610 = vadd.f32 0.0, %v4609
        %4611 = vmatmul.f32.gmra.mxu0 %v4573
        %v4612 = vpop.f32.mrf.mxu0
        %v4613 = vadd.f32 0.0, %v4612
        %4614 = vmatmul.f32.gmra.mxu0 %v4574
        %v4615 = vpop.f32.mrf.mxu0
        %v4616 = vadd.f32 0.0, %v4615
        %4617 = vmatmul.f32.gmra.mxu0 %v4575
        %v4618 = vpop.f32.mrf.mxu0
        %v4619 = vadd.f32 0.0, %v4618
        %4620 = vmatmul.f32.gmra.mxu0 %v4576
        %v4621 = vpop.f32.mrf.mxu0
        %v4622 = vadd.f32 0.0, %v4621
        %4623 = vmatmul.f32.gmra.mxu0 %v4577
        %v4624 = vpop.f32.mrf.mxu0
        %v4625 = vadd.f32 0.0, %v4624
        %4626 = vmatmul.f32.gmra.mxu0 %v4578
        %v4627 = vpop.f32.mrf.mxu0
        %v4628 = vadd.f32 0.0, %v4627
        %4629 = vmatmul.f32.gmra.mxu0 %v4579
        %v4630 = vpop.f32.mrf.mxu0
        %v4631 = vadd.f32 0.0, %v4630
        %4632 = vmatmul.f32.gmra.mxu0 %v4580
        %v4633 = vpop.f32.mrf.mxu0
        %v4634 = vadd.f32 0.0, %v4633
        %4635 = vmatmul.f32.gmra.mxu0 %v4581
        %v4636 = vpop.f32.mrf.mxu0
        %v4637 = vadd.f32 0.0, %v4636
        %4638 = vmatmul.f32.gmra.mxu0 %v4582
        %v4639 = vpop.f32.mrf.mxu0
        %v4640 = vadd.f32 0.0, %v4639
        %4641 = vmatmul.f32.gmra.mxu0 %v4583
        %v4642 = vpop.f32.mrf.mxu0
        %v4643 = vadd.f32 0.0, %v4642
        %4644 = vmatmul.f32.gmra.mxu0 %v4584
        %v4645 = vpop.f32.mrf.mxu0
        %v4646 = vadd.f32 0.0, %v4645
        %4647 = vmatmul.f32.gmra.mxu0 %v4585
        %v4648 = vpop.f32.mrf.mxu0
        %v4649 = vadd.f32 0.0, %v4648
        %4650 = vdwg.mxu0
        %4651 = vmatpush.msra.mxu0 %v4569
        %4652 = vmatpush.msra.mxu0 %v4567
        %4653 = vmatpush.msra.mxu0 %v4565
        %4654 = vmatpush.msra.mxu0 %v4563
        %4655 = vmatpush.msra.mxu0 %v4561
        %4656 = vmatpush.msra.mxu0 %v4559
        %4657 = vmatpush.msra.mxu0 %v4557
        %4658 = vmatpush.msra.mxu0 %v4555
        %4659 = vmatpush.msra.mxu0 %v4553
        %4660 = vmatpush.msra.mxu0 %v4551
        %4661 = vmatpush.msra.mxu0 %v4549
        %4662 = vmatpush.msra.mxu0 %v4547
        %4663 = vmatpush.msra.mxu0 %v4545
        %4664 = vmatpush.msra.mxu0 %v4543
        %4665 = vmatpush.msra.mxu0 %v4541
        %4666 = vmatpush.msra.mxu0 %v4539
        %4667 = vmatmul.f32.gmra.mxu0 %v4570
        %v4668 = vpop.f32.mrf.mxu0
        %v4669 = vadd.f32 0.0, %v4668
        %4670 = vmatmul.f32.gmra.mxu0 %v4571
        %v4671 = vpop.f32.mrf.mxu0
        %v4672 = vadd.f32 0.0, %v4671
        %4673 = vmatmul.f32.gmra.mxu0 %v4572
        %v4674 = vpop.f32.mrf.mxu0
        %v4675 = vadd.f32 0.0, %v4674
        %4676 = vmatmul.f32.gmra.mxu0 %v4573
        %v4677 = vpop.f32.mrf.mxu0
        %v4678 = vadd.f32 0.0, %v4677
        %4679 = vmatmul.f32.gmra.mxu0 %v4574
        %v4680 = vpop.f32.mrf.mxu0
        %v4681 = vadd.f32 0.0, %v4680
        %4682 = vmatmul.f32.gmra.mxu0 %v4575
        %v4683 = vpop.f32.mrf.mxu0
        %v4684 = vadd.f32 0.0, %v4683
        %4685 = vmatmul.f32.gmra.mxu0 %v4576
        %v4686 = vpop.f32.mrf.mxu0
        %v4687 = vadd.f32 0.0, %v4686
        %4688 = vmatmul.f32.gmra.mxu0 %v4577
        %v4689 = vpop.f32.mrf.mxu0
        %v4690 = vadd.f32 0.0, %v4689
        %4691 = vmatmul.f32.gmra.mxu0 %v4578
        %v4692 = vpop.f32.mrf.mxu0
        %v4693 = vadd.f32 0.0, %v4692
        %4694 = vmatmul.f32.gmra.mxu0 %v4579
        %v4695 = vpop.f32.mrf.mxu0
        %v4696 = vadd.f32 0.0, %v4695
        %4697 = vmatmul.f32.gmra.mxu0 %v4580
        %v4698 = vpop.f32.mrf.mxu0
        %v4699 = vadd.f32 0.0, %v4698
        %4700 = vmatmul.f32.gmra.mxu0 %v4581
        %v4701 = vpop.f32.mrf.mxu0
        %v4702 = vadd.f32 0.0, %v4701
        %4703 = vmatmul.f32.gmra.mxu0 %v4582
        %v4704 = vpop.f32.mrf.mxu0
        %v4705 = vadd.f32 0.0, %v4704
        %4706 = vmatmul.f32.gmra.mxu0 %v4583
        %v4707 = vpop.f32.mrf.mxu0
        %v4708 = vadd.f32 0.0, %v4707
        %4709 = vmatmul.f32.gmra.mxu0 %v4584
        %v4710 = vpop.f32.mrf.mxu0
        %v4711 = vadd.f32 0.0, %v4710
        %4712 = vmatmul.f32.gmra.mxu0 %v4585
        %v4713 = vpop.f32.mrf.mxu0
        %v4714 = vadd.f32 0.0, %v4713
        %4715 = vdwg.mxu0
        %v4716 = vadd.f32 %v4410, %v4604
        %v4717 = vadd.f32 %v4411, %v4669
        %v4718 = vadd.f32 %v4412, %v4607
        %v4719 = vadd.f32 %v4413, %v4672
        %v4720 = vadd.f32 %v4414, %v4610
        %v4721 = vadd.f32 %v4415, %v4675
        %v4722 = vadd.f32 %v4416, %v4613
        %v4723 = vadd.f32 %v4417, %v4678
        %v4724 = vadd.f32 %v4418, %v4616
        %v4725 = vadd.f32 %v4419, %v4681
        %v4726 = vadd.f32 %v4420, %v4619
        %v4727 = vadd.f32 %v4421, %v4684
        %v4728 = vadd.f32 %v4422, %v4622
        %v4729 = vadd.f32 %v4423, %v4687
        %v4730 = vadd.f32 %v4424, %v4625
        %v4731 = vadd.f32 %v4425, %v4690
        %v4732 = vadd.f32 %v4426, %v4628
        %v4733 = vadd.f32 %v4427, %v4693
        %v4734 = vadd.f32 %v4428, %v4631
        %v4735 = vadd.f32 %v4429, %v4696
        %v4736 = vadd.f32 %v4430, %v4634
        %v4737 = vadd.f32 %v4431, %v4699
        %v4738 = vadd.f32 %v4432, %v4637
        %v4739 = vadd.f32 %v4433, %v4702
        %v4740 = vadd.f32 %v4434, %v4640
        %v4741 = vadd.f32 %v4435, %v4705
        %v4742 = vadd.f32 %v4436, %v4643
        %v4743 = vadd.f32 %v4437, %v4708
        %v4744 = vadd.f32 %v4438, %v4646
        %v4745 = vadd.f32 %v4439, %v4711
        %v4746 = vadd.f32 %v4440, %v4649
        %v4747 = vadd.f32 %v4441, %v4714
        %4748 = vrot.lane.b32.xlu0 %v3072, 113
        %v4749 = vpop.permute.xlu0 %4748
        %4750 = vrot.lane.b32.xlu0 %v3074, 113
        %v4751 = vpop.permute.xlu0 %4750
        %4752 = vrot.lane.b32.xlu0 %v3076, 113
        %v4753 = vpop.permute.xlu0 %4752
        %4754 = vrot.lane.b32.xlu0 %v3078, 113
        %v4755 = vpop.permute.xlu0 %4754
        %4756 = vrot.lane.b32.xlu0 %v3080, 113
        %v4757 = vpop.permute.xlu0 %4756
        %4758 = vrot.lane.b32.xlu0 %v3082, 113
        %v4759 = vpop.permute.xlu0 %4758
        %4760 = vrot.lane.b32.xlu0 %v3084, 113
        %v4761 = vpop.permute.xlu0 %4760
        %4762 = vrot.lane.b32.xlu0 %v3086, 113
        %v4763 = vpop.permute.xlu0 %4762
        %4764 = vrot.lane.b32.xlu0 %v3088, 113
        %v4765 = vpop.permute.xlu0 %4764
        %4766 = vrot.lane.b32.xlu0 %v3090, 113
        %v4767 = vpop.permute.xlu0 %4766
        %4768 = vrot.lane.b32.xlu0 %v3092, 113
        %v4769 = vpop.permute.xlu0 %4768
        %4770 = vrot.lane.b32.xlu0 %v3094, 113
        %v4771 = vpop.permute.xlu0 %4770
        %4772 = vrot.lane.b32.xlu0 %v3096, 113
        %v4773 = vpop.permute.xlu0 %4772
        %4774 = vrot.lane.b32.xlu0 %v3098, 113
        %v4775 = vpop.permute.xlu0 %4774
        %4776 = vrot.lane.b32.xlu0 %v3100, 113
        %v4777 = vpop.permute.xlu0 %4776
        %4778 = vrot.lane.b32.xlu0 %v3102, 113
        %v4779 = vpop.permute.xlu0 %4778
        %4780 = vrot.lane.b32.xlu0 %v3073, 113
        %v4781 = vpop.permute.xlu0 %4780
        %4782 = vrot.lane.b32.xlu0 %v3075, 113
        %v4783 = vpop.permute.xlu0 %4782
        %4784 = vrot.lane.b32.xlu0 %v3077, 113
        %v4785 = vpop.permute.xlu0 %4784
        %4786 = vrot.lane.b32.xlu0 %v3079, 113
        %v4787 = vpop.permute.xlu0 %4786
        %4788 = vrot.lane.b32.xlu0 %v3081, 113
        %v4789 = vpop.permute.xlu0 %4788
        %4790 = vrot.lane.b32.xlu0 %v3083, 113
        %v4791 = vpop.permute.xlu0 %4790
        %4792 = vrot.lane.b32.xlu0 %v3085, 113
        %v4793 = vpop.permute.xlu0 %4792
        %4794 = vrot.lane.b32.xlu0 %v3087, 113
        %v4795 = vpop.permute.xlu0 %4794
        %4796 = vrot.lane.b32.xlu0 %v3089, 113
        %v4797 = vpop.permute.xlu0 %4796
        %4798 = vrot.lane.b32.xlu0 %v3091, 113
        %v4799 = vpop.permute.xlu0 %4798
        %4800 = vrot.lane.b32.xlu0 %v3093, 113
        %v4801 = vpop.permute.xlu0 %4800
        %4802 = vrot.lane.b32.xlu0 %v3095, 113
        %v4803 = vpop.permute.xlu0 %4802
        %4804 = vrot.lane.b32.xlu0 %v3097, 113
        %v4805 = vpop.permute.xlu0 %4804
        %4806 = vrot.lane.b32.xlu0 %v3099, 113
        %v4807 = vpop.permute.xlu0 %4806
        %4808 = vrot.lane.b32.xlu0 %v3101, 113
        %v4809 = vpop.permute.xlu0 %4808
        %4810 = vrot.lane.b32.xlu0 %v3103, 113
        %v4811 = vpop.permute.xlu0 %4810
        %v4812 = vsel %vm2087, %v4749, %v4781
        %v4813 = vsel %vm2087, %v4751, %v4783
        %v4814 = vsel %vm2087, %v4753, %v4785
        %v4815 = vsel %vm2087, %v4755, %v4787
        %v4816 = vsel %vm2087, %v4757, %v4789
        %v4817 = vsel %vm2087, %v4759, %v4791
        %v4818 = vsel %vm2087, %v4761, %v4793
        %v4819 = vsel %vm2087, %v4763, %v4795
        %v4820 = vsel %vm2087, %v4765, %v4797
        %v4821 = vsel %vm2087, %v4767, %v4799
        %v4822 = vsel %vm2087, %v4769, %v4801
        %v4823 = vsel %vm2087, %v4771, %v4803
        %v4824 = vsel %vm2087, %v4773, %v4805
        %v4825 = vsel %vm2087, %v4775, %v4807
        %v4826 = vsel %vm2087, %v4777, %v4809
        %v4827 = vsel %vm2087, %v4779, %v4811
        %v4828 = vsel %vm2087, %v4781, %v4749
        %v4829 = vsel %vm2087, %v4783, %v4751
        %v4830 = vsel %vm2087, %v4785, %v4753
        %v4831 = vsel %vm2087, %v4787, %v4755
        %v4832 = vsel %vm2087, %v4789, %v4757
        %v4833 = vsel %vm2087, %v4791, %v4759
        %v4834 = vsel %vm2087, %v4793, %v4761
        %v4835 = vsel %vm2087, %v4795, %v4763
        %v4836 = vsel %vm2087, %v4797, %v4765
        %v4837 = vsel %vm2087, %v4799, %v4767
        %v4838 = vsel %vm2087, %v4801, %v4769
        %v4839 = vsel %vm2087, %v4803, %v4771
        %v4840 = vsel %vm2087, %v4805, %v4773
        %v4841 = vsel %vm2087, %v4807, %v4775
        %v4842 = vsel %vm2087, %v4809, %v4777
        %v4843 = vsel %vm2087, %v4811, %v4779
        %v4844 = vmul.f32 %v4812, %v358
        %v4845 = vmul.f32 %v4828, %v359
        %v4846 = vmul.f32 %v4813, %v358
        %v4847 = vmul.f32 %v4829, %v359
        %v4848 = vmul.f32 %v4814, %v358
        %v4849 = vmul.f32 %v4830, %v359
        %v4850 = vmul.f32 %v4815, %v358
        %v4851 = vmul.f32 %v4831, %v359
        %v4852 = vmul.f32 %v4816, %v358
        %v4853 = vmul.f32 %v4832, %v359
        %v4854 = vmul.f32 %v4817, %v358
        %v4855 = vmul.f32 %v4833, %v359
        %v4856 = vmul.f32 %v4818, %v358
        %v4857 = vmul.f32 %v4834, %v359
        %v4858 = vmul.f32 %v4819, %v358
        %v4859 = vmul.f32 %v4835, %v359
        %v4860 = vmul.f32 %v4820, %v358
        %v4861 = vmul.f32 %v4836, %v359
        %v4862 = vmul.f32 %v4821, %v358
        %v4863 = vmul.f32 %v4837, %v359
        %v4864 = vmul.f32 %v4822, %v358
        %v4865 = vmul.f32 %v4838, %v359
        %v4866 = vmul.f32 %v4823, %v358
        %v4867 = vmul.f32 %v4839, %v359
        %v4868 = vmul.f32 %v4824, %v358
        %v4869 = vmul.f32 %v4840, %v359
        %v4870 = vmul.f32 %v4825, %v358
        %v4871 = vmul.f32 %v4841, %v359
        %v4872 = vmul.f32 %v4826, %v358
        %v4873 = vmul.f32 %v4842, %v359
        %v4874 = vmul.f32 %v4827, %v358
        %v4875 = vmul.f32 %v4843, %v359
        %v4876 = vld [vmem:[#allocation7 + $0x300] sm:$0xff]
        %v4877 = vld [vmem:[#allocation7 + $0x308] sm:$0xff]
        %v4878 = vld [vmem:[#allocation7 + $0x310] sm:$0xff]
        %v4879 = vld [vmem:[#allocation7 + $0x318] sm:$0xff]
        %v4880 = vld [vmem:[#allocation7 + $0x320] sm:$0xff]
        %v4881 = vld [vmem:[#allocation7 + $0x328] sm:$0xff]
        %v4882 = vld [vmem:[#allocation7 + $0x330] sm:$0xff]
        %v4883 = vld [vmem:[#allocation7 + $0x338] sm:$0xff]
        %v4884 = vld [vmem:[#allocation7 + $0x340] sm:$0xff]
        %v4885 = vld [vmem:[#allocation7 + $0x348] sm:$0xff]
        %v4886 = vld [vmem:[#allocation7 + $0x350] sm:$0xff]
        %v4887 = vld [vmem:[#allocation7 + $0x358] sm:$0xff]
        %v4888 = vld [vmem:[#allocation7 + $0x360] sm:$0xff]
        %v4889 = vld [vmem:[#allocation7 + $0x368] sm:$0xff]
        %v4890 = vld [vmem:[#allocation7 + $0x370] sm:$0xff]
        %v4891 = vld [vmem:[#allocation7 + $0x378] sm:$0xff]
        %4892 = vmatpush.msra.mxu0 %v4874
        %4893 = vmatpush.msra.mxu0 %v4872
        %4894 = vmatpush.msra.mxu0 %v4870
        %4895 = vmatpush.msra.mxu0 %v4868
        %4896 = vmatpush.msra.mxu0 %v4866
        %4897 = vmatpush.msra.mxu0 %v4864
        %4898 = vmatpush.msra.mxu0 %v4862
        %4899 = vmatpush.msra.mxu0 %v4860
        %4900 = vmatpush.msra.mxu0 %v4858
        %4901 = vmatpush.msra.mxu0 %v4856
        %4902 = vmatpush.msra.mxu0 %v4854
        %4903 = vmatpush.msra.mxu0 %v4852
        %4904 = vmatpush.msra.mxu0 %v4850
        %4905 = vmatpush.msra.mxu0 %v4848
        %4906 = vmatpush.msra.mxu0 %v4846
        %4907 = vmatpush.msra.mxu0 %v4844
        %4908 = vmatmul.f32.gmra.mxu0 %v4876
        %v4909 = vpop.f32.mrf.mxu0
        %v4910 = vadd.f32 0.0, %v4909
        %4911 = vmatmul.f32.gmra.mxu0 %v4877
        %v4912 = vpop.f32.mrf.mxu0
        %v4913 = vadd.f32 0.0, %v4912
        %4914 = vmatmul.f32.gmra.mxu0 %v4878
        %v4915 = vpop.f32.mrf.mxu0
        %v4916 = vadd.f32 0.0, %v4915
        %4917 = vmatmul.f32.gmra.mxu0 %v4879
        %v4918 = vpop.f32.mrf.mxu0
        %v4919 = vadd.f32 0.0, %v4918
        %4920 = vmatmul.f32.gmra.mxu0 %v4880
        %v4921 = vpop.f32.mrf.mxu0
        %v4922 = vadd.f32 0.0, %v4921
        %4923 = vmatmul.f32.gmra.mxu0 %v4881
        %v4924 = vpop.f32.mrf.mxu0
        %v4925 = vadd.f32 0.0, %v4924
        %4926 = vmatmul.f32.gmra.mxu0 %v4882
        %v4927 = vpop.f32.mrf.mxu0
        %v4928 = vadd.f32 0.0, %v4927
        %4929 = vmatmul.f32.gmra.mxu0 %v4883
        %v4930 = vpop.f32.mrf.mxu0
        %v4931 = vadd.f32 0.0, %v4930
        %4932 = vmatmul.f32.gmra.mxu0 %v4884
        %v4933 = vpop.f32.mrf.mxu0
        %v4934 = vadd.f32 0.0, %v4933
        %4935 = vmatmul.f32.gmra.mxu0 %v4885
        %v4936 = vpop.f32.mrf.mxu0
        %v4937 = vadd.f32 0.0, %v4936
        %4938 = vmatmul.f32.gmra.mxu0 %v4886
        %v4939 = vpop.f32.mrf.mxu0
        %v4940 = vadd.f32 0.0, %v4939
        %4941 = vmatmul.f32.gmra.mxu0 %v4887
        %v4942 = vpop.f32.mrf.mxu0
        %v4943 = vadd.f32 0.0, %v4942
        %4944 = vmatmul.f32.gmra.mxu0 %v4888
        %v4945 = vpop.f32.mrf.mxu0
        %v4946 = vadd.f32 0.0, %v4945
        %4947 = vmatmul.f32.gmra.mxu0 %v4889
        %v4948 = vpop.f32.mrf.mxu0
        %v4949 = vadd.f32 0.0, %v4948
        %4950 = vmatmul.f32.gmra.mxu0 %v4890
        %v4951 = vpop.f32.mrf.mxu0
        %v4952 = vadd.f32 0.0, %v4951
        %4953 = vmatmul.f32.gmra.mxu0 %v4891
        %v4954 = vpop.f32.mrf.mxu0
        %v4955 = vadd.f32 0.0, %v4954
        %4956 = vdwg.mxu0
        %4957 = vmatpush.msra.mxu0 %v4875
        %4958 = vmatpush.msra.mxu0 %v4873
        %4959 = vmatpush.msra.mxu0 %v4871
        %4960 = vmatpush.msra.mxu0 %v4869
        %4961 = vmatpush.msra.mxu0 %v4867
        %4962 = vmatpush.msra.mxu0 %v4865
        %4963 = vmatpush.msra.mxu0 %v4863
        %4964 = vmatpush.msra.mxu0 %v4861
        %4965 = vmatpush.msra.mxu0 %v4859
        %4966 = vmatpush.msra.mxu0 %v4857
        %4967 = vmatpush.msra.mxu0 %v4855
        %4968 = vmatpush.msra.mxu0 %v4853
        %4969 = vmatpush.msra.mxu0 %v4851
        %4970 = vmatpush.msra.mxu0 %v4849
        %4971 = vmatpush.msra.mxu0 %v4847
        %4972 = vmatpush.msra.mxu0 %v4845
        %4973 = vmatmul.f32.gmra.mxu0 %v4876
        %v4974 = vpop.f32.mrf.mxu0
        %v4975 = vadd.f32 0.0, %v4974
        %4976 = vmatmul.f32.gmra.mxu0 %v4877
        %v4977 = vpop.f32.mrf.mxu0
        %v4978 = vadd.f32 0.0, %v4977
        %4979 = vmatmul.f32.gmra.mxu0 %v4878
        %v4980 = vpop.f32.mrf.mxu0
        %v4981 = vadd.f32 0.0, %v4980
        %4982 = vmatmul.f32.gmra.mxu0 %v4879
        %v4983 = vpop.f32.mrf.mxu0
        %v4984 = vadd.f32 0.0, %v4983
        %4985 = vmatmul.f32.gmra.mxu0 %v4880
        %v4986 = vpop.f32.mrf.mxu0
        %v4987 = vadd.f32 0.0, %v4986
        %4988 = vmatmul.f32.gmra.mxu0 %v4881
        %v4989 = vpop.f32.mrf.mxu0
        %v4990 = vadd.f32 0.0, %v4989
        %4991 = vmatmul.f32.gmra.mxu0 %v4882
        %v4992 = vpop.f32.mrf.mxu0
        %v4993 = vadd.f32 0.0, %v4992
        %4994 = vmatmul.f32.gmra.mxu0 %v4883
        %v4995 = vpop.f32.mrf.mxu0
        %v4996 = vadd.f32 0.0, %v4995
        %4997 = vmatmul.f32.gmra.mxu0 %v4884
        %v4998 = vpop.f32.mrf.mxu0
        %v4999 = vadd.f32 0.0, %v4998
        %5000 = vmatmul.f32.gmra.mxu0 %v4885
        %v5001 = vpop.f32.mrf.mxu0
        %v5002 = vadd.f32 0.0, %v5001
        %5003 = vmatmul.f32.gmra.mxu0 %v4886
        %v5004 = vpop.f32.mrf.mxu0
        %v5005 = vadd.f32 0.0, %v5004
        %5006 = vmatmul.f32.gmra.mxu0 %v4887
        %v5007 = vpop.f32.mrf.mxu0
        %v5008 = vadd.f32 0.0, %v5007
        %5009 = vmatmul.f32.gmra.mxu0 %v4888
        %v5010 = vpop.f32.mrf.mxu0
        %v5011 = vadd.f32 0.0, %v5010
        %5012 = vmatmul.f32.gmra.mxu0 %v4889
        %v5013 = vpop.f32.mrf.mxu0
        %v5014 = vadd.f32 0.0, %v5013
        %5015 = vmatmul.f32.gmra.mxu0 %v4890
        %v5016 = vpop.f32.mrf.mxu0
        %v5017 = vadd.f32 0.0, %v5016
        %5018 = vmatmul.f32.gmra.mxu0 %v4891
        %v5019 = vpop.f32.mrf.mxu0
        %v5020 = vadd.f32 0.0, %v5019
        %5021 = vdwg.mxu0
        %v5022 = vadd.f32 %v4716, %v4910
        %v5023 = vadd.f32 %v4717, %v4975
        %v5024 = vadd.f32 %v4718, %v4913
        %v5025 = vadd.f32 %v4719, %v4978
        %v5026 = vadd.f32 %v4720, %v4916
        %v5027 = vadd.f32 %v4721, %v4981
        %v5028 = vadd.f32 %v4722, %v4919
        %v5029 = vadd.f32 %v4723, %v4984
        %v5030 = vadd.f32 %v4724, %v4922
        %v5031 = vadd.f32 %v4725, %v4987
        %v5032 = vadd.f32 %v4726, %v4925
        %v5033 = vadd.f32 %v4727, %v4990
        %v5034 = vadd.f32 %v4728, %v4928
        %v5035 = vadd.f32 %v4729, %v4993
        %v5036 = vadd.f32 %v4730, %v4931
        %v5037 = vadd.f32 %v4731, %v4996
        %v5038 = vadd.f32 %v4732, %v4934
        %v5039 = vadd.f32 %v4733, %v4999
        %v5040 = vadd.f32 %v4734, %v4937
        %v5041 = vadd.f32 %v4735, %v5002
        %v5042 = vadd.f32 %v4736, %v4940
        %v5043 = vadd.f32 %v4737, %v5005
        %v5044 = vadd.f32 %v4738, %v4943
        %v5045 = vadd.f32 %v4739, %v5008
        %v5046 = vadd.f32 %v4740, %v4946
        %v5047 = vadd.f32 %v4741, %v5011
        %v5048 = vadd.f32 %v4742, %v4949
        %v5049 = vadd.f32 %v4743, %v5014
        %v5050 = vadd.f32 %v4744, %v4952
        %v5051 = vadd.f32 %v4745, %v5017
        %v5052 = vadd.f32 %v4746, %v4955
        %v5053 = vadd.f32 %v4747, %v5020
        %5054 = vrot.lane.b32.xlu0 %v3072, 112
        %v5055 = vpop.permute.xlu0 %5054
        %5056 = vrot.lane.b32.xlu0 %v3074, 112
        %v5057 = vpop.permute.xlu0 %5056
        %5058 = vrot.lane.b32.xlu0 %v3076, 112
        %v5059 = vpop.permute.xlu0 %5058
        %5060 = vrot.lane.b32.xlu0 %v3078, 112
        %v5061 = vpop.permute.xlu0 %5060
        %5062 = vrot.lane.b32.xlu0 %v3080, 112
        %v5063 = vpop.permute.xlu0 %5062
        %5064 = vrot.lane.b32.xlu0 %v3082, 112
        %v5065 = vpop.permute.xlu0 %5064
        %5066 = vrot.lane.b32.xlu0 %v3084, 112
        %v5067 = vpop.permute.xlu0 %5066
        %5068 = vrot.lane.b32.xlu0 %v3086, 112
        %v5069 = vpop.permute.xlu0 %5068
        %5070 = vrot.lane.b32.xlu0 %v3088, 112
        %v5071 = vpop.permute.xlu0 %5070
        %5072 = vrot.lane.b32.xlu0 %v3090, 112
        %v5073 = vpop.permute.xlu0 %5072
        %5074 = vrot.lane.b32.xlu0 %v3092, 112
        %v5075 = vpop.permute.xlu0 %5074
        %5076 = vrot.lane.b32.xlu0 %v3094, 112
        %v5077 = vpop.permute.xlu0 %5076
        %5078 = vrot.lane.b32.xlu0 %v3096, 112
        %v5079 = vpop.permute.xlu0 %5078
        %5080 = vrot.lane.b32.xlu0 %v3098, 112
        %v5081 = vpop.permute.xlu0 %5080
        %5082 = vrot.lane.b32.xlu0 %v3100, 112
        %v5083 = vpop.permute.xlu0 %5082
        %5084 = vrot.lane.b32.xlu0 %v3102, 112
        %v5085 = vpop.permute.xlu0 %5084
        %5086 = vrot.lane.b32.xlu0 %v3073, 112
        %v5087 = vpop.permute.xlu0 %5086
        %5088 = vrot.lane.b32.xlu0 %v3075, 112
        %v5089 = vpop.permute.xlu0 %5088
        %5090 = vrot.lane.b32.xlu0 %v3077, 112
        %v5091 = vpop.permute.xlu0 %5090
        %5092 = vrot.lane.b32.xlu0 %v3079, 112
        %v5093 = vpop.permute.xlu0 %5092
        %5094 = vrot.lane.b32.xlu0 %v3081, 112
        %v5095 = vpop.permute.xlu0 %5094
        %5096 = vrot.lane.b32.xlu0 %v3083, 112
        %v5097 = vpop.permute.xlu0 %5096
        %5098 = vrot.lane.b32.xlu0 %v3085, 112
        %v5099 = vpop.permute.xlu0 %5098
        %5100 = vrot.lane.b32.xlu0 %v3087, 112
        %v5101 = vpop.permute.xlu0 %5100
        %5102 = vrot.lane.b32.xlu0 %v3089, 112
        %v5103 = vpop.permute.xlu0 %5102
        %5104 = vrot.lane.b32.xlu0 %v3091, 112
        %v5105 = vpop.permute.xlu0 %5104
        %5106 = vrot.lane.b32.xlu0 %v3093, 112
        %v5107 = vpop.permute.xlu0 %5106
        %5108 = vrot.lane.b32.xlu0 %v3095, 112
        %v5109 = vpop.permute.xlu0 %5108
        %5110 = vrot.lane.b32.xlu0 %v3097, 112
        %v5111 = vpop.permute.xlu0 %5110
        %5112 = vrot.lane.b32.xlu0 %v3099, 112
        %v5113 = vpop.permute.xlu0 %5112
        %5114 = vrot.lane.b32.xlu0 %v3101, 112
        %v5115 = vpop.permute.xlu0 %5114
        %5116 = vrot.lane.b32.xlu0 %v3103, 112
        %v5117 = vpop.permute.xlu0 %5116
        %v5118 = vsel %vm2394, %v5055, %v5087
        %v5119 = vsel %vm2394, %v5057, %v5089
        %v5120 = vsel %vm2394, %v5059, %v5091
        %v5121 = vsel %vm2394, %v5061, %v5093
        %v5122 = vsel %vm2394, %v5063, %v5095
        %v5123 = vsel %vm2394, %v5065, %v5097
        %v5124 = vsel %vm2394, %v5067, %v5099
        %v5125 = vsel %vm2394, %v5069, %v5101
        %v5126 = vsel %vm2394, %v5071, %v5103
        %v5127 = vsel %vm2394, %v5073, %v5105
        %v5128 = vsel %vm2394, %v5075, %v5107
        %v5129 = vsel %vm2394, %v5077, %v5109
        %v5130 = vsel %vm2394, %v5079, %v5111
        %v5131 = vsel %vm2394, %v5081, %v5113
        %v5132 = vsel %vm2394, %v5083, %v5115
        %v5133 = vsel %vm2394, %v5085, %v5117
        %v5134 = vsel %vm2394, %v5087, %v5055
        %v5135 = vsel %vm2394, %v5089, %v5057
        %v5136 = vsel %vm2394, %v5091, %v5059
        %v5137 = vsel %vm2394, %v5093, %v5061
        %v5138 = vsel %vm2394, %v5095, %v5063
        %v5139 = vsel %vm2394, %v5097, %v5065
        %v5140 = vsel %vm2394, %v5099, %v5067
        %v5141 = vsel %vm2394, %v5101, %v5069
        %v5142 = vsel %vm2394, %v5103, %v5071
        %v5143 = vsel %vm2394, %v5105, %v5073
        %v5144 = vsel %vm2394, %v5107, %v5075
        %v5145 = vsel %vm2394, %v5109, %v5077
        %v5146 = vsel %vm2394, %v5111, %v5079
        %v5147 = vsel %vm2394, %v5113, %v5081
        %v5148 = vsel %vm2394, %v5115, %v5083
        %v5149 = vsel %vm2394, %v5117, %v5085
        %v5150 = vmul.f32 %v5118, %v364
        %v5151 = vmul.f32 %v5134, %v365
        %v5152 = vmul.f32 %v5119, %v364
        %v5153 = vmul.f32 %v5135, %v365
        %v5154 = vmul.f32 %v5120, %v364
        %v5155 = vmul.f32 %v5136, %v365
        %v5156 = vmul.f32 %v5121, %v364
        %v5157 = vmul.f32 %v5137, %v365
        %v5158 = vmul.f32 %v5122, %v364
        %v5159 = vmul.f32 %v5138, %v365
        %v5160 = vmul.f32 %v5123, %v364
        %v5161 = vmul.f32 %v5139, %v365
        %v5162 = vmul.f32 %v5124, %v364
        %v5163 = vmul.f32 %v5140, %v365
        %v5164 = vmul.f32 %v5125, %v364
        %v5165 = vmul.f32 %v5141, %v365
        %v5166 = vmul.f32 %v5126, %v364
        %v5167 = vmul.f32 %v5142, %v365
        %v5168 = vmul.f32 %v5127, %v364
        %v5169 = vmul.f32 %v5143, %v365
        %v5170 = vmul.f32 %v5128, %v364
        %v5171 = vmul.f32 %v5144, %v365
        %v5172 = vmul.f32 %v5129, %v364
        %v5173 = vmul.f32 %v5145, %v365
        %v5174 = vmul.f32 %v5130, %v364
        %v5175 = vmul.f32 %v5146, %v365
        %v5176 = vmul.f32 %v5131, %v364
        %v5177 = vmul.f32 %v5147, %v365
        %v5178 = vmul.f32 %v5132, %v364
        %v5179 = vmul.f32 %v5148, %v365
        %v5180 = vmul.f32 %v5133, %v364
        %v5181 = vmul.f32 %v5149, %v365
        %v5182 = vld [vmem:[#allocation7 + $0x380] sm:$0xff]
        %v5183 = vld [vmem:[#allocation7 + $0x388] sm:$0xff]
        %v5184 = vld [vmem:[#allocation7 + $0x390] sm:$0xff]
        %v5185 = vld [vmem:[#allocation7 + $0x398] sm:$0xff]
        %v5186 = vld [vmem:[#allocation7 + $0x3a0] sm:$0xff]
        %v5187 = vld [vmem:[#allocation7 + $0x3a8] sm:$0xff]
        %v5188 = vld [vmem:[#allocation7 + $0x3b0] sm:$0xff]
        %v5189 = vld [vmem:[#allocation7 + $0x3b8] sm:$0xff]
        %v5190 = vld [vmem:[#allocation7 + $0x3c0] sm:$0xff]
        %v5191 = vld [vmem:[#allocation7 + $0x3c8] sm:$0xff]
        %v5192 = vld [vmem:[#allocation7 + $0x3d0] sm:$0xff]
        %v5193 = vld [vmem:[#allocation7 + $0x3d8] sm:$0xff]
        %v5194 = vld [vmem:[#allocation7 + $0x3e0] sm:$0xff]
        %v5195 = vld [vmem:[#allocation7 + $0x3e8] sm:$0xff]
        %v5196 = vld [vmem:[#allocation7 + $0x3f0] sm:$0xff]
        %v5197 = vld [vmem:[#allocation7 + $0x3f8] sm:$0xff]
        %5198 = vmatpush.msra.mxu0 %v5180
        %5199 = vmatpush.msra.mxu0 %v5178
        %5200 = vmatpush.msra.mxu0 %v5176
        %5201 = vmatpush.msra.mxu0 %v5174
        %5202 = vmatpush.msra.mxu0 %v5172
        %5203 = vmatpush.msra.mxu0 %v5170
        %5204 = vmatpush.msra.mxu0 %v5168
        %5205 = vmatpush.msra.mxu0 %v5166
        %5206 = vmatpush.msra.mxu0 %v5164
        %5207 = vmatpush.msra.mxu0 %v5162
        %5208 = vmatpush.msra.mxu0 %v5160
        %5209 = vmatpush.msra.mxu0 %v5158
        %5210 = vmatpush.msra.mxu0 %v5156
        %5211 = vmatpush.msra.mxu0 %v5154
        %5212 = vmatpush.msra.mxu0 %v5152
        %5213 = vmatpush.msra.mxu0 %v5150
        %5214 = vmatmul.f32.gmra.mxu0 %v5182
        %v5215 = vpop.f32.mrf.mxu0
        %v5216 = vadd.f32 0.0, %v5215
        %5217 = vmatmul.f32.gmra.mxu0 %v5183
        %v5218 = vpop.f32.mrf.mxu0
        %v5219 = vadd.f32 0.0, %v5218
        %5220 = vmatmul.f32.gmra.mxu0 %v5184
        %v5221 = vpop.f32.mrf.mxu0
        %v5222 = vadd.f32 0.0, %v5221
        %5223 = vmatmul.f32.gmra.mxu0 %v5185
        %v5224 = vpop.f32.mrf.mxu0
        %v5225 = vadd.f32 0.0, %v5224
        %5226 = vmatmul.f32.gmra.mxu0 %v5186
        %v5227 = vpop.f32.mrf.mxu0
        %v5228 = vadd.f32 0.0, %v5227
        %5229 = vmatmul.f32.gmra.mxu0 %v5187
        %v5230 = vpop.f32.mrf.mxu0
        %v5231 = vadd.f32 0.0, %v5230
        %5232 = vmatmul.f32.gmra.mxu0 %v5188
        %v5233 = vpop.f32.mrf.mxu0
        %v5234 = vadd.f32 0.0, %v5233
        %5235 = vmatmul.f32.gmra.mxu0 %v5189
        %v5236 = vpop.f32.mrf.mxu0
        %v5237 = vadd.f32 0.0, %v5236
        %5238 = vmatmul.f32.gmra.mxu0 %v5190
        %v5239 = vpop.f32.mrf.mxu0
        %v5240 = vadd.f32 0.0, %v5239
        %5241 = vmatmul.f32.gmra.mxu0 %v5191
        %v5242 = vpop.f32.mrf.mxu0
        %v5243 = vadd.f32 0.0, %v5242
        %5244 = vmatmul.f32.gmra.mxu0 %v5192
        %v5245 = vpop.f32.mrf.mxu0
        %v5246 = vadd.f32 0.0, %v5245
        %5247 = vmatmul.f32.gmra.mxu0 %v5193
        %v5248 = vpop.f32.mrf.mxu0
        %v5249 = vadd.f32 0.0, %v5248
        %5250 = vmatmul.f32.gmra.mxu0 %v5194
        %v5251 = vpop.f32.mrf.mxu0
        %v5252 = vadd.f32 0.0, %v5251
        %5253 = vmatmul.f32.gmra.mxu0 %v5195
        %v5254 = vpop.f32.mrf.mxu0
        %v5255 = vadd.f32 0.0, %v5254
        %5256 = vmatmul.f32.gmra.mxu0 %v5196
        %v5257 = vpop.f32.mrf.mxu0
        %v5258 = vadd.f32 0.0, %v5257
        %5259 = vmatmul.f32.gmra.mxu0 %v5197
        %v5260 = vpop.f32.mrf.mxu0
        %v5261 = vadd.f32 0.0, %v5260
        %5262 = vdwg.mxu0
        %5263 = vmatpush.msra.mxu0 %v5181
        %5264 = vmatpush.msra.mxu0 %v5179
        %5265 = vmatpush.msra.mxu0 %v5177
        %5266 = vmatpush.msra.mxu0 %v5175
        %5267 = vmatpush.msra.mxu0 %v5173
        %5268 = vmatpush.msra.mxu0 %v5171
        %5269 = vmatpush.msra.mxu0 %v5169
        %5270 = vmatpush.msra.mxu0 %v5167
        %5271 = vmatpush.msra.mxu0 %v5165
        %5272 = vmatpush.msra.mxu0 %v5163
        %5273 = vmatpush.msra.mxu0 %v5161
        %5274 = vmatpush.msra.mxu0 %v5159
        %5275 = vmatpush.msra.mxu0 %v5157
        %5276 = vmatpush.msra.mxu0 %v5155
        %5277 = vmatpush.msra.mxu0 %v5153
        %5278 = vmatpush.msra.mxu0 %v5151
        %5279 = vmatmul.f32.gmra.mxu0 %v5182
        %v5280 = vpop.f32.mrf.mxu0
        %v5281 = vadd.f32 0.0, %v5280
        %5282 = vmatmul.f32.gmra.mxu0 %v5183
        %v5283 = vpop.f32.mrf.mxu0
        %v5284 = vadd.f32 0.0, %v5283
        %5285 = vmatmul.f32.gmra.mxu0 %v5184
        %v5286 = vpop.f32.mrf.mxu0
        %v5287 = vadd.f32 0.0, %v5286
        %5288 = vmatmul.f32.gmra.mxu0 %v5185
        %v5289 = vpop.f32.mrf.mxu0
        %v5290 = vadd.f32 0.0, %v5289
        %5291 = vmatmul.f32.gmra.mxu0 %v5186
        %v5292 = vpop.f32.mrf.mxu0
        %v5293 = vadd.f32 0.0, %v5292
        %5294 = vmatmul.f32.gmra.mxu0 %v5187
        %v5295 = vpop.f32.mrf.mxu0
        %v5296 = vadd.f32 0.0, %v5295
        %5297 = vmatmul.f32.gmra.mxu0 %v5188
        %v5298 = vpop.f32.mrf.mxu0
        %v5299 = vadd.f32 0.0, %v5298
        %5300 = vmatmul.f32.gmra.mxu0 %v5189
        %v5301 = vpop.f32.mrf.mxu0
        %v5302 = vadd.f32 0.0, %v5301
        %5303 = vmatmul.f32.gmra.mxu0 %v5190
        %v5304 = vpop.f32.mrf.mxu0
        %v5305 = vadd.f32 0.0, %v5304
        %5306 = vmatmul.f32.gmra.mxu0 %v5191
        %v5307 = vpop.f32.mrf.mxu0
        %v5308 = vadd.f32 0.0, %v5307
        %5309 = vmatmul.f32.gmra.mxu0 %v5192
        %v5310 = vpop.f32.mrf.mxu0
        %v5311 = vadd.f32 0.0, %v5310
        %5312 = vmatmul.f32.gmra.mxu0 %v5193
        %v5313 = vpop.f32.mrf.mxu0
        %v5314 = vadd.f32 0.0, %v5313
        %5315 = vmatmul.f32.gmra.mxu0 %v5194
        %v5316 = vpop.f32.mrf.mxu0
        %v5317 = vadd.f32 0.0, %v5316
        %5318 = vmatmul.f32.gmra.mxu0 %v5195
        %v5319 = vpop.f32.mrf.mxu0
        %v5320 = vadd.f32 0.0, %v5319
        %5321 = vmatmul.f32.gmra.mxu0 %v5196
        %v5322 = vpop.f32.mrf.mxu0
        %v5323 = vadd.f32 0.0, %v5322
        %5324 = vmatmul.f32.gmra.mxu0 %v5197
        %v5325 = vpop.f32.mrf.mxu0
        %v5326 = vadd.f32 0.0, %v5325
        %5327 = vdwg.mxu0
        %v5328 = vadd.f32 %v5022, %v5216
        %v5329 = vadd.f32 %v5023, %v5281
        %v5330 = vadd.f32 %v5024, %v5219
        %v5331 = vadd.f32 %v5025, %v5284
        %v5332 = vadd.f32 %v5026, %v5222
        %v5333 = vadd.f32 %v5027, %v5287
        %v5334 = vadd.f32 %v5028, %v5225
        %v5335 = vadd.f32 %v5029, %v5290
        %v5336 = vadd.f32 %v5030, %v5228
        %v5337 = vadd.f32 %v5031, %v5293
        %v5338 = vadd.f32 %v5032, %v5231
        %v5339 = vadd.f32 %v5033, %v5296
        %v5340 = vadd.f32 %v5034, %v5234
        %v5341 = vadd.f32 %v5035, %v5299
        %v5342 = vadd.f32 %v5036, %v5237
        %v5343 = vadd.f32 %v5037, %v5302
        %v5344 = vadd.f32 %v5038, %v5240
        %v5345 = vadd.f32 %v5039, %v5305
        %v5346 = vadd.f32 %v5040, %v5243
        %v5347 = vadd.f32 %v5041, %v5308
        %v5348 = vadd.f32 %v5042, %v5246
        %v5349 = vadd.f32 %v5043, %v5311
        %v5350 = vadd.f32 %v5044, %v5249
        %v5351 = vadd.f32 %v5045, %v5314
        %v5352 = vadd.f32 %v5046, %v5252
        %v5353 = vadd.f32 %v5047, %v5317
        %v5354 = vadd.f32 %v5048, %v5255
        %v5355 = vadd.f32 %v5049, %v5320
        %v5356 = vadd.f32 %v5050, %v5258
        %v5357 = vadd.f32 %v5051, %v5323
        %v5358 = vadd.f32 %v5052, %v5261
        %v5359 = vadd.f32 %v5053, %v5326
        %5360 = vrot.lane.b32.xlu0 %v3072, 111
        %v5361 = vpop.permute.xlu0 %5360
        %5362 = vrot.lane.b32.xlu0 %v3074, 111
        %v5363 = vpop.permute.xlu0 %5362
        %5364 = vrot.lane.b32.xlu0 %v3076, 111
        %v5365 = vpop.permute.xlu0 %5364
        %5366 = vrot.lane.b32.xlu0 %v3078, 111
        %v5367 = vpop.permute.xlu0 %5366
        %5368 = vrot.lane.b32.xlu0 %v3080, 111
        %v5369 = vpop.permute.xlu0 %5368
        %5370 = vrot.lane.b32.xlu0 %v3082, 111
        %v5371 = vpop.permute.xlu0 %5370
        %5372 = vrot.lane.b32.xlu0 %v3084, 111
        %v5373 = vpop.permute.xlu0 %5372
        %5374 = vrot.lane.b32.xlu0 %v3086, 111
        %v5375 = vpop.permute.xlu0 %5374
        %5376 = vrot.lane.b32.xlu0 %v3088, 111
        %v5377 = vpop.permute.xlu0 %5376
        %5378 = vrot.lane.b32.xlu0 %v3090, 111
        %v5379 = vpop.permute.xlu0 %5378
        %5380 = vrot.lane.b32.xlu0 %v3092, 111
        %v5381 = vpop.permute.xlu0 %5380
        %5382 = vrot.lane.b32.xlu0 %v3094, 111
        %v5383 = vpop.permute.xlu0 %5382
        %5384 = vrot.lane.b32.xlu0 %v3096, 111
        %v5385 = vpop.permute.xlu0 %5384
        %5386 = vrot.lane.b32.xlu0 %v3098, 111
        %v5387 = vpop.permute.xlu0 %5386
        %5388 = vrot.lane.b32.xlu0 %v3100, 111
        %v5389 = vpop.permute.xlu0 %5388
        %5390 = vrot.lane.b32.xlu0 %v3102, 111
        %v5391 = vpop.permute.xlu0 %5390
        %5392 = vrot.lane.b32.xlu0 %v3073, 111
        %v5393 = vpop.permute.xlu0 %5392
        %5394 = vrot.lane.b32.xlu0 %v3075, 111
        %v5395 = vpop.permute.xlu0 %5394
        %5396 = vrot.lane.b32.xlu0 %v3077, 111
        %v5397 = vpop.permute.xlu0 %5396
        %5398 = vrot.lane.b32.xlu0 %v3079, 111
        %v5399 = vpop.permute.xlu0 %5398
        %5400 = vrot.lane.b32.xlu0 %v3081, 111
        %v5401 = vpop.permute.xlu0 %5400
        %5402 = vrot.lane.b32.xlu0 %v3083, 111
        %v5403 = vpop.permute.xlu0 %5402
        %5404 = vrot.lane.b32.xlu0 %v3085, 111
        %v5405 = vpop.permute.xlu0 %5404
        %5406 = vrot.lane.b32.xlu0 %v3087, 111
        %v5407 = vpop.permute.xlu0 %5406
        %5408 = vrot.lane.b32.xlu0 %v3089, 111
        %v5409 = vpop.permute.xlu0 %5408
        %5410 = vrot.lane.b32.xlu0 %v3091, 111
        %v5411 = vpop.permute.xlu0 %5410
        %5412 = vrot.lane.b32.xlu0 %v3093, 111
        %v5413 = vpop.permute.xlu0 %5412
        %5414 = vrot.lane.b32.xlu0 %v3095, 111
        %v5415 = vpop.permute.xlu0 %5414
        %5416 = vrot.lane.b32.xlu0 %v3097, 111
        %v5417 = vpop.permute.xlu0 %5416
        %5418 = vrot.lane.b32.xlu0 %v3099, 111
        %v5419 = vpop.permute.xlu0 %5418
        %5420 = vrot.lane.b32.xlu0 %v3101, 111
        %v5421 = vpop.permute.xlu0 %5420
        %5422 = vrot.lane.b32.xlu0 %v3103, 111
        %v5423 = vpop.permute.xlu0 %5422
        %v5424 = vsel %vm2701, %v5361, %v5393
        %v5425 = vsel %vm2701, %v5363, %v5395
        %v5426 = vsel %vm2701, %v5365, %v5397
        %v5427 = vsel %vm2701, %v5367, %v5399
        %v5428 = vsel %vm2701, %v5369, %v5401
        %v5429 = vsel %vm2701, %v5371, %v5403
        %v5430 = vsel %vm2701, %v5373, %v5405
        %v5431 = vsel %vm2701, %v5375, %v5407
        %v5432 = vsel %vm2701, %v5377, %v5409
        %v5433 = vsel %vm2701, %v5379, %v5411
        %v5434 = vsel %vm2701, %v5381, %v5413
        %v5435 = vsel %vm2701, %v5383, %v5415
        %v5436 = vsel %vm2701, %v5385, %v5417
        %v5437 = vsel %vm2701, %v5387, %v5419
        %v5438 = vsel %vm2701, %v5389, %v5421
        %v5439 = vsel %vm2701, %v5391, %v5423
        %v5440 = vsel %vm2701, %v5393, %v5361
        %v5441 = vsel %vm2701, %v5395, %v5363
        %v5442 = vsel %vm2701, %v5397, %v5365
        %v5443 = vsel %vm2701, %v5399, %v5367
        %v5444 = vsel %vm2701, %v5401, %v5369
        %v5445 = vsel %vm2701, %v5403, %v5371
        %v5446 = vsel %vm2701, %v5405, %v5373
        %v5447 = vsel %vm2701, %v5407, %v5375
        %v5448 = vsel %vm2701, %v5409, %v5377
        %v5449 = vsel %vm2701, %v5411, %v5379
        %v5450 = vsel %vm2701, %v5413, %v5381
        %v5451 = vsel %vm2701, %v5415, %v5383
        %v5452 = vsel %vm2701, %v5417, %v5385
        %v5453 = vsel %vm2701, %v5419, %v5387
        %v5454 = vsel %vm2701, %v5421, %v5389
        %v5455 = vsel %vm2701, %v5423, %v5391
        %v5456 = vmul.f32 %v5424, %v372
        %v5457 = vmul.f32 %v5440, %v373
        %v5458 = vmul.f32 %v5425, %v372
        %v5459 = vmul.f32 %v5441, %v373
        %v5460 = vmul.f32 %v5426, %v372
        %v5461 = vmul.f32 %v5442, %v373
        %v5462 = vmul.f32 %v5427, %v372
        %v5463 = vmul.f32 %v5443, %v373
        %v5464 = vmul.f32 %v5428, %v372
        %v5465 = vmul.f32 %v5444, %v373
        %v5466 = vmul.f32 %v5429, %v372
        %v5467 = vmul.f32 %v5445, %v373
        %v5468 = vmul.f32 %v5430, %v372
        %v5469 = vmul.f32 %v5446, %v373
        %v5470 = vmul.f32 %v5431, %v372
        %v5471 = vmul.f32 %v5447, %v373
        %v5472 = vmul.f32 %v5432, %v372
        %v5473 = vmul.f32 %v5448, %v373
        %v5474 = vmul.f32 %v5433, %v372
        %v5475 = vmul.f32 %v5449, %v373
        %v5476 = vmul.f32 %v5434, %v372
        %v5477 = vmul.f32 %v5450, %v373
        %v5478 = vmul.f32 %v5435, %v372
        %v5479 = vmul.f32 %v5451, %v373
        %v5480 = vmul.f32 %v5436, %v372
        %v5481 = vmul.f32 %v5452, %v373
        %v5482 = vmul.f32 %v5437, %v372
        %v5483 = vmul.f32 %v5453, %v373
        %v5484 = vmul.f32 %v5438, %v372
        %v5485 = vmul.f32 %v5454, %v373
        %v5486 = vmul.f32 %v5439, %v372
        %v5487 = vmul.f32 %v5455, %v373
        %v5488 = vld [vmem:[#allocation7 + $0x400] sm:$0xff]
        %v5489 = vld [vmem:[#allocation7 + $0x408] sm:$0xff]
        %v5490 = vld [vmem:[#allocation7 + $0x410] sm:$0xff]
        %v5491 = vld [vmem:[#allocation7 + $0x418] sm:$0xff]
        %v5492 = vld [vmem:[#allocation7 + $0x420] sm:$0xff]
        %v5493 = vld [vmem:[#allocation7 + $0x428] sm:$0xff]
        %v5494 = vld [vmem:[#allocation7 + $0x430] sm:$0xff]
        %v5495 = vld [vmem:[#allocation7 + $0x438] sm:$0xff]
        %v5496 = vld [vmem:[#allocation7 + $0x440] sm:$0xff]
        %v5497 = vld [vmem:[#allocation7 + $0x448] sm:$0xff]
        %v5498 = vld [vmem:[#allocation7 + $0x450] sm:$0xff]
        %v5499 = vld [vmem:[#allocation7 + $0x458] sm:$0xff]
        %v5500 = vld [vmem:[#allocation7 + $0x460] sm:$0xff]
        %v5501 = vld [vmem:[#allocation7 + $0x468] sm:$0xff]
        %v5502 = vld [vmem:[#allocation7 + $0x470] sm:$0xff]
        %v5503 = vld [vmem:[#allocation7 + $0x478] sm:$0xff]
        %5504 = vmatpush.msra.mxu0 %v5486
        %5505 = vmatpush.msra.mxu0 %v5484
        %5506 = vmatpush.msra.mxu0 %v5482
        %5507 = vmatpush.msra.mxu0 %v5480
        %5508 = vmatpush.msra.mxu0 %v5478
        %5509 = vmatpush.msra.mxu0 %v5476
        %5510 = vmatpush.msra.mxu0 %v5474
        %5511 = vmatpush.msra.mxu0 %v5472
        %5512 = vmatpush.msra.mxu0 %v5470
        %5513 = vmatpush.msra.mxu0 %v5468
        %5514 = vmatpush.msra.mxu0 %v5466
        %5515 = vmatpush.msra.mxu0 %v5464
        %5516 = vmatpush.msra.mxu0 %v5462
        %5517 = vmatpush.msra.mxu0 %v5460
        %5518 = vmatpush.msra.mxu0 %v5458
        %5519 = vmatpush.msra.mxu0 %v5456
        %5520 = vmatmul.f32.gmra.mxu0 %v5488
        %v5521 = vpop.f32.mrf.mxu0
        %v5522 = vadd.f32 0.0, %v5521
        %5523 = vmatmul.f32.gmra.mxu0 %v5489
        %v5524 = vpop.f32.mrf.mxu0
        %v5525 = vadd.f32 0.0, %v5524
        %5526 = vmatmul.f32.gmra.mxu0 %v5490
        %v5527 = vpop.f32.mrf.mxu0
        %v5528 = vadd.f32 0.0, %v5527
        %5529 = vmatmul.f32.gmra.mxu0 %v5491
        %v5530 = vpop.f32.mrf.mxu0
        %v5531 = vadd.f32 0.0, %v5530
        %5532 = vmatmul.f32.gmra.mxu0 %v5492
        %v5533 = vpop.f32.mrf.mxu0
        %v5534 = vadd.f32 0.0, %v5533
        %5535 = vmatmul.f32.gmra.mxu0 %v5493
        %v5536 = vpop.f32.mrf.mxu0
        %v5537 = vadd.f32 0.0, %v5536
        %5538 = vmatmul.f32.gmra.mxu0 %v5494
        %v5539 = vpop.f32.mrf.mxu0
        %v5540 = vadd.f32 0.0, %v5539
        %5541 = vmatmul.f32.gmra.mxu0 %v5495
        %v5542 = vpop.f32.mrf.mxu0
        %v5543 = vadd.f32 0.0, %v5542
        %5544 = vmatmul.f32.gmra.mxu0 %v5496
        %v5545 = vpop.f32.mrf.mxu0
        %v5546 = vadd.f32 0.0, %v5545
        %5547 = vmatmul.f32.gmra.mxu0 %v5497
        %v5548 = vpop.f32.mrf.mxu0
        %v5549 = vadd.f32 0.0, %v5548
        %5550 = vmatmul.f32.gmra.mxu0 %v5498
        %v5551 = vpop.f32.mrf.mxu0
        %v5552 = vadd.f32 0.0, %v5551
        %5553 = vmatmul.f32.gmra.mxu0 %v5499
        %v5554 = vpop.f32.mrf.mxu0
        %v5555 = vadd.f32 0.0, %v5554
        %5556 = vmatmul.f32.gmra.mxu0 %v5500
        %v5557 = vpop.f32.mrf.mxu0
        %v5558 = vadd.f32 0.0, %v5557
        %5559 = vmatmul.f32.gmra.mxu0 %v5501
        %v5560 = vpop.f32.mrf.mxu0
        %v5561 = vadd.f32 0.0, %v5560
        %5562 = vmatmul.f32.gmra.mxu0 %v5502
        %v5563 = vpop.f32.mrf.mxu0
        %v5564 = vadd.f32 0.0, %v5563
        %5565 = vmatmul.f32.gmra.mxu0 %v5503
        %v5566 = vpop.f32.mrf.mxu0
        %v5567 = vadd.f32 0.0, %v5566
        %5568 = vdwg.mxu0
        %5569 = vmatpush.msra.mxu0 %v5487
        %5570 = vmatpush.msra.mxu0 %v5485
        %5571 = vmatpush.msra.mxu0 %v5483
        %5572 = vmatpush.msra.mxu0 %v5481
        %5573 = vmatpush.msra.mxu0 %v5479
        %5574 = vmatpush.msra.mxu0 %v5477
        %5575 = vmatpush.msra.mxu0 %v5475
        %5576 = vmatpush.msra.mxu0 %v5473
        %5577 = vmatpush.msra.mxu0 %v5471
        %5578 = vmatpush.msra.mxu0 %v5469
        %5579 = vmatpush.msra.mxu0 %v5467
        %5580 = vmatpush.msra.mxu0 %v5465
        %5581 = vmatpush.msra.mxu0 %v5463
        %5582 = vmatpush.msra.mxu0 %v5461
        %5583 = vmatpush.msra.mxu0 %v5459
        %5584 = vmatpush.msra.mxu0 %v5457
        %5585 = vmatmul.f32.gmra.mxu0 %v5488
        %v5586 = vpop.f32.mrf.mxu0
        %v5587 = vadd.f32 0.0, %v5586
        %5588 = vmatmul.f32.gmra.mxu0 %v5489
        %v5589 = vpop.f32.mrf.mxu0
        %v5590 = vadd.f32 0.0, %v5589
        %5591 = vmatmul.f32.gmra.mxu0 %v5490
        %v5592 = vpop.f32.mrf.mxu0
        %v5593 = vadd.f32 0.0, %v5592
        %5594 = vmatmul.f32.gmra.mxu0 %v5491
        %v5595 = vpop.f32.mrf.mxu0
        %v5596 = vadd.f32 0.0, %v5595
        %5597 = vmatmul.f32.gmra.mxu0 %v5492
        %v5598 = vpop.f32.mrf.mxu0
        %v5599 = vadd.f32 0.0, %v5598
        %5600 = vmatmul.f32.gmra.mxu0 %v5493
        %v5601 = vpop.f32.mrf.mxu0
        %v5602 = vadd.f32 0.0, %v5601
        %5603 = vmatmul.f32.gmra.mxu0 %v5494
        %v5604 = vpop.f32.mrf.mxu0
        %v5605 = vadd.f32 0.0, %v5604
        %5606 = vmatmul.f32.gmra.mxu0 %v5495
        %v5607 = vpop.f32.mrf.mxu0
        %v5608 = vadd.f32 0.0, %v5607
        %5609 = vmatmul.f32.gmra.mxu0 %v5496
        %v5610 = vpop.f32.mrf.mxu0
        %v5611 = vadd.f32 0.0, %v5610
        %5612 = vmatmul.f32.gmra.mxu0 %v5497
        %v5613 = vpop.f32.mrf.mxu0
        %v5614 = vadd.f32 0.0, %v5613
        %5615 = vmatmul.f32.gmra.mxu0 %v5498
        %v5616 = vpop.f32.mrf.mxu0
        %v5617 = vadd.f32 0.0, %v5616
        %5618 = vmatmul.f32.gmra.mxu0 %v5499
        %v5619 = vpop.f32.mrf.mxu0
        %v5620 = vadd.f32 0.0, %v5619
        %5621 = vmatmul.f32.gmra.mxu0 %v5500
        %v5622 = vpop.f32.mrf.mxu0
        %v5623 = vadd.f32 0.0, %v5622
        %5624 = vmatmul.f32.gmra.mxu0 %v5501
        %v5625 = vpop.f32.mrf.mxu0
        %v5626 = vadd.f32 0.0, %v5625
        %5627 = vmatmul.f32.gmra.mxu0 %v5502
        %v5628 = vpop.f32.mrf.mxu0
        %v5629 = vadd.f32 0.0, %v5628
        %5630 = vmatmul.f32.gmra.mxu0 %v5503
        %v5631 = vpop.f32.mrf.mxu0
        %v5632 = vadd.f32 0.0, %v5631
        %5633 = vdwg.mxu0
        %v5634 = vadd.f32 %v5328, %v5522
        %v5635 = vadd.f32 %v5329, %v5587
        %v5636 = vadd.f32 %v5330, %v5525
        %v5637 = vadd.f32 %v5331, %v5590
        %v5638 = vadd.f32 %v5332, %v5528
        %v5639 = vadd.f32 %v5333, %v5593
        %v5640 = vadd.f32 %v5334, %v5531
        %v5641 = vadd.f32 %v5335, %v5596
        %v5642 = vadd.f32 %v5336, %v5534
        %v5643 = vadd.f32 %v5337, %v5599
        %v5644 = vadd.f32 %v5338, %v5537
        %v5645 = vadd.f32 %v5339, %v5602
        %v5646 = vadd.f32 %v5340, %v5540
        %v5647 = vadd.f32 %v5341, %v5605
        %v5648 = vadd.f32 %v5342, %v5543
        %v5649 = vadd.f32 %v5343, %v5608
        %v5650 = vadd.f32 %v5344, %v5546
        %v5651 = vadd.f32 %v5345, %v5611
        %v5652 = vadd.f32 %v5346, %v5549
        %v5653 = vadd.f32 %v5347, %v5614
        %v5654 = vadd.f32 %v5348, %v5552
        %v5655 = vadd.f32 %v5349, %v5617
        %v5656 = vadd.f32 %v5350, %v5555
        %v5657 = vadd.f32 %v5351, %v5620
        %v5658 = vadd.f32 %v5352, %v5558
        %v5659 = vadd.f32 %v5353, %v5623
        %v5660 = vadd.f32 %v5354, %v5561
        %v5661 = vadd.f32 %v5355, %v5626
        %v5662 = vadd.f32 %v5356, %v5564
        %v5663 = vadd.f32 %v5357, %v5629
        %v5664 = vadd.f32 %v5358, %v5567
        %v5665 = vadd.f32 %v5359, %v5632
        %s5666 = scalar_lea.vmem %s3, 128
        %v5667 = vld [vmem:[%s5666] sm:$0xff]
        %v5668 = vld [vmem:[%s5666 + $0x8] sm:$0xff]
        %v5669 = vld [vmem:[%s5666 + $0x10] sm:$0xff]
        %v5670 = vld [vmem:[%s5666 + $0x18] sm:$0xff]
        %v5671 = vld [vmem:[%s5666 + $0x20] sm:$0xff]
        %v5672 = vld [vmem:[%s5666 + $0x28] sm:$0xff]
        %v5673 = vld [vmem:[%s5666 + $0x30] sm:$0xff]
        %v5674 = vld [vmem:[%s5666 + $0x38] sm:$0xff]
        %v5675 = vld [vmem:[%s5666 + $0x40] sm:$0xff]
        %v5676 = vld [vmem:[%s5666 + $0x48] sm:$0xff]
        %v5677 = vld [vmem:[%s5666 + $0x50] sm:$0xff]
        %v5678 = vld [vmem:[%s5666 + $0x58] sm:$0xff]
        %v5679 = vld [vmem:[%s5666 + $0x60] sm:$0xff]
        %v5680 = vld [vmem:[%s5666 + $0x68] sm:$0xff]
        %v5681 = vld [vmem:[%s5666 + $0x70] sm:$0xff]
        %v5682 = vld [vmem:[%s5666 + $0x78] sm:$0xff]
        %5684 = vset.pattern.permute.xlu0 0
        %5685 = vperm.xlu0 %5684, %v5667
        %v5686 = vpop.permute.xlu0 %5685
        %5689 = vset.pattern.permute.xlu0 0
        %5690 = vperm.xlu0 %5689, %v5668
        %v5691 = vpop.permute.xlu0 %5690
        %5694 = vset.pattern.permute.xlu0 0
        %5695 = vperm.xlu0 %5694, %v5669
        %v5696 = vpop.permute.xlu0 %5695
        %5699 = vset.pattern.permute.xlu0 0
        %5700 = vperm.xlu0 %5699, %v5670
        %v5701 = vpop.permute.xlu0 %5700
        %5704 = vset.pattern.permute.xlu0 0
        %5705 = vperm.xlu0 %5704, %v5671
        %v5706 = vpop.permute.xlu0 %5705
        %5709 = vset.pattern.permute.xlu0 0
        %5710 = vperm.xlu0 %5709, %v5672
        %v5711 = vpop.permute.xlu0 %5710
        %5714 = vset.pattern.permute.xlu0 0
        %5715 = vperm.xlu0 %5714, %v5673
        %v5716 = vpop.permute.xlu0 %5715
        %5719 = vset.pattern.permute.xlu0 0
        %5720 = vperm.xlu0 %5719, %v5674
        %v5721 = vpop.permute.xlu0 %5720
        %5724 = vset.pattern.permute.xlu0 0
        %5725 = vperm.xlu0 %5724, %v5675
        %v5726 = vpop.permute.xlu0 %5725
        %5729 = vset.pattern.permute.xlu0 0
        %5730 = vperm.xlu0 %5729, %v5676
        %v5731 = vpop.permute.xlu0 %5730
        %5734 = vset.pattern.permute.xlu0 0
        %5735 = vperm.xlu0 %5734, %v5677
        %v5736 = vpop.permute.xlu0 %5735
        %5739 = vset.pattern.permute.xlu0 0
        %5740 = vperm.xlu0 %5739, %v5678
        %v5741 = vpop.permute.xlu0 %5740
        %5744 = vset.pattern.permute.xlu0 0
        %5745 = vperm.xlu0 %5744, %v5679
        %v5746 = vpop.permute.xlu0 %5745
        %5749 = vset.pattern.permute.xlu0 0
        %5750 = vperm.xlu0 %5749, %v5680
        %v5751 = vpop.permute.xlu0 %5750
        %5754 = vset.pattern.permute.xlu0 0
        %5755 = vperm.xlu0 %5754, %v5681
        %v5756 = vpop.permute.xlu0 %5755
        %5759 = vset.pattern.permute.xlu0 0
        %5760 = vperm.xlu0 %5759, %v5682
        %v5761 = vpop.permute.xlu0 %5760
        %v5763 = vadd.f32 %v5634, %v5686
        %v5764 = vadd.f32 %v5635, %v5686
        %v5765 = vadd.f32 %v5636, %v5691
        %v5766 = vadd.f32 %v5637, %v5691
        %v5767 = vadd.f32 %v5638, %v5696
        %v5768 = vadd.f32 %v5639, %v5696
        %v5769 = vadd.f32 %v5640, %v5701
        %v5770 = vadd.f32 %v5641, %v5701
        %v5771 = vadd.f32 %v5642, %v5706
        %v5772 = vadd.f32 %v5643, %v5706
        %v5773 = vadd.f32 %v5644, %v5711
        %v5774 = vadd.f32 %v5645, %v5711
        %v5775 = vadd.f32 %v5646, %v5716
        %v5776 = vadd.f32 %v5647, %v5716
        %v5777 = vadd.f32 %v5648, %v5721
        %v5778 = vadd.f32 %v5649, %v5721
        %v5779 = vadd.f32 %v5650, %v5726
        %v5780 = vadd.f32 %v5651, %v5726
        %v5781 = vadd.f32 %v5652, %v5731
        %v5782 = vadd.f32 %v5653, %v5731
        %v5783 = vadd.f32 %v5654, %v5736
        %v5784 = vadd.f32 %v5655, %v5736
        %v5785 = vadd.f32 %v5656, %v5741
        %v5786 = vadd.f32 %v5657, %v5741
        %v5787 = vadd.f32 %v5658, %v5746
        %v5788 = vadd.f32 %v5659, %v5746
        %v5789 = vadd.f32 %v5660, %v5751
        %v5790 = vadd.f32 %v5661, %v5751
        %v5791 = vadd.f32 %v5662, %v5756
        %v5792 = vadd.f32 %v5663, %v5756
        %v5793 = vadd.f32 %v5664, %v5761
        %v5794 = vadd.f32 %v5665, %v5761
        %v5795 = vadd.f32 %v5763, %v251
        %v5796 = vadd.f32 %v5764, %v252
        %v5797 = vadd.f32 %v5765, %v253
        %v5798 = vadd.f32 %v5766, %v254
        %v5799 = vadd.f32 %v5767, %v255
        %v5800 = vadd.f32 %v5768, %v256
        %v5801 = vadd.f32 %v5769, %v257
        %v5802 = vadd.f32 %v5770, %v258
        %v5803 = vadd.f32 %v5771, %v259
        %v5804 = vadd.f32 %v5772, %v260
        %v5805 = vadd.f32 %v5773, %v261
        %v5806 = vadd.f32 %v5774, %v262
        %v5807 = vadd.f32 %v5775, %v263
        %v5808 = vadd.f32 %v5776, %v264
        %v5809 = vadd.f32 %v5777, %v265
        %v5810 = vadd.f32 %v5778, %v266
        %v5811 = vadd.f32 %v5779, %v267
        %v5812 = vadd.f32 %v5780, %v268
        %v5813 = vadd.f32 %v5781, %v269
        %v5814 = vadd.f32 %v5782, %v270
        %v5815 = vadd.f32 %v5783, %v271
        %v5816 = vadd.f32 %v5784, %v272
        %v5817 = vadd.f32 %v5785, %v273
        %v5818 = vadd.f32 %v5786, %v274
        %v5819 = vadd.f32 %v5787, %v275
        %v5820 = vadd.f32 %v5788, %v276
        %v5821 = vadd.f32 %v5789, %v277
        %v5822 = vadd.f32 %v5790, %v278
        %v5823 = vadd.f32 %v5791, %v279
        %v5824 = vadd.f32 %v5792, %v280
        %v5825 = vadd.f32 %v5793, %v281
        %v5826 = vadd.f32 %v5794, %v282
        %v5827 = vmax.f32 %v5795, 0.0
        %v5828 = vmax.f32 %v5796, 0.0
        %v5829 = vmax.f32 %v5797, 0.0
        %v5830 = vmax.f32 %v5798, 0.0
        %v5831 = vmax.f32 %v5799, 0.0
        %v5832 = vmax.f32 %v5800, 0.0
        %v5833 = vmax.f32 %v5801, 0.0
        %v5834 = vmax.f32 %v5802, 0.0
        %v5835 = vmax.f32 %v5803, 0.0
        %v5836 = vmax.f32 %v5804, 0.0
        %v5837 = vmax.f32 %v5805, 0.0
        %v5838 = vmax.f32 %v5806, 0.0
        %v5839 = vmax.f32 %v5807, 0.0
        %v5840 = vmax.f32 %v5808, 0.0
        %v5841 = vmax.f32 %v5809, 0.0
        %v5842 = vmax.f32 %v5810, 0.0
        %v5843 = vmax.f32 %v5811, 0.0
        %v5844 = vmax.f32 %v5812, 0.0
        %v5845 = vmax.f32 %v5813, 0.0
        %v5846 = vmax.f32 %v5814, 0.0
        %v5847 = vmax.f32 %v5815, 0.0
        %v5848 = vmax.f32 %v5816, 0.0
        %v5849 = vmax.f32 %v5817, 0.0
        %v5850 = vmax.f32 %v5818, 0.0
        %v5851 = vmax.f32 %v5819, 0.0
        %v5852 = vmax.f32 %v5820, 0.0
        %v5853 = vmax.f32 %v5821, 0.0
        %v5854 = vmax.f32 %v5822, 0.0
        %v5855 = vmax.f32 %v5823, 0.0
        %v5856 = vmax.f32 %v5824, 0.0
        %v5857 = vmax.f32 %v5825, 0.0
        %v5858 = vmax.f32 %v5826, 0.0
        %5859 = vst [vmem:[%s250] sm:$0xff] %v5827
        %5860 = vst [vmem:[%s250 + $0x8] sm:$0xff] %v5828
        %5861 = vst [vmem:[%s250 + $0x10] sm:$0xff] %v5829
        %5862 = vst [vmem:[%s250 + $0x18] sm:$0xff] %v5830
        %5863 = vst [vmem:[%s250 + $0x20] sm:$0xff] %v5831
        %5864 = vst [vmem:[%s250 + $0x28] sm:$0xff] %v5832
        %5865 = vst [vmem:[%s250 + $0x30] sm:$0xff] %v5833
        %5866 = vst [vmem:[%s250 + $0x38] sm:$0xff] %v5834
        %5867 = vst [vmem:[%s250 + $0x40] sm:$0xff] %v5835
        %5868 = vst [vmem:[%s250 + $0x48] sm:$0xff] %v5836
        %5869 = vst [vmem:[%s250 + $0x50] sm:$0xff] %v5837
        %5870 = vst [vmem:[%s250 + $0x58] sm:$0xff] %v5838
        %5871 = vst [vmem:[%s250 + $0x60] sm:$0xff] %v5839
        %5872 = vst [vmem:[%s250 + $0x68] sm:$0xff] %v5840
        %5873 = vst [vmem:[%s250 + $0x70] sm:$0xff] %v5841
        %5874 = vst [vmem:[%s250 + $0x78] sm:$0xff] %v5842
        %5875 = vst [vmem:[%s250 + $0x80] sm:$0xff] %v5843
        %5876 = vst [vmem:[%s250 + $0x88] sm:$0xff] %v5844
        %5877 = vst [vmem:[%s250 + $0x90] sm:$0xff] %v5845
        %5878 = vst [vmem:[%s250 + $0x98] sm:$0xff] %v5846
        %5879 = vst [vmem:[%s250 + $0xa0] sm:$0xff] %v5847
        %5880 = vst [vmem:[%s250 + $0xa8] sm:$0xff] %v5848
        %5881 = vst [vmem:[%s250 + $0xb0] sm:$0xff] %v5849
        %5882 = vst [vmem:[%s250 + $0xb8] sm:$0xff] %v5850
        %5883 = vst [vmem:[%s250 + $0xc0] sm:$0xff] %v5851
        %5884 = vst [vmem:[%s250 + $0xc8] sm:$0xff] %v5852
        %5885 = vst [vmem:[%s250 + $0xd0] sm:$0xff] %v5853
        %5886 = vst [vmem:[%s250 + $0xd8] sm:$0xff] %v5854
        %5887 = vst [vmem:[%s250 + $0xe0] sm:$0xff] %v5855
        %5888 = vst [vmem:[%s250 + $0xe8] sm:$0xff] %v5856
        %5889 = vst [vmem:[%s250 + $0xf0] sm:$0xff] %v5857
        %5890 = vst [vmem:[%s250 + $0xf8] sm:$0xff] %v5858
        %s5891 = sand.u32 %s119, 1
        %s5892 = scalar_lea.sflag [#allocation4], %s5891
        %s5893 = sand.u32 %s119, 1
        %s5894 = smul.addr %s5893, 256
        %s5895 = scalar_lea.vmem [#allocation8], %s5894
        // Predicated region
        $region49: #{tpu_custom_call.1} parent=35 // pred_check
          %p5896 = pneg %p129
        $region50: #{tpu_custom_call.1} parent=35 // pred_check_branch
          %5898 = sbr.rel (%p5896) target = $region52
        $region51: #{tpu_custom_call.1} parent=35 // pred_region
          %5900 = vsyncadd %s5892, 0
          %s5901 = smul.addr %s22, 32
          %s5902 = smul.addr %s5901, 8
          %s5903 = scalar_lea.hbm %s4, %s5902
          %s5904 = sshll.u32 %s5895, 4
          %s5905 = int_to_ptr.vmem [resolvable:$true] %s5904
          %s5906 = sshll.u32 %s5903, 4
          %s5907 = int_to_ptr.hbm [resolvable:$true] %s5906
          %5912 = dma.vmem_to_hbm [thread:$0]  %s5905, 4096, %s5907, %s5892, 256, 256, 16
        $region52: #{tpu_custom_call.1} parent=35 // pred_fallthru
          _
      $region36: #{tpu_custom_call.1} parent=5 // pred_fallthru
        _
      %p5913 = scmp.le.s32.totalorder 2, %s17
      // Predicated region
      $region53: #{tpu_custom_call.1} parent=5 // pred_check
        %p5914 = pneg %p5913
      $region54: #{tpu_custom_call.1} parent=5 // pred_check_branch
        %5916 = sbr.rel (%p5914) target = $region56
      $region55: #{tpu_custom_call.1} parent=5 // pred_region
        %s5917 = ssub.s32 %s17, 2
        // Predicated region
        $region57: #{tpu_custom_call.1} parent=55 // pred_check
          %p5918 = pneg %p135
        $region58: #{tpu_custom_call.1} parent=55 // pred_check_branch
          %5920 = sbr.rel (%p5918) target = $region60
        $region59: #{tpu_custom_call.1} parent=55 // pred_region
          %s5921 = sand.u32 %s120, 1
          %s5922 = scalar_lea.sflag [#allocation4], %s5921
          %s5923 = sand.u32 %s120, 1
          %s5924 = smul.addr %s5923, 256
          %s5925 = scalar_lea.vmem [#allocation8], %s5924
          %5927 = dma.done %s5922, 4096
        $region60: #{tpu_custom_call.1} parent=55 // pred_fallthru
          _
      $region56: #{tpu_custom_call.1} parent=5 // pred_fallthru
        _
    $region6: #{tpu_custom_call.1} parent=1 // loop_footer
      %s21 = sadd.s32 1, %s17
    $region7: #{tpu_custom_call.1} parent=1 // loop_footer_branch
      %16 = sbr.rel target = $region3
    $region8: #{tpu_custom_call.1} parent=1 // loop_exit
      _
    %5928 = vsyncpa [#allocation3], 1
    %s5929 = scalar_lea.sflag [#allocation3], 1
    %5930 = vsyncpa %s5929, 1
    %5931 = vsyncpa [#allocation6], 1
    %5932 = vsyncpa [#allocation4], 1
    %s5933 = scalar_lea.sflag [#allocation4], 1
    %5934 = vsyncpa %s5933, 1

</llo_original>
